<compile_context>
chip_gen: v7x
topology: tpu7x:2x2x1
jax: 0.10.0
libtpu: 0.0.40
codegen_flags: <defaults>
</compile_context>

<pallas_src>
import functools

import jax
import jax.numpy as jnp
from jax.experimental import pallas as pl
from jax.experimental.pallas import tpu as pltpu


def _resblock_kernel(x_ref, w1_ref, b1_ref, w2_ref, b2_ref, o_ref, *, C, H, W):
    HW = H * W
    eps = 1e-5  # InstanceNorm2d default (affine=False, biased variance)

    x_flat = x_ref[...].astype(jnp.float32)           # (C, HW), lane-dense

    # Weights / biases: constant index_map => VMEM-resident across grid steps.
    w1 = w1_ref[...]                                   # (C, 9C) f32
    b1 = b1_ref[...]                                   # (C, 1)  f32
    w2 = w2_ref[...]
    b2 = b2_ref[...]

    def conv3x3(a_flat, wmat, bias):
        # ReflectionPad2d(1) (requires H, W >= 2) + im2col -> single MXU matmul.
        a = a_flat.reshape(C, H, W)
        ap = jnp.concatenate([a[:, 1:2, :], a, a[:, H - 2:H - 1, :]], axis=1)
        ap = jnp.concatenate([ap[:, :, 1:2], ap, ap[:, :, W - 2:W - 1]], axis=2)
        # patches[(dh*3+dw)*C + c, h*W + w] == a_pad[c, h+dh, w+dw]
        taps = [ap[:, dh:dh + H, dw:dw + W].reshape(C, HW)
                for dh in range(3) for dw in range(3)]
        patches = jnp.concatenate(taps, axis=0)        # (9C, HW)
        # TODO(synk): for large H*W, generate taps with pltpu.roll over a padded
        # VMEM scratch instead of materialized slices to cut vld/vst pressure.
        return jnp.dot(wmat, patches,
                       preferred_element_type=jnp.float32) + bias

    def instance_norm(y):
        # Fused one-pass: sum and sum-of-squares in a single sweep.
        inv_n = 1.0 / HW
        s = jnp.sum(y, axis=1, keepdims=True)
        s2 = jnp.sum(y * y, axis=1, keepdims=True)
        m = s * inv_n
        v = s2 * inv_n - m * m
        return (y - m) * jax.lax.rsqrt(v + eps)

    y = conv3x3(x_flat, w1, b1)
    y = jnp.maximum(instance_norm(y), 0.0)
    y = conv3x3(y, w2, b2)
    y = instance_norm(y)

    o_ref[...] = (x_flat + y).astype(o_ref.dtype)      # lane-dense store


def residual_block(x_nchw, w1, b1, w2, b2):
    """x_nchw: (N, C, H, W); w*: (Cout, Cin, 3, 3) PyTorch layout; b*: (C,)."""
    N, C, H, W = x_nchw.shape
    assert H >= 2 and W >= 2, "ReflectionPad2d(1) requires H, W >= 2"
    HW = H * W

    # (N, C, H, W) -> (N, C, H*W): contiguous reshape, puts H*W on the lane axis.
    x = x_nchw.reshape(N, C, HW)

    # One-time, HBM-side weight preprocessing:
    # (Cout, Cin, 3, 3) -> (Cout, 3, 3, Cin) -> (Cout, 9*Cin), k = (dh*3+dw)*Cin + cin
    w1m = jnp.transpose(w1, (0, 2, 3, 1)).reshape(C, 9 * C).astype(jnp.float32)
    w2m = jnp.transpose(w2, (0, 2, 3, 1)).reshape(C, 9 * C).astype(jnp.float32)
    b1m = b1.reshape(C, 1).astype(jnp.float32)
    b2m = b2.reshape(C, 1).astype(jnp.float32)

    kernel = functools.partial(_resblock_kernel, C=C, H=H, W=W)

    itemsize = int(jnp.dtype(x_nchw.dtype).itemsize)
    cost = pl.CostEstimate(
        flops=4 * N * HW * 9 * C * C + 12 * N * C * HW,   # 2 convs + norm/relu/add
        transcendentals=2 * N * C,                        # rsqrt per channel, 2 norms
        bytes_accessed=2 * N * C * HW * itemsize + (2 * 9 * C * C + 2 * C) * 4,
    )

    out = pl.pallas_call(
        kernel,
        out_shape=jax.ShapeDtypeStruct((N, C, HW), x_nchw.dtype),
        grid_spec=pltpu.PrefetchScalarGridSpec(
            num_scalar_prefetch=0,
            grid=(N,),                                    # one step per batch element
            in_specs=[
                pl.BlockSpec((None, C, HW), lambda b: (b, 0, 0)),
                pl.BlockSpec((C, 9 * C), lambda b: (0, 0)),
                pl.BlockSpec((C, 1), lambda b: (0, 0)),
                pl.BlockSpec((C, 9 * C), lambda b: (0, 0)),
                pl.BlockSpec((C, 1), lambda b: (0, 0)),
            ],
            out_specs=pl.BlockSpec((None, C, HW), lambda b: (b, 0, 0)),
        ),
        compiler_params=pltpu.CompilerParams(
            dimension_semantics=("parallel",),
            vmem_limit_bytes=32 * 1024 * 1024,
        ),
        cost_estimate=cost,
    )(x, w1m, b1m, w2m, b2m)

    # TODO(synk): at style-transfer scale (e.g. 128x128x128), add an H-row tiling
    # grid axis (marked "parallel") with a 1-row halo so the per-step working set
    # fits v7x's 64 MiB VMEM and both v7x TensorCores get work when N is small.

    return out.reshape(N, C, H, W)


def _reference(x, w1, b1, w2, b2):
    """Pure-JAX reference matching the PyTorch module (NCHW)."""
    def conv(x, w, b):
        xp = jnp.pad(x, ((0, 0), (0, 0), (1, 1), (1, 1)), mode="reflect")
        y = jax.lax.conv_general_dilated(
            xp, w, window_strides=(1, 1), padding="VALID",
            dimension_numbers=("NCHW", "OIHW", "NCHW"))
        return y + b.reshape(1, -1, 1, 1)

    def inorm(y, eps=1e-5):
        m = jnp.mean(y, axis=(2, 3), keepdims=True)
        v = jnp.mean((y - m) ** 2, axis=(2, 3), keepdims=True)
        return (y - m) * jax.lax.rsqrt(v + eps)

    y = jnp.maximum(inorm(conv(x, w1, b1)), 0.0)
    y = inorm(conv(y, w2, b2))
    return x + y


if __name__ == "__main__":
    N, C, H, W = 2, 4, 16, 16
    key = jax.random.PRNGKey(0)
    kx, kw1, kb1, kw2, kb2 = jax.random.split(key, 5)

    x = jax.random.normal(kx, (N, C, H, W), dtype=jnp.float32)
    # Deterministic synthetic parameters (Conv2d(C, C, 3) shapes).
    w1 = jax.random.normal(kw1, (C, C, 3, 3), dtype=jnp.float32) * 0.1
    b1 = jax.random.normal(kb1, (C,), dtype=jnp.float32) * 0.1
    w2 = jax.random.normal(kw2, (C, C, 3, 3), dtype=jnp.float32) * 0.1
    b2 = jax.random.normal(kb2, (C,), dtype=jnp.float32) * 0.1

    out = residual_block(x, w1, b1, w2, b2)
    out = jax.block_until_ready(out)

    ref = jax.block_until_ready(_reference(x, w1, b1, w2, b2))
    assert out.shape == (N, C, H, W)
    assert jnp.allclose(out, ref, atol=1e-4, rtol=1e-4), "mismatch vs reference"

    print("KERNEL_OK")
</pallas_src>

<mosaic_0001>
module attributes {stable_mosaic.version = 11 : i64} {
  func.func @_resblock_kernel(%arg0: i32, %arg1: memref<1x4x256xf32, #tpu.memory_space<vmem>>, %arg2: memref<4x36xf32, #tpu.memory_space<vmem>>, %arg3: memref<4x1xf32, #tpu.memory_space<vmem>>, %arg4: memref<4x36xf32, #tpu.memory_space<vmem>>, %arg5: memref<4x1xf32, #tpu.memory_space<vmem>>, %arg6: memref<1x4x256xf32, #tpu.memory_space<vmem>>) attributes {dimension_semantics = [#tpu.dimension_semantics<parallel>], iteration_bounds = array<i64: 2>, scalar_prefetch = 0 : i64, scratch_operands = 0 : i64, tpu.core_type = #tpu.core_type<tc>, window_params = [{transform_indices = @transform_0, window_bounds = array<i64: 1, 4, 256>}, {pipeline_mode = #tpu.pipeline_mode<synchronous>, transform_indices = @transform_1, window_bounds = array<i64: 4, 36>}, {pipeline_mode = #tpu.pipeline_mode<synchronous>, transform_indices = @transform_2, window_bounds = array<i64: 4, 1>}, {pipeline_mode = #tpu.pipeline_mode<synchronous>, transform_indices = @transform_3, window_bounds = array<i64: 4, 36>}, {pipeline_mode = #tpu.pipeline_mode<synchronous>, transform_indices = @transform_4, window_bounds = array<i64: 4, 1>}, {transform_indices = @transform_5, window_bounds = array<i64: 1, 4, 256>}]} {
    %c0 = arith.constant 0 : index
    %c0_0 = arith.constant 0 : index
    %c0_1 = arith.constant 0 : index
    %0 = vector.load %arg1[%c0, %c0_0, %c0_1] : memref<1x4x256xf32, #tpu.memory_space<vmem>>, vector<1x4x256xf32>
    %1 = vector.shape_cast %0 : vector<1x4x256xf32> to vector<4x256xf32>
    %c0_2 = arith.constant 0 : index
    %c0_3 = arith.constant 0 : index
    %2 = vector.load %arg2[%c0_2, %c0_3] : memref<4x36xf32, #tpu.memory_space<vmem>>, vector<4x36xf32>
    %c0_4 = arith.constant 0 : index
    %c0_5 = arith.constant 0 : index
    %3 = vector.load %arg3[%c0_4, %c0_5] : memref<4x1xf32, #tpu.memory_space<vmem>>, vector<4x1xf32>
    %c0_6 = arith.constant 0 : index
    %c0_7 = arith.constant 0 : index
    %4 = vector.load %arg4[%c0_6, %c0_7] : memref<4x36xf32, #tpu.memory_space<vmem>>, vector<4x36xf32>
    %c0_8 = arith.constant 0 : index
    %c0_9 = arith.constant 0 : index
    %5 = vector.load %arg5[%c0_8, %c0_9] : memref<4x1xf32, #tpu.memory_space<vmem>>, vector<4x1xf32>
    %6 = vector.shape_cast %1 : vector<4x256xf32> to vector<4x16x16xf32>
    %7 = vector.extract_strided_slice %6 {offsets = [0, 1, 0], sizes = [4, 1, 16], strides = [1, 1, 1]} : vector<4x16x16xf32> to vector<4x1x16xf32>
    %8 = vector.extract_strided_slice %6 {offsets = [0, 14, 0], sizes = [4, 1, 16], strides = [1, 1, 1]} : vector<4x16x16xf32> to vector<4x1x16xf32>
    %9 = tpu.concatenate %7, %6, %8 in 1 : vector<4x1x16xf32>, vector<4x16x16xf32>, vector<4x1x16xf32> -> vector<4x18x16xf32>
    %10 = vector.extract_strided_slice %9 {offsets = [0, 0, 1], sizes = [4, 18, 1], strides = [1, 1, 1]} : vector<4x18x16xf32> to vector<4x18x1xf32>
    %11 = vector.extract_strided_slice %9 {offsets = [0, 0, 14], sizes = [4, 18, 1], strides = [1, 1, 1]} : vector<4x18x16xf32> to vector<4x18x1xf32>
    %12 = tpu.concatenate %10, %9, %11 in 2 : vector<4x18x1xf32>, vector<4x18x16xf32>, vector<4x18x1xf32> -> vector<4x18x18xf32>
    %13 = vector.extract_strided_slice %12 {offsets = [0, 0, 0], sizes = [4, 16, 16], strides = [1, 1, 1]} : vector<4x18x18xf32> to vector<4x16x16xf32>
    %14 = vector.shape_cast %13 : vector<4x16x16xf32> to vector<4x256xf32>
    %15 = vector.extract_strided_slice %12 {offsets = [0, 0, 1], sizes = [4, 16, 16], strides = [1, 1, 1]} : vector<4x18x18xf32> to vector<4x16x16xf32>
    %16 = vector.shape_cast %15 : vector<4x16x16xf32> to vector<4x256xf32>
    %17 = vector.extract_strided_slice %12 {offsets = [0, 0, 2], sizes = [4, 16, 16], strides = [1, 1, 1]} : vector<4x18x18xf32> to vector<4x16x16xf32>
    %18 = vector.shape_cast %17 : vector<4x16x16xf32> to vector<4x256xf32>
    %19 = vector.extract_strided_slice %12 {offsets = [0, 1, 0], sizes = [4, 16, 16], strides = [1, 1, 1]} : vector<4x18x18xf32> to vector<4x16x16xf32>
    %20 = vector.shape_cast %19 : vector<4x16x16xf32> to vector<4x256xf32>
    %21 = vector.extract_strided_slice %12 {offsets = [0, 1, 1], sizes = [4, 16, 16], strides = [1, 1, 1]} : vector<4x18x18xf32> to vector<4x16x16xf32>
    %22 = vector.shape_cast %21 : vector<4x16x16xf32> to vector<4x256xf32>
    %23 = vector.extract_strided_slice %12 {offsets = [0, 1, 2], sizes = [4, 16, 16], strides = [1, 1, 1]} : vector<4x18x18xf32> to vector<4x16x16xf32>
    %24 = vector.shape_cast %23 : vector<4x16x16xf32> to vector<4x256xf32>
    %25 = vector.extract_strided_slice %12 {offsets = [0, 2, 0], sizes = [4, 16, 16], strides = [1, 1, 1]} : vector<4x18x18xf32> to vector<4x16x16xf32>
    %26 = vector.shape_cast %25 : vector<4x16x16xf32> to vector<4x256xf32>
    %27 = vector.extract_strided_slice %12 {offsets = [0, 2, 1], sizes = [4, 16, 16], strides = [1, 1, 1]} : vector<4x18x18xf32> to vector<4x16x16xf32>
    %28 = vector.shape_cast %27 : vector<4x16x16xf32> to vector<4x256xf32>
    %29 = vector.extract_strided_slice %12 {offsets = [0, 2, 2], sizes = [4, 16, 16], strides = [1, 1, 1]} : vector<4x18x18xf32> to vector<4x16x16xf32>
    %30 = vector.shape_cast %29 : vector<4x16x16xf32> to vector<4x256xf32>
    %31 = tpu.concatenate %14, %16, %18, %20, %22, %24, %26, %28, %30 in 0 : vector<4x256xf32>, vector<4x256xf32>, vector<4x256xf32>, vector<4x256xf32>, vector<4x256xf32>, vector<4x256xf32>, vector<4x256xf32>, vector<4x256xf32>, vector<4x256xf32> -> vector<36x256xf32>
    %cst = arith.constant dense<0.000000e+00> : vector<4x256xf32>
    %32 = tpu.matmul %2, %31, %cst {dimension_numbers = #tpu.dot_dimension_numbers<[1], [0], [0], [1], [0, 0, 1, 1], [], []>} : vector<4x36xf32>, vector<36x256xf32>, vector<4x256xf32> -> vector<4x256xf32>
    %33 = vector.broadcast %3 : vector<4x1xf32> to vector<4x256xf32>
    %34 = arith.addf %32, %33 : vector<4x256xf32>
    %cst_10 = arith.constant dense<0.000000e+00> : vector<4xf32>
    %35 = vector.multi_reduction <add>, %34, %cst_10 [1] : vector<4x256xf32> to vector<4xf32>
    %36 = vector.shape_cast %35 : vector<4xf32> to vector<4x1xf32>
    %37 = arith.mulf %34, %34 : vector<4x256xf32>
    %cst_11 = arith.constant dense<0.000000e+00> : vector<4xf32>
    %38 = vector.multi_reduction <add>, %37, %cst_11 [1] : vector<4x256xf32> to vector<4xf32>
    %39 = vector.shape_cast %38 : vector<4xf32> to vector<4x1xf32>
    %cst_12 = arith.constant 3.906250e-03 : f32
    %40 = vector.broadcast %cst_12 : f32 to vector<4x1xf32>
    %41 = arith.mulf %36, %40 : vector<4x1xf32>
    %cst_13 = arith.constant 3.906250e-03 : f32
    %42 = vector.broadcast %cst_13 : f32 to vector<4x1xf32>
    %43 = arith.mulf %39, %42 : vector<4x1xf32>
    %44 = arith.mulf %41, %41 : vector<4x1xf32>
    %45 = arith.subf %43, %44 : vector<4x1xf32>
    %46 = vector.broadcast %41 : vector<4x1xf32> to vector<4x256xf32>
    %47 = arith.subf %34, %46 : vector<4x256xf32>
    %cst_14 = arith.constant 9.99999974E-6 : f32
    %48 = vector.broadcast %cst_14 : f32 to vector<4x1xf32>
    %49 = arith.addf %45, %48 : vector<4x1xf32>
    %50 = math.rsqrt %49 : vector<4x1xf32>
    %51 = vector.broadcast %50 : vector<4x1xf32> to vector<4x256xf32>
    %52 = arith.mulf %47, %51 : vector<4x256xf32>
    %cst_15 = arith.constant 0.000000e+00 : f32
    %53 = vector.broadcast %cst_15 : f32 to vector<4x256xf32>
    %54 = arith.maximumf %52, %53 : vector<4x256xf32>
    %55 = vector.shape_cast %54 : vector<4x256xf32> to vector<4x16x16xf32>
    %56 = vector.extract_strided_slice %55 {offsets = [0, 1, 0], sizes = [4, 1, 16], strides = [1, 1, 1]} : vector<4x16x16xf32> to vector<4x1x16xf32>
    %57 = vector.extract_strided_slice %55 {offsets = [0, 14, 0], sizes = [4, 1, 16], strides = [1, 1, 1]} : vector<4x16x16xf32> to vector<4x1x16xf32>
    %58 = tpu.concatenate %56, %55, %57 in 1 : vector<4x1x16xf32>, vector<4x16x16xf32>, vector<4x1x16xf32> -> vector<4x18x16xf32>
    %59 = vector.extract_strided_slice %58 {offsets = [0, 0, 1], sizes = [4, 18, 1], strides = [1, 1, 1]} : vector<4x18x16xf32> to vector<4x18x1xf32>
    %60 = vector.extract_strided_slice %58 {offsets = [0, 0, 14], sizes = [4, 18, 1], strides = [1, 1, 1]} : vector<4x18x16xf32> to vector<4x18x1xf32>
    %61 = tpu.concatenate %59, %58, %60 in 2 : vector<4x18x1xf32>, vector<4x18x16xf32>, vector<4x18x1xf32> -> vector<4x18x18xf32>
    %62 = vector.extract_strided_slice %61 {offsets = [0, 0, 0], sizes = [4, 16, 16], strides = [1, 1, 1]} : vector<4x18x18xf32> to vector<4x16x16xf32>
    %63 = vector.shape_cast %62 : vector<4x16x16xf32> to vector<4x256xf32>
    %64 = vector.extract_strided_slice %61 {offsets = [0, 0, 1], sizes = [4, 16, 16], strides = [1, 1, 1]} : vector<4x18x18xf32> to vector<4x16x16xf32>
    %65 = vector.shape_cast %64 : vector<4x16x16xf32> to vector<4x256xf32>
    %66 = vector.extract_strided_slice %61 {offsets = [0, 0, 2], sizes = [4, 16, 16], strides = [1, 1, 1]} : vector<4x18x18xf32> to vector<4x16x16xf32>
    %67 = vector.shape_cast %66 : vector<4x16x16xf32> to vector<4x256xf32>
    %68 = vector.extract_strided_slice %61 {offsets = [0, 1, 0], sizes = [4, 16, 16], strides = [1, 1, 1]} : vector<4x18x18xf32> to vector<4x16x16xf32>
    %69 = vector.shape_cast %68 : vector<4x16x16xf32> to vector<4x256xf32>
    %70 = vector.extract_strided_slice %61 {offsets = [0, 1, 1], sizes = [4, 16, 16], strides = [1, 1, 1]} : vector<4x18x18xf32> to vector<4x16x16xf32>
    %71 = vector.shape_cast %70 : vector<4x16x16xf32> to vector<4x256xf32>
    %72 = vector.extract_strided_slice %61 {offsets = [0, 1, 2], sizes = [4, 16, 16], strides = [1, 1, 1]} : vector<4x18x18xf32> to vector<4x16x16xf32>
    %73 = vector.shape_cast %72 : vector<4x16x16xf32> to vector<4x256xf32>
    %74 = vector.extract_strided_slice %61 {offsets = [0, 2, 0], sizes = [4, 16, 16], strides = [1, 1, 1]} : vector<4x18x18xf32> to vector<4x16x16xf32>
    %75 = vector.shape_cast %74 : vector<4x16x16xf32> to vector<4x256xf32>
    %76 = vector.extract_strided_slice %61 {offsets = [0, 2, 1], sizes = [4, 16, 16], strides = [1, 1, 1]} : vector<4x18x18xf32> to vector<4x16x16xf32>
    %77 = vector.shape_cast %76 : vector<4x16x16xf32> to vector<4x256xf32>
    %78 = vector.extract_strided_slice %61 {offsets = [0, 2, 2], sizes = [4, 16, 16], strides = [1, 1, 1]} : vector<4x18x18xf32> to vector<4x16x16xf32>
    %79 = vector.shape_cast %78 : vector<4x16x16xf32> to vector<4x256xf32>
    %80 = tpu.concatenate %63, %65, %67, %69, %71, %73, %75, %77, %79 in 0 : vector<4x256xf32>, vector<4x256xf32>, vector<4x256xf32>, vector<4x256xf32>, vector<4x256xf32>, vector<4x256xf32>, vector<4x256xf32>, vector<4x256xf32>, vector<4x256xf32> -> vector<36x256xf32>
    %cst_16 = arith.constant dense<0.000000e+00> : vector<4x256xf32>
    %81 = tpu.matmul %4, %80, %cst_16 {dimension_numbers = #tpu.dot_dimension_numbers<[1], [0], [0], [1], [0, 0, 1, 1], [], []>} : vector<4x36xf32>, vector<36x256xf32>, vector<4x256xf32> -> vector<4x256xf32>
    %82 = vector.broadcast %5 : vector<4x1xf32> to vector<4x256xf32>
    %83 = arith.addf %81, %82 : vector<4x256xf32>
    %cst_17 = arith.constant dense<0.000000e+00> : vector<4xf32>
    %84 = vector.multi_reduction <add>, %83, %cst_17 [1] : vector<4x256xf32> to vector<4xf32>
    %85 = vector.shape_cast %84 : vector<4xf32> to vector<4x1xf32>
    %86 = arith.mulf %83, %83 : vector<4x256xf32>
    %cst_18 = arith.constant dense<0.000000e+00> : vector<4xf32>
    %87 = vector.multi_reduction <add>, %86, %cst_18 [1] : vector<4x256xf32> to vector<4xf32>
    %88 = vector.shape_cast %87 : vector<4xf32> to vector<4x1xf32>
    %cst_19 = arith.constant 3.906250e-03 : f32
    %89 = vector.broadcast %cst_19 : f32 to vector<4x1xf32>
    %90 = arith.mulf %85, %89 : vector<4x1xf32>
    %cst_20 = arith.constant 3.906250e-03 : f32
    %91 = vector.broadcast %cst_20 : f32 to vector<4x1xf32>
    %92 = arith.mulf %88, %91 : vector<4x1xf32>
    %93 = arith.mulf %90, %90 : vector<4x1xf32>
    %94 = arith.subf %92, %93 : vector<4x1xf32>
    %95 = vector.broadcast %90 : vector<4x1xf32> to vector<4x256xf32>
    %96 = arith.subf %83, %95 : vector<4x256xf32>
    %cst_21 = arith.constant 9.99999974E-6 : f32
    %97 = vector.broadcast %cst_21 : f32 to vector<4x1xf32>
    %98 = arith.addf %94, %97 : vector<4x1xf32>
    %99 = math.rsqrt %98 : vector<4x1xf32>
    %100 = vector.broadcast %99 : vector<4x1xf32> to vector<4x256xf32>
    %101 = arith.mulf %96, %100 : vector<4x256xf32>
    %102 = arith.addf %1, %101 : vector<4x256xf32>
    %c0_22 = arith.constant 0 : index
    %c0_23 = arith.constant 0 : index
    %c0_24 = arith.constant 0 : index
    %103 = vector.load %arg6[%c0_22, %c0_23, %c0_24] : memref<1x4x256xf32, #tpu.memory_space<vmem>>, vector<1x4x256xf32>
    %104 = vector.shape_cast %103 : vector<1x4x256xf32> to vector<4x256xf32>
    %105 = vector.shape_cast %102 : vector<4x256xf32> to vector<1x4x256xf32>
    tpu.vector_store %arg6[%c0_22, %c0_23, %c0_24], %105 {strides = array<i32>} : memref<1x4x256xf32, #tpu.memory_space<vmem>>, vector<1x4x256xf32>,
    return
  }
  func.func @transform_0(%arg0: i32) -> (i32, i32, i32) {
    %c0_i32 = arith.constant 0 : i32
    %c0_i32_0 = arith.constant 0 : i32
    %c0_i32_1 = arith.constant 0 : i32
    return %arg0, %c0_i32, %c0_i32_0 : i32, i32, i32
  }
  func.func @transform_1(%arg0: i32) -> (i32, i32) {
    %c0_i32 = arith.constant 0 : i32
    %c0_i32_0 = arith.constant 0 : i32
    %c0_i32_1 = arith.constant 0 : i32
    return %c0_i32, %c0_i32_0 : i32, i32
  }
  func.func @transform_2(%arg0: i32) -> (i32, i32) {
    %c0_i32 = arith.constant 0 : i32
    %c0_i32_0 = arith.constant 0 : i32
    %c0_i32_1 = arith.constant 0 : i32
    return %c0_i32, %c0_i32_0 : i32, i32
  }
  func.func @transform_3(%arg0: i32) -> (i32, i32) {
    %c0_i32 = arith.constant 0 : i32
    %c0_i32_0 = arith.constant 0 : i32
    %c0_i32_1 = arith.constant 0 : i32
    return %c0_i32, %c0_i32_0 : i32, i32
  }
  func.func @transform_4(%arg0: i32) -> (i32, i32) {
    %c0_i32 = arith.constant 0 : i32
    %c0_i32_0 = arith.constant 0 : i32
    %c0_i32_1 = arith.constant 0 : i32
    return %c0_i32, %c0_i32_0 : i32, i32
  }
  func.func @transform_5(%arg0: i32) -> (i32, i32, i32) {
    %c0_i32 = arith.constant 0 : i32
    %c0_i32_0 = arith.constant 0 : i32
    %c0_i32_1 = arith.constant 0 : i32
    return %arg0, %c0_i32, %c0_i32_0 : i32, i32, i32
  }
}

</mosaic_0001>

<llo_original>
// kernel: tpu_custom_call.1
$region0: #{tpu_custom_call.1}
  #allocation0 [shape = 'u32[]', space=smem, size = 0x4, offset = 0x4, fixed_abs, tag = 'smem constant byte address 0x4 - core index']
  #allocation1 [shape = 'u32[144,128]{1,0:T(1,128)}', space=vmem, size = 0x12000, scoped, tag = 'internal scratch']
  %s0 = inlined_call_operand.hbm [shape: f32[2,4,256], index: 0, kind: input, shape index: {}]
  %s1 = inlined_call_operand.vmem [shape: f32[4,36], index: 1, kind: input, shape index: {}]
  %s2 = inlined_call_operand.vmem [shape: f32[4,1], index: 2, kind: input, shape index: {}]
  %s3 = inlined_call_operand.vmem [shape: f32[4,36], index: 3, kind: input, shape index: {}]
  %s4 = inlined_call_operand.vmem [shape: f32[4,1], index: 4, kind: input, shape index: {}]
  %s5 = inlined_call_operand.hbm [shape: f32[2,4,256], index: 5, kind: output, shape index: {}]
  %s6 = sld [smem:[#allocation0]]
  $region57: #{tpu_custom_call.1} parent=0
    _
  %s8 = ssub.s32 1, %s6
  %s9 = scalar_select 0, %s8, %s6
  $region1: #{tpu_custom_call.1} parent=0
    #allocation2 [shape = 'u8[8192]{0}', space=vmem, size = 0x2000, scoped, tag = 'input window, operand 0']
    #allocation3 [shape = 's32[2]{0}', space=sflag, size = 0x8, scoped, tag = 'scoped memory for tpu_custom_call.1']
    #allocation4 [shape = 's32[2]{0}', space=sflag, size = 0x8, scoped, tag = 'scoped memory for tpu_custom_call.1']
    #allocation5 [shape = 'u8[8192]{0}', space=vmem, size = 0x2000, scoped, tag = 'output window, operand 0']
    %10 = vsyncpa [#allocation3], 0
    %s11 = scalar_lea.sflag [#allocation3], 1
    %12 = vsyncpa %s11, 0
    %13 = vsyncpa [#allocation4], 0
    %s14 = scalar_lea.sflag [#allocation4], 1
    %15 = vsyncpa %s14, 0
    loop: start=0, step=1, limit=4
    $region2: #{tpu_custom_call.1} parent=1 // loop_pre_header
      _
    $region3: #{tpu_custom_call.1} parent=1 // loop_header
      %s17 = sphi 0, %s21
      %p18 = scmp.ge.s32.totalorder %s17, 4
      %s27 = sphi 0, %s29
      %s30 = sphi 0, %s27
      %s31 = sphi 0, %s30
      %s47 = sphi 0, %s31
      %s51 = sphi 0, %s51
      %s53 = sphi 0, %s51
      %s54 = sphi 0, %s53
      %s68 = sphi 0, %s54
      %s72 = sphi 0, %s72
      %s74 = sphi 0, %s72
      %s75 = sphi 0, %s74
      %s89 = sphi 0, %s75
      %s93 = sphi 0, %s93
      %s95 = sphi 0, %s93
      %s96 = sphi 0, %s95
      %s110 = sphi 0, %s96
      %s114 = sphi 0, %s114
      %s116 = sphi 0, %s114
      %s117 = sphi 0, %s116
      %s131 = sphi 0, %s117
      %s137 = sphi 0, %s139
      %s140 = sphi 0, %s137
      %s141 = sphi 0, %s140
      %s157 = sphi 0, %s141
    $region4: #{tpu_custom_call.1} parent=1 // loop_header_branch
      %20 = sbr.rel (%p18) target = $region8
    $region5: #{tpu_custom_call.1} parent=1 // loop_body
      %s22 = ssub.s32 %s17, 1
      %s23 = ssub.s32 %s17, 2
      %s24 = sadd.s32 %s17, 1
      %s25 = ssub.s32 %s17, %s24
      %p26 = scmp.eq.s32.totalorder %s25, 0
      %s28 = sadd.s32 %s27, 1
      %s29 = scalar_select %p26, %s27, %s28
      %p32 = pneg %p26
      %p33 = scmp.eq.s32.totalorder %s17, 1
      %p34 = por %p32, %p33
      %p35 = scmp.ne.s32.totalorder %s27, %s30
      %p36 = scmp.eq.s32.totalorder %s17, 0
      %p37 = por %p35, %p36
      %p38 = scmp.ne.s32.totalorder %s27, %s30
      %p39 = scmp.eq.s32.totalorder %s22, 1
      %p40 = por %p38, %p39
      %p41 = scmp.ne.s32.totalorder %s30, %s31
      %p42 = scmp.eq.s32.totalorder %s22, 0
      %p43 = por %p41, %p42
      %p44 = scmp.ne.s32.totalorder %s30, %s31
      %p45 = scmp.eq.s32.totalorder %s23, 1
      %p46 = por %p44, %p45
      %p48 = scmp.ne.s32.totalorder %s31, %s47
      %p49 = scmp.eq.s32.totalorder %s23, 0
      %p50 = por %p48, %p49
      %s52 = sadd.s32 %s51, 1
      %p55 = scmp.eq.s32.totalorder %s17, 1
      %p56 = scmp.ne.s32.totalorder %s51, %s53
      %p57 = scmp.eq.s32.totalorder %s17, 0
      %p58 = por %p56, %p57
      %p59 = scmp.ne.s32.totalorder %s51, %s53
      %p60 = scmp.eq.s32.totalorder %s22, 1
      %p61 = por %p59, %p60
      %p62 = scmp.ne.s32.totalorder %s53, %s54
      %p63 = scmp.eq.s32.totalorder %s22, 0
      %p64 = por %p62, %p63
      %p65 = scmp.ne.s32.totalorder %s53, %s54
      %p66 = scmp.eq.s32.totalorder %s23, 1
      %p67 = por %p65, %p66
      %p69 = scmp.ne.s32.totalorder %s54, %s68
      %p70 = scmp.eq.s32.totalorder %s23, 0
      %p71 = por %p69, %p70
      %s73 = sadd.s32 %s72, 1
      %p76 = scmp.eq.s32.totalorder %s17, 1
      %p77 = scmp.ne.s32.totalorder %s72, %s74
      %p78 = scmp.eq.s32.totalorder %s17, 0
      %p79 = por %p77, %p78
      %p80 = scmp.ne.s32.totalorder %s72, %s74
      %p81 = scmp.eq.s32.totalorder %s22, 1
      %p82 = por %p80, %p81
      %p83 = scmp.ne.s32.totalorder %s74, %s75
      %p84 = scmp.eq.s32.totalorder %s22, 0
      %p85 = por %p83, %p84
      %p86 = scmp.ne.s32.totalorder %s74, %s75
      %p87 = scmp.eq.s32.totalorder %s23, 1
      %p88 = por %p86, %p87
      %p90 = scmp.ne.s32.totalorder %s75, %s89
      %p91 = scmp.eq.s32.totalorder %s23, 0
      %p92 = por %p90, %p91
      %s94 = sadd.s32 %s93, 1
      %p97 = scmp.eq.s32.totalorder %s17, 1
      %p98 = scmp.ne.s32.totalorder %s93, %s95
      %p99 = scmp.eq.s32.totalorder %s17, 0
      %p100 = por %p98, %p99
      %p101 = scmp.ne.s32.totalorder %s93, %s95
      %p102 = scmp.eq.s32.totalorder %s22, 1
      %p103 = por %p101, %p102
      %p104 = scmp.ne.s32.totalorder %s95, %s96
      %p105 = scmp.eq.s32.totalorder %s22, 0
      %p106 = por %p104, %p105
      %p107 = scmp.ne.s32.totalorder %s95, %s96
      %p108 = scmp.eq.s32.totalorder %s23, 1
      %p109 = por %p107, %p108
      %p111 = scmp.ne.s32.totalorder %s96, %s110
      %p112 = scmp.eq.s32.totalorder %s23, 0
      %p113 = por %p111, %p112
      %s115 = sadd.s32 %s114, 1
      %p118 = scmp.eq.s32.totalorder %s17, 1
      %p119 = scmp.ne.s32.totalorder %s114, %s116
      %p120 = scmp.eq.s32.totalorder %s17, 0
      %p121 = por %p119, %p120
      %p122 = scmp.ne.s32.totalorder %s114, %s116
      %p123 = scmp.eq.s32.totalorder %s22, 1
      %p124 = por %p122, %p123
      %p125 = scmp.ne.s32.totalorder %s116, %s117
      %p126 = scmp.eq.s32.totalorder %s22, 0
      %p127 = por %p125, %p126
      %p128 = scmp.ne.s32.totalorder %s116, %s117
      %p129 = scmp.eq.s32.totalorder %s23, 1
      %p130 = por %p128, %p129
      %p132 = scmp.ne.s32.totalorder %s117, %s131
      %p133 = scmp.eq.s32.totalorder %s23, 0
      %p134 = por %p132, %p133
      %s135 = ssub.s32 %s17, %s24
      %p136 = scmp.eq.s32.totalorder %s135, 0
      %s138 = sadd.s32 %s137, 1
      %s139 = scalar_select %p136, %s137, %s138
      %p142 = pneg %p136
      %p143 = scmp.eq.s32.totalorder %s17, 1
      %p144 = por %p142, %p143
      %p145 = scmp.ne.s32.totalorder %s137, %s140
      %p146 = scmp.eq.s32.totalorder %s17, 0
      %p147 = por %p145, %p146
      %p148 = scmp.ne.s32.totalorder %s137, %s140
      %p149 = scmp.eq.s32.totalorder %s22, 1
      %p150 = por %p148, %p149
      %p151 = scmp.ne.s32.totalorder %s140, %s141
      %p152 = scmp.eq.s32.totalorder %s22, 0
      %p153 = por %p151, %p152
      %p154 = scmp.ne.s32.totalorder %s140, %s141
      %p155 = scmp.eq.s32.totalorder %s23, 1
      %p156 = por %p154, %p155
      %p158 = scmp.ne.s32.totalorder %s141, %s157
      %p159 = scmp.eq.s32.totalorder %s23, 0
      %p160 = por %p158, %p159
      %p161 = scmp.le.s32.totalorder 1, %s17
      %p162 = scmp.lt.s32.totalorder %s17, 3
      %p163 = pnand %p161, %p162
      %p164 = pneg %p163
      // Predicated region
      $region9: #{tpu_custom_call.1} parent=5 // pred_check
        _
      $region10: #{tpu_custom_call.1} parent=5 // pred_check_branch
        %166 = sbr.rel (%p163) target = $region12
      $region11: #{tpu_custom_call.1} parent=5 // pred_region
        %s167 = ssub.s32 %s17, 1
        // Predicated region
        $region13: #{tpu_custom_call.1} parent=11 // pred_check
          %p168 = pneg %p64
        $region14: #{tpu_custom_call.1} parent=11 // pred_check_branch
          %170 = sbr.rel (%p168) target = $region16
        $region15: #{tpu_custom_call.1} parent=11 // pred_region
          _
        $region16: #{tpu_custom_call.1} parent=11 // pred_fallthru
          _
        // Predicated region
        $region17: #{tpu_custom_call.1} parent=11 // pred_check
          %p171 = pneg %p85
        $region18: #{tpu_custom_call.1} parent=11 // pred_check_branch
          %173 = sbr.rel (%p171) target = $region20
        $region19: #{tpu_custom_call.1} parent=11 // pred_region
          _
        $region20: #{tpu_custom_call.1} parent=11 // pred_fallthru
          _
        // Predicated region
        $region21: #{tpu_custom_call.1} parent=11 // pred_check
          %p174 = pneg %p106
        $region22: #{tpu_custom_call.1} parent=11 // pred_check_branch
          %176 = sbr.rel (%p174) target = $region24
        $region23: #{tpu_custom_call.1} parent=11 // pred_region
          _
        $region24: #{tpu_custom_call.1} parent=11 // pred_fallthru
          _
        // Predicated region
        $region25: #{tpu_custom_call.1} parent=11 // pred_check
          %p177 = pneg %p127
        $region26: #{tpu_custom_call.1} parent=11 // pred_check_branch
          %179 = sbr.rel (%p177) target = $region28
        $region27: #{tpu_custom_call.1} parent=11 // pred_region
          _
        $region28: #{tpu_custom_call.1} parent=11 // pred_fallthru
          _
      $region12: #{tpu_custom_call.1} parent=5 // pred_fallthru
        _
      %p180 = scmp.lt.s32.totalorder %s17, 2
      // Predicated region
      $region29: #{tpu_custom_call.1} parent=5 // pred_check
        %p181 = pneg %p180
      $region30: #{tpu_custom_call.1} parent=5 // pred_check_branch
        %183 = sbr.rel (%p181) target = $region32
      $region31: #{tpu_custom_call.1} parent=5 // pred_region
        // Predicated region
        $region33: #{tpu_custom_call.1} parent=31 // pred_check
          %p184 = pneg %p37
        $region34: #{tpu_custom_call.1} parent=31 // pred_check_branch
          %186 = sbr.rel (%p184) target = $region36
        $region35: #{tpu_custom_call.1} parent=31 // pred_region
          %s187 = sand.u32 %s27, 1
          %s188 = scalar_lea.sflag [#allocation3], %s187
          %s189 = sand.u32 %s27, 1
          %s190 = smul.addr %s189, 8
          %s191 = scalar_lea.vmem [#allocation2], %s190
          %s193 = ssub.s32 128, 128
          %194 = vsyncadd %s188, %s193
          %s195 = smul.addr %s17, 2
          %s196 = smul.addr %s195, 64
          %s197 = scalar_lea.hbm %s0, %s196
          %s199 = sshll.u32 %s191, 4
          %s200 = int_to_ptr.vmem [resolvable:$true] %s199
          %202 = dma.hbm_to_vmem [thread:$0]  %s197, 128, %s200, %s188
        $region36: #{tpu_custom_call.1} parent=31 // pred_fallthru
          _
      $region32: #{tpu_custom_call.1} parent=5 // pred_fallthru
        _
      %p203 = scmp.le.s32.totalorder 1, %s17
      %p204 = scmp.lt.s32.totalorder %s17, 3
      %p205 = pnand %p203, %p204
      %p206 = pneg %p205
      // Predicated region
      $region37: #{tpu_custom_call.1} parent=5 // pred_check
        _
      $region38: #{tpu_custom_call.1} parent=5 // pred_check_branch
        %208 = sbr.rel (%p205) target = $region40
      $region39: #{tpu_custom_call.1} parent=5 // pred_region
        %s209 = ssub.s32 %s17, 1
        %s210 = sand.u32 %s30, 1
        %s211 = scalar_lea.sflag [#allocation3], %s210
        %s212 = sand.u32 %s30, 1
        %s213 = smul.addr %s212, 8
        %s214 = scalar_lea.vmem [#allocation2], %s213
        // Predicated region
        $region41: #{tpu_custom_call.1} parent=39 // pred_check
          %p215 = pneg %p43
        $region42: #{tpu_custom_call.1} parent=39 // pred_check_branch
          %217 = sbr.rel (%p215) target = $region44
        $region43: #{tpu_custom_call.1} parent=39 // pred_region
          %218 = dma.done %s211, 128
        $region44: #{tpu_custom_call.1} parent=39 // pred_fallthru
          _
        %s219 = sand.u32 %s30, 1
        %s220 = scalar_lea.sflag [#allocation3], %s219
        %s221 = sand.u32 %s30, 1
        %s222 = smul.addr %s221, 8
        %s223 = scalar_lea.vmem [#allocation2], %s222
        %p224 = pneg %p43
        %p225 = pneg %p40
        %p226 = pneg %p64
        %p227 = pneg %p61
        %p228 = pneg %p85
        %p229 = pneg %p82
        %p230 = pneg %p106
        %p231 = pneg %p103
        %p232 = pneg %p127
        %p233 = pneg %p124
        %p234 = pneg %p153
        %p235 = pneg %p150
        %s236 = sand.u32 %s140, 1
        %s237 = scalar_lea.sflag [#allocation4], %s236
        %s238 = sand.u32 %s140, 1
        %s239 = smul.addr %s238, 8
        %s240 = scalar_lea.vmem [#allocation5], %s239
        %v241 = vld [vmem:[%s214] sm:$0xff]
        %v242 = vld [vmem:[%s1] sm:$0xf]
        %v243 = vld [vmem:[%s2] sm:$0xf]
        %v244 = vld [vmem:[%s3] sm:$0xf]
        %v245 = vld [vmem:[%s4] sm:$0xf]
        %v247 = vrot.slane %v241, 4
        %249 = vrot.lane.b32.xlu0 %v241, 112
        %v250 = vpop.permute.xlu0 %249
        %v251 = vrot.slane %v250, 4
        %253 = vrot.lane.b32.xlu0 %v241, 96
        %v254 = vpop.permute.xlu0 %253
        %v255 = vrot.slane %v254, 4
        %257 = vrot.lane.b32.xlu0 %v241, 80
        %v258 = vpop.permute.xlu0 %257
        %v259 = vrot.slane %v258, 4
        %261 = vrot.lane.b32.xlu0 %v241, 64
        %v262 = vpop.permute.xlu0 %261
        %v263 = vrot.slane %v262, 4
        %265 = vrot.lane.b32.xlu0 %v241, 48
        %v266 = vpop.permute.xlu0 %265
        %v267 = vrot.slane %v266, 4
        %269 = vrot.lane.b32.xlu0 %v241, 32
        %v270 = vpop.permute.xlu0 %269
        %v271 = vrot.slane %v270, 4
        %273 = vrot.lane.b32.xlu0 %v241, 16
        %v274 = vpop.permute.xlu0 %273
        %v275 = vrot.slane %v274, 4
        %v284 = vcombine.low %v241, %v254
        %v286 = vunpack.c.l.s4 1983009808
        %v287 = vunpack.c.0.s8 %v286
        %v288 = vlaneseq
        %v289 = vshrl.u32 %v288, 7
        %v290 = vsub.s32 %v287, %v289
        %v291 = vrot.slane %v284, %v290
        %v292 = vcombine.low %v250, %v258
        %v294 = vunpack.c.l.s4 1983009808
        %v295 = vunpack.c.0.s8 %v294
        %v296 = vlaneseq
        %v297 = vshrl.u32 %v296, 7
        %v298 = vsub.s32 %v295, %v297
        %v299 = vrot.slane %v292, %v298
        %v300 = vcombine.low %v291, %v299
        %v301 = vcombine.high %v291, %v299
        %v303 = vunpack.c.l.s4 1934713408
        %v304 = vunpack.c.0.s8 %v303
        %v305 = vlaneseq
        %v306 = vshrl.u32 %v305, 7
        %v307 = vsub.s32 %v304, %v306
        %v308 = vrot.slane %v300, %v307
        %v310 = vunpack.c.l.s4 1934713408
        %v311 = vunpack.c.0.s8 %v310
        %v312 = vlaneseq
        %v313 = vshrl.u32 %v312, 7
        %v314 = vsub.s32 %v311, %v313
        %v315 = vrot.slane %v301, %v314
        %v316 = vcombine.high %v308, 0.0
        %v317 = vcombine.high %v315, 0.0
        %v318 = vcombine.low %v262, %v270
        %v320 = vunpack.c.l.s4 1983009808
        %v321 = vunpack.c.0.s8 %v320
        %v322 = vlaneseq
        %v323 = vshrl.u32 %v322, 7
        %v324 = vsub.s32 %v321, %v323
        %v325 = vrot.slane %v318, %v324
        %v326 = vcombine.low %v266, %v274
        %v328 = vunpack.c.l.s4 1983009808
        %v329 = vunpack.c.0.s8 %v328
        %v330 = vlaneseq
        %v331 = vshrl.u32 %v330, 7
        %v332 = vsub.s32 %v329, %v331
        %v333 = vrot.slane %v326, %v332
        %v334 = vcombine.low %v325, %v333
        %v335 = vcombine.high %v325, %v333
        %v337 = vunpack.c.l.s4 1934713408
        %v338 = vunpack.c.0.s8 %v337
        %v339 = vlaneseq
        %v340 = vshrl.u32 %v339, 7
        %v341 = vsub.s32 %v338, %v340
        %v342 = vrot.slane %v334, %v341
        %v344 = vunpack.c.l.s4 1934713408
        %v345 = vunpack.c.0.s8 %v344
        %v346 = vlaneseq
        %v347 = vshrl.u32 %v346, 7
        %v348 = vsub.s32 %v345, %v347
        %v349 = vrot.slane %v335, %v348
        %v350 = vcombine.high %v342, 0.0
        %v351 = vcombine.high %v349, 0.0
        %v352 = vcombine.low %v247, %v255
        %v354 = vunpack.c.l.s4 1983009808
        %v355 = vunpack.c.0.s8 %v354
        %v356 = vlaneseq
        %v357 = vshrl.u32 %v356, 7
        %v358 = vsub.s32 %v355, %v357
        %v359 = vrot.slane %v352, %v358
        %v360 = vcombine.low %v251, %v259
        %v362 = vunpack.c.l.s4 1983009808
        %v363 = vunpack.c.0.s8 %v362
        %v364 = vlaneseq
        %v365 = vshrl.u32 %v364, 7
        %v366 = vsub.s32 %v363, %v365
        %v367 = vrot.slane %v360, %v366
        %v368 = vcombine.low %v359, %v367
        %v369 = vcombine.high %v359, %v367
        %v371 = vunpack.c.l.s4 1934713408
        %v372 = vunpack.c.0.s8 %v371
        %v373 = vlaneseq
        %v374 = vshrl.u32 %v373, 7
        %v375 = vsub.s32 %v372, %v374
        %v376 = vrot.slane %v368, %v375
        %v378 = vunpack.c.l.s4 1934713408
        %v379 = vunpack.c.0.s8 %v378
        %v380 = vlaneseq
        %v381 = vshrl.u32 %v380, 7
        %v382 = vsub.s32 %v379, %v381
        %v383 = vrot.slane %v369, %v382
        %v384 = vcombine.high %v376, 0.0
        %v385 = vcombine.high %v383, 0.0
        %v386 = vcombine.low %v263, %v271
        %v388 = vunpack.c.l.s4 1983009808
        %v389 = vunpack.c.0.s8 %v388
        %v390 = vlaneseq
        %v391 = vshrl.u32 %v390, 7
        %v392 = vsub.s32 %v389, %v391
        %v393 = vrot.slane %v386, %v392
        %v394 = vcombine.low %v267, %v275
        %v396 = vunpack.c.l.s4 1983009808
        %v397 = vunpack.c.0.s8 %v396
        %v398 = vlaneseq
        %v399 = vshrl.u32 %v398, 7
        %v400 = vsub.s32 %v397, %v399
        %v401 = vrot.slane %v394, %v400
        %v402 = vcombine.low %v393, %v401
        %v403 = vcombine.high %v393, %v401
        %v405 = vunpack.c.l.s4 1934713408
        %v406 = vunpack.c.0.s8 %v405
        %v407 = vlaneseq
        %v408 = vshrl.u32 %v407, 7
        %v409 = vsub.s32 %v406, %v408
        %v410 = vrot.slane %v402, %v409
        %v412 = vunpack.c.l.s4 1934713408
        %v413 = vunpack.c.0.s8 %v412
        %v414 = vlaneseq
        %v415 = vshrl.u32 %v414, 7
        %v416 = vsub.s32 %v413, %v415
        %v417 = vrot.slane %v403, %v416
        %v418 = vcombine.high %v410, 0.0
        %v419 = vcombine.high %v417, 0.0
        %v424 = vlaneseq
        %v425 = vshrl.u32 %v424, 7
        %v426 = vsub.s32 1, %v425
        %v427 = vrot.slane %v308, %v426
        %v428 = vlaneseq
        %v429 = vshrl.u32 %v428, 7
        %v430 = vsub.s32 1, %v429
        %v431 = vrot.slane %v316, %v430
        %v432 = vlaneseq
        %v433 = vshrl.u32 %v432, 7
        %v434 = vsub.s32 1, %v433
        %v435 = vrot.slane %v315, %v434
        %v436 = vlaneseq
        %v437 = vshrl.u32 %v436, 7
        %v438 = vsub.s32 1, %v437
        %v439 = vrot.slane %v317, %v438
        %v456 = vcombine.low %v308, %v342
        %v457 = vcombine.low %v376, %v410
        %v458 = vcombine.low %v316, %v350
        %v459 = vcombine.low %v384, %v418
        %v460 = vcombine.low %v315, %v349
        %v461 = vcombine.low %v383, %v417
        %v462 = vcombine.low %v317, %v351
        %v463 = vcombine.low %v385, %v419
        %vm464 = vcmask 1040384
        %v465 = vrot.slane %v456, 7
        %v466 = vrot.slane %v457, 7
        %v467 = vsel %vm464, %v465, %v466
        %v468 = vrot.slane %v458, 7
        %v469 = vrot.slane %v459, 7
        %v470 = vsel %vm464, %v468, %v469
        %v471 = vrot.slane %v460, 7
        %v472 = vrot.slane %v461, 7
        %v473 = vsel %vm464, %v471, %v472
        %v474 = vrot.slane %v462, 7
        %v475 = vrot.slane %v463, 7
        %v476 = vsel %vm464, %v474, %v475
        %v485 = vlaneseq
        %v486 = vshrl.u32 %v485, 7
        %v487 = vsub.s32 2, %v486
        %v488 = vrot.slane %v410, %v487
        %v489 = vlaneseq
        %v490 = vshrl.u32 %v489, 7
        %v491 = vsub.s32 2, %v490
        %v492 = vrot.slane %v418, %v491
        %v493 = vlaneseq
        %v494 = vshrl.u32 %v493, 7
        %v495 = vsub.s32 2, %v494
        %v496 = vrot.slane %v417, %v495
        %v497 = vlaneseq
        %v498 = vshrl.u32 %v497, 7
        %v499 = vsub.s32 2, %v498
        %v500 = vrot.slane %v419, %v499
        %v505 = vsel %vm464, %v427, %v465
        %v506 = vsel %vm464, %v431, %v468
        %v507 = vsel %vm464, %v435, %v471
        %v508 = vsel %vm464, %v439, %v474
        %v509 = vsel %vm464, %v466, %v488
        %v510 = vsel %vm464, %v469, %v492
        %v511 = vsel %vm464, %v472, %v496
        %v512 = vsel %vm464, %v475, %v500
        %521 = vrot.lane.b32.xlu0 %v505, 127
        %v522 = vpop.permute.xlu0 %521
        %523 = vrot.lane.b32.xlu0 %v467, 127
        %v524 = vpop.permute.xlu0 %523
        %525 = vrot.lane.b32.xlu0 %v509, 127
        %v526 = vpop.permute.xlu0 %525
        %527 = vrot.lane.b32.xlu0 %v506, 127
        %v528 = vpop.permute.xlu0 %527
        %529 = vrot.lane.b32.xlu0 %v470, 127
        %v530 = vpop.permute.xlu0 %529
        %531 = vrot.lane.b32.xlu0 %v510, 127
        %v532 = vpop.permute.xlu0 %531
        %533 = vrot.lane.b32.xlu0 %v507, 127
        %v534 = vpop.permute.xlu0 %533
        %535 = vrot.lane.b32.xlu0 %v473, 127
        %v536 = vpop.permute.xlu0 %535
        %537 = vrot.lane.b32.xlu0 %v511, 127
        %v538 = vpop.permute.xlu0 %537
        %539 = vrot.lane.b32.xlu0 %v508, 127
        %v540 = vpop.permute.xlu0 %539
        %541 = vrot.lane.b32.xlu0 %v476, 127
        %v542 = vpop.permute.xlu0 %541
        %543 = vrot.lane.b32.xlu0 %v512, 127
        %v544 = vpop.permute.xlu0 %543
        %557 = vrot.lane.b32.xlu0 %v505, 1
        %v558 = vpop.permute.xlu0 %557
        %559 = vrot.lane.b32.xlu0 %v467, 1
        %v560 = vpop.permute.xlu0 %559
        %561 = vrot.lane.b32.xlu0 %v509, 1
        %v562 = vpop.permute.xlu0 %561
        %563 = vrot.lane.b32.xlu0 %v506, 1
        %v564 = vpop.permute.xlu0 %563
        %565 = vrot.lane.b32.xlu0 %v470, 1
        %v566 = vpop.permute.xlu0 %565
        %567 = vrot.lane.b32.xlu0 %v510, 1
        %v568 = vpop.permute.xlu0 %567
        %569 = vrot.lane.b32.xlu0 %v507, 1
        %v570 = vpop.permute.xlu0 %569
        %571 = vrot.lane.b32.xlu0 %v473, 1
        %v572 = vpop.permute.xlu0 %571
        %573 = vrot.lane.b32.xlu0 %v511, 1
        %v574 = vpop.permute.xlu0 %573
        %575 = vrot.lane.b32.xlu0 %v508, 1
        %v576 = vpop.permute.xlu0 %575
        %577 = vrot.lane.b32.xlu0 %v476, 1
        %v578 = vpop.permute.xlu0 %577
        %579 = vrot.lane.b32.xlu0 %v512, 1
        %v580 = vpop.permute.xlu0 %579
        %593 = vrot.lane.b32.xlu0 %v505, 3
        %v594 = vpop.permute.xlu0 %593
        %595 = vrot.lane.b32.xlu0 %v467, 3
        %v596 = vpop.permute.xlu0 %595
        %597 = vrot.lane.b32.xlu0 %v509, 3
        %v598 = vpop.permute.xlu0 %597
        %599 = vrot.lane.b32.xlu0 %v506, 3
        %v600 = vpop.permute.xlu0 %599
        %601 = vrot.lane.b32.xlu0 %v470, 3
        %v602 = vpop.permute.xlu0 %601
        %603 = vrot.lane.b32.xlu0 %v510, 3
        %v604 = vpop.permute.xlu0 %603
        %605 = vrot.lane.b32.xlu0 %v507, 3
        %v606 = vpop.permute.xlu0 %605
        %607 = vrot.lane.b32.xlu0 %v473, 3
        %v608 = vpop.permute.xlu0 %607
        %609 = vrot.lane.b32.xlu0 %v511, 3
        %v610 = vpop.permute.xlu0 %609
        %611 = vrot.lane.b32.xlu0 %v508, 3
        %v612 = vpop.permute.xlu0 %611
        %613 = vrot.lane.b32.xlu0 %v476, 3
        %v614 = vpop.permute.xlu0 %613
        %615 = vrot.lane.b32.xlu0 %v512, 3
        %v616 = vpop.permute.xlu0 %615
        %vm629 = vcmask 7168
        %v630 = vsel %vm629, %v522, %v558
        %v631 = vsel %vm629, %v524, %v560
        %v632 = vsel %vm629, %v526, %v562
        %v633 = vsel %vm629, %v528, %v564
        %v634 = vsel %vm629, %v530, %v566
        %v635 = vsel %vm629, %v532, %v568
        %v636 = vsel %vm629, %v534, %v570
        %v637 = vsel %vm629, %v536, %v572
        %v638 = vsel %vm629, %v538, %v574
        %v639 = vsel %vm629, %v540, %v576
        %v640 = vsel %vm629, %v542, %v578
        %v641 = vsel %vm629, %v544, %v580
        %vm642 = vcmask 138240
        %v643 = vsel %vm642, %v630, %v594
        %v644 = vsel %vm642, %v631, %v596
        %v645 = vsel %vm642, %v632, %v598
        %v646 = vsel %vm642, %v633, %v600
        %v647 = vsel %vm642, %v634, %v602
        %v648 = vsel %vm642, %v635, %v604
        %v649 = vsel %vm642, %v636, %v606
        %v650 = vsel %vm642, %v637, %v608
        %v651 = vsel %vm642, %v638, %v610
        %v652 = vsel %vm642, %v639, %v612
        %v653 = vsel %vm642, %v640, %v614
        %v654 = vsel %vm642, %v641, %v616
        %v655 = vcombine.low %v643, %v649
        %v656 = vcombine.high %v643, %v649
        %v658 = vunpack.c.l.s4 1983009808
        %v659 = vunpack.c.0.s8 %v658
        %v660 = vlaneseq
        %v661 = vshrl.u32 %v660, 7
        %v662 = vsub.s32 %v659, %v661
        %v663 = vrot.slane %v655, %v662
        %v665 = vunpack.c.l.s4 1983009808
        %v666 = vunpack.c.0.s8 %v665
        %v667 = vlaneseq
        %v668 = vshrl.u32 %v667, 7
        %v669 = vsub.s32 %v666, %v668
        %v670 = vrot.slane %v656, %v669
        %v671 = vcombine.low %v646, %v652
        %v672 = vcombine.high %v646, %v652
        %v674 = vunpack.c.l.s4 1983009808
        %v675 = vunpack.c.0.s8 %v674
        %v676 = vlaneseq
        %v677 = vshrl.u32 %v676, 7
        %v678 = vsub.s32 %v675, %v677
        %v679 = vrot.slane %v671, %v678
        %v681 = vunpack.c.l.s4 1983009808
        %v682 = vunpack.c.0.s8 %v681
        %v683 = vlaneseq
        %v684 = vshrl.u32 %v683, 7
        %v685 = vsub.s32 %v682, %v684
        %v686 = vrot.slane %v672, %v685
        %v687 = vcombine.low %v663, %v679
        %v688 = vcombine.high %v663, %v679
        %v690 = vunpack.c.l.s4 1934713408
        %v691 = vunpack.c.0.s8 %v690
        %v692 = vlaneseq
        %v693 = vshrl.u32 %v692, 7
        %v694 = vsub.s32 %v691, %v693
        %v695 = vrot.slane %v687, %v694
        %v697 = vunpack.c.l.s4 1934713408
        %v698 = vunpack.c.0.s8 %v697
        %v699 = vlaneseq
        %v700 = vshrl.u32 %v699, 7
        %v701 = vsub.s32 %v698, %v700
        %v702 = vrot.slane %v688, %v701
        %v703 = vcombine.low %v670, %v686
        %v704 = vcombine.high %v670, %v686
        %v706 = vunpack.c.l.s4 1934713408
        %v707 = vunpack.c.0.s8 %v706
        %v708 = vlaneseq
        %v709 = vshrl.u32 %v708, 7
        %v710 = vsub.s32 %v707, %v709
        %v711 = vrot.slane %v703, %v710
        %v713 = vunpack.c.l.s4 1934713408
        %v714 = vunpack.c.0.s8 %v713
        %v715 = vlaneseq
        %v716 = vshrl.u32 %v715, 7
        %v717 = vsub.s32 %v714, %v716
        %v718 = vrot.slane %v704, %v717
        %v719 = vcombine.high %v695, 0.0
        %v720 = vcombine.high %v702, 0.0
        %v721 = vcombine.high %v711, 0.0
        %v722 = vcombine.high %v718, 0.0
        %v723 = vcombine.low %v644, %v650
        %v724 = vcombine.high %v644, %v650
        %v726 = vunpack.c.l.s4 1983009808
        %v727 = vunpack.c.0.s8 %v726
        %v728 = vlaneseq
        %v729 = vshrl.u32 %v728, 7
        %v730 = vsub.s32 %v727, %v729
        %v731 = vrot.slane %v723, %v730
        %v733 = vunpack.c.l.s4 1983009808
        %v734 = vunpack.c.0.s8 %v733
        %v735 = vlaneseq
        %v736 = vshrl.u32 %v735, 7
        %v737 = vsub.s32 %v734, %v736
        %v738 = vrot.slane %v724, %v737
        %v739 = vcombine.low %v647, %v653
        %v740 = vcombine.high %v647, %v653
        %v742 = vunpack.c.l.s4 1983009808
        %v743 = vunpack.c.0.s8 %v742
        %v744 = vlaneseq
        %v745 = vshrl.u32 %v744, 7
        %v746 = vsub.s32 %v743, %v745
        %v747 = vrot.slane %v739, %v746
        %v749 = vunpack.c.l.s4 1983009808
        %v750 = vunpack.c.0.s8 %v749
        %v751 = vlaneseq
        %v752 = vshrl.u32 %v751, 7
        %v753 = vsub.s32 %v750, %v752
        %v754 = vrot.slane %v740, %v753
        %v755 = vcombine.low %v731, %v747
        %v756 = vcombine.high %v731, %v747
        %v758 = vunpack.c.l.s4 1934713408
        %v759 = vunpack.c.0.s8 %v758
        %v760 = vlaneseq
        %v761 = vshrl.u32 %v760, 7
        %v762 = vsub.s32 %v759, %v761
        %v763 = vrot.slane %v755, %v762
        %v765 = vunpack.c.l.s4 1934713408
        %v766 = vunpack.c.0.s8 %v765
        %v767 = vlaneseq
        %v768 = vshrl.u32 %v767, 7
        %v769 = vsub.s32 %v766, %v768
        %v770 = vrot.slane %v756, %v769
        %v771 = vcombine.low %v738, %v754
        %v772 = vcombine.high %v738, %v754
        %v774 = vunpack.c.l.s4 1934713408
        %v775 = vunpack.c.0.s8 %v774
        %v776 = vlaneseq
        %v777 = vshrl.u32 %v776, 7
        %v778 = vsub.s32 %v775, %v777
        %v779 = vrot.slane %v771, %v778
        %v781 = vunpack.c.l.s4 1934713408
        %v782 = vunpack.c.0.s8 %v781
        %v783 = vlaneseq
        %v784 = vshrl.u32 %v783, 7
        %v785 = vsub.s32 %v782, %v784
        %v786 = vrot.slane %v772, %v785
        %v787 = vcombine.high %v763, 0.0
        %v788 = vcombine.high %v770, 0.0
        %v789 = vcombine.high %v779, 0.0
        %v790 = vcombine.high %v786, 0.0
        %792 = vrot.lane.b32.xlu0 %v719, 16
        %v793 = vpop.permute.xlu0 %792
        %796 = vrot.lane.b32.xlu0 %v702, 32
        %v797 = vpop.permute.xlu0 %796
        %800 = vrot.lane.b32.xlu0 %v720, 48
        %v801 = vpop.permute.xlu0 %800
        %804 = vrot.lane.b32.xlu0 %v711, 64
        %v805 = vpop.permute.xlu0 %804
        %808 = vrot.lane.b32.xlu0 %v721, 80
        %v809 = vpop.permute.xlu0 %808
        %812 = vrot.lane.b32.xlu0 %v718, 96
        %v813 = vpop.permute.xlu0 %812
        %816 = vrot.lane.b32.xlu0 %v722, 112
        %v817 = vpop.permute.xlu0 %816
        %820 = vrot.lane.b32.xlu0 %v787, 16
        %v821 = vpop.permute.xlu0 %820
        %824 = vrot.lane.b32.xlu0 %v770, 32
        %v825 = vpop.permute.xlu0 %824
        %828 = vrot.lane.b32.xlu0 %v788, 48
        %v829 = vpop.permute.xlu0 %828
        %832 = vrot.lane.b32.xlu0 %v779, 64
        %v833 = vpop.permute.xlu0 %832
        %836 = vrot.lane.b32.xlu0 %v789, 80
        %v837 = vpop.permute.xlu0 %836
        %840 = vrot.lane.b32.xlu0 %v786, 96
        %v841 = vpop.permute.xlu0 %840
        %844 = vrot.lane.b32.xlu0 %v790, 112
        %v845 = vpop.permute.xlu0 %844
        %vm847 = vcmask 130048
        %v848 = vsel %vm847, %v695, %v793
        %vm849 = vcmask 261120
        %v850 = vsel %vm849, %v848, %v797
        %vm851 = vcmask 392192
        %v852 = vsel %vm851, %v850, %v801
        %vm853 = vcmask 523264
        %v854 = vsel %vm853, %v852, %v805
        %vm855 = vcmask 654336
        %v856 = vsel %vm855, %v854, %v809
        %vm857 = vcmask 785408
        %v858 = vsel %vm857, %v856, %v813
        %vm859 = vcmask 916480
        %v860 = vsel %vm859, %v858, %v817
        %v861 = vsel %vm847, %v763, %v821
        %v862 = vsel %vm849, %v861, %v825
        %v863 = vsel %vm851, %v862, %v829
        %v864 = vsel %vm853, %v863, %v833
        %v865 = vsel %vm855, %v864, %v837
        %v866 = vsel %vm857, %v865, %v841
        %v867 = vsel %vm859, %v866, %v845
        %876 = vrot.lane.b32.xlu0 %v643, 127
        %v877 = vpop.permute.xlu0 %876
        %878 = vrot.lane.b32.xlu0 %v644, 127
        %v879 = vpop.permute.xlu0 %878
        %880 = vrot.lane.b32.xlu0 %v646, 127
        %v881 = vpop.permute.xlu0 %880
        %882 = vrot.lane.b32.xlu0 %v647, 127
        %v883 = vpop.permute.xlu0 %882
        %884 = vrot.lane.b32.xlu0 %v649, 127
        %v885 = vpop.permute.xlu0 %884
        %886 = vrot.lane.b32.xlu0 %v650, 127
        %v887 = vpop.permute.xlu0 %886
        %888 = vrot.lane.b32.xlu0 %v652, 127
        %v889 = vpop.permute.xlu0 %888
        %890 = vrot.lane.b32.xlu0 %v653, 127
        %v891 = vpop.permute.xlu0 %890
        %v900 = vcombine.low %v877, %v885
        %v901 = vcombine.high %v877, %v885
        %v903 = vunpack.c.l.s4 1983009808
        %v904 = vunpack.c.0.s8 %v903
        %v905 = vlaneseq
        %v906 = vshrl.u32 %v905, 7
        %v907 = vsub.s32 %v904, %v906
        %v908 = vrot.slane %v900, %v907
        %v910 = vunpack.c.l.s4 1983009808
        %v911 = vunpack.c.0.s8 %v910
        %v912 = vlaneseq
        %v913 = vshrl.u32 %v912, 7
        %v914 = vsub.s32 %v911, %v913
        %v915 = vrot.slane %v901, %v914
        %v916 = vcombine.low %v881, %v889
        %v917 = vcombine.high %v881, %v889
        %v919 = vunpack.c.l.s4 1983009808
        %v920 = vunpack.c.0.s8 %v919
        %v921 = vlaneseq
        %v922 = vshrl.u32 %v921, 7
        %v923 = vsub.s32 %v920, %v922
        %v924 = vrot.slane %v916, %v923
        %v926 = vunpack.c.l.s4 1983009808
        %v927 = vunpack.c.0.s8 %v926
        %v928 = vlaneseq
        %v929 = vshrl.u32 %v928, 7
        %v930 = vsub.s32 %v927, %v929
        %v931 = vrot.slane %v917, %v930
        %v932 = vcombine.low %v908, %v924
        %v933 = vcombine.high %v908, %v924
        %v935 = vunpack.c.l.s4 1934713408
        %v936 = vunpack.c.0.s8 %v935
        %v937 = vlaneseq
        %v938 = vshrl.u32 %v937, 7
        %v939 = vsub.s32 %v936, %v938
        %v940 = vrot.slane %v932, %v939
        %v942 = vunpack.c.l.s4 1934713408
        %v943 = vunpack.c.0.s8 %v942
        %v944 = vlaneseq
        %v945 = vshrl.u32 %v944, 7
        %v946 = vsub.s32 %v943, %v945
        %v947 = vrot.slane %v933, %v946
        %v948 = vcombine.low %v915, %v931
        %v949 = vcombine.high %v915, %v931
        %v951 = vunpack.c.l.s4 1934713408
        %v952 = vunpack.c.0.s8 %v951
        %v953 = vlaneseq
        %v954 = vshrl.u32 %v953, 7
        %v955 = vsub.s32 %v952, %v954
        %v956 = vrot.slane %v948, %v955
        %v958 = vunpack.c.l.s4 1934713408
        %v959 = vunpack.c.0.s8 %v958
        %v960 = vlaneseq
        %v961 = vshrl.u32 %v960, 7
        %v962 = vsub.s32 %v959, %v961
        %v963 = vrot.slane %v949, %v962
        %v964 = vcombine.high %v940, 0.0
        %v965 = vcombine.high %v947, 0.0
        %v966 = vcombine.high %v956, 0.0
        %v967 = vcombine.high %v963, 0.0
        %v968 = vcombine.low %v879, %v887
        %v969 = vcombine.high %v879, %v887
        %v971 = vunpack.c.l.s4 1983009808
        %v972 = vunpack.c.0.s8 %v971
        %v973 = vlaneseq
        %v974 = vshrl.u32 %v973, 7
        %v975 = vsub.s32 %v972, %v974
        %v976 = vrot.slane %v968, %v975
        %v978 = vunpack.c.l.s4 1983009808
        %v979 = vunpack.c.0.s8 %v978
        %v980 = vlaneseq
        %v981 = vshrl.u32 %v980, 7
        %v982 = vsub.s32 %v979, %v981
        %v983 = vrot.slane %v969, %v982
        %v984 = vcombine.low %v883, %v891
        %v985 = vcombine.high %v883, %v891
        %v987 = vunpack.c.l.s4 1983009808
        %v988 = vunpack.c.0.s8 %v987
        %v989 = vlaneseq
        %v990 = vshrl.u32 %v989, 7
        %v991 = vsub.s32 %v988, %v990
        %v992 = vrot.slane %v984, %v991
        %v994 = vunpack.c.l.s4 1983009808
        %v995 = vunpack.c.0.s8 %v994
        %v996 = vlaneseq
        %v997 = vshrl.u32 %v996, 7
        %v998 = vsub.s32 %v995, %v997
        %v999 = vrot.slane %v985, %v998
        %v1000 = vcombine.low %v976, %v992
        %v1001 = vcombine.high %v976, %v992
        %v1003 = vunpack.c.l.s4 1934713408
        %v1004 = vunpack.c.0.s8 %v1003
        %v1005 = vlaneseq
        %v1006 = vshrl.u32 %v1005, 7
        %v1007 = vsub.s32 %v1004, %v1006
        %v1008 = vrot.slane %v1000, %v1007
        %v1010 = vunpack.c.l.s4 1934713408
        %v1011 = vunpack.c.0.s8 %v1010
        %v1012 = vlaneseq
        %v1013 = vshrl.u32 %v1012, 7
        %v1014 = vsub.s32 %v1011, %v1013
        %v1015 = vrot.slane %v1001, %v1014
        %v1016 = vcombine.low %v983, %v999
        %v1017 = vcombine.high %v983, %v999
        %v1019 = vunpack.c.l.s4 1934713408
        %v1020 = vunpack.c.0.s8 %v1019
        %v1021 = vlaneseq
        %v1022 = vshrl.u32 %v1021, 7
        %v1023 = vsub.s32 %v1020, %v1022
        %v1024 = vrot.slane %v1016, %v1023
        %v1026 = vunpack.c.l.s4 1934713408
        %v1027 = vunpack.c.0.s8 %v1026
        %v1028 = vlaneseq
        %v1029 = vshrl.u32 %v1028, 7
        %v1030 = vsub.s32 %v1027, %v1029
        %v1031 = vrot.slane %v1017, %v1030
        %v1032 = vcombine.high %v1008, 0.0
        %v1033 = vcombine.high %v1015, 0.0
        %v1034 = vcombine.high %v1024, 0.0
        %v1035 = vcombine.high %v1031, 0.0
        %1037 = vrot.lane.b32.xlu0 %v964, 16
        %v1038 = vpop.permute.xlu0 %1037
        %1041 = vrot.lane.b32.xlu0 %v947, 32
        %v1042 = vpop.permute.xlu0 %1041
        %1045 = vrot.lane.b32.xlu0 %v965, 48
        %v1046 = vpop.permute.xlu0 %1045
        %1049 = vrot.lane.b32.xlu0 %v956, 64
        %v1050 = vpop.permute.xlu0 %1049
        %1053 = vrot.lane.b32.xlu0 %v966, 80
        %v1054 = vpop.permute.xlu0 %1053
        %1057 = vrot.lane.b32.xlu0 %v963, 96
        %v1058 = vpop.permute.xlu0 %1057
        %1061 = vrot.lane.b32.xlu0 %v967, 112
        %v1062 = vpop.permute.xlu0 %1061
        %1065 = vrot.lane.b32.xlu0 %v1032, 16
        %v1066 = vpop.permute.xlu0 %1065
        %1069 = vrot.lane.b32.xlu0 %v1015, 32
        %v1070 = vpop.permute.xlu0 %1069
        %1073 = vrot.lane.b32.xlu0 %v1033, 48
        %v1074 = vpop.permute.xlu0 %1073
        %1077 = vrot.lane.b32.xlu0 %v1024, 64
        %v1078 = vpop.permute.xlu0 %1077
        %1081 = vrot.lane.b32.xlu0 %v1034, 80
        %v1082 = vpop.permute.xlu0 %1081
        %1085 = vrot.lane.b32.xlu0 %v1031, 96
        %v1086 = vpop.permute.xlu0 %1085
        %1089 = vrot.lane.b32.xlu0 %v1035, 112
        %v1090 = vpop.permute.xlu0 %1089
        %v1092 = vsel %vm847, %v940, %v1038
        %v1093 = vsel %vm849, %v1092, %v1042
        %v1094 = vsel %vm851, %v1093, %v1046
        %v1095 = vsel %vm853, %v1094, %v1050
        %v1096 = vsel %vm855, %v1095, %v1054
        %v1097 = vsel %vm857, %v1096, %v1058
        %v1098 = vsel %vm859, %v1097, %v1062
        %v1099 = vsel %vm847, %v1008, %v1066
        %v1100 = vsel %vm849, %v1099, %v1070
        %v1101 = vsel %vm851, %v1100, %v1074
        %v1102 = vsel %vm853, %v1101, %v1078
        %v1103 = vsel %vm855, %v1102, %v1082
        %v1104 = vsel %vm857, %v1103, %v1086
        %v1105 = vsel %vm859, %v1104, %v1090
        %1106 = vrot.lane.b32.xlu0 %v643, 126
        %v1107 = vpop.permute.xlu0 %1106
        %1108 = vrot.lane.b32.xlu0 %v644, 126
        %v1109 = vpop.permute.xlu0 %1108
        %1110 = vrot.lane.b32.xlu0 %v646, 126
        %v1111 = vpop.permute.xlu0 %1110
        %1112 = vrot.lane.b32.xlu0 %v647, 126
        %v1113 = vpop.permute.xlu0 %1112
        %1114 = vrot.lane.b32.xlu0 %v649, 126
        %v1115 = vpop.permute.xlu0 %1114
        %1116 = vrot.lane.b32.xlu0 %v650, 126
        %v1117 = vpop.permute.xlu0 %1116
        %1118 = vrot.lane.b32.xlu0 %v652, 126
        %v1119 = vpop.permute.xlu0 %1118
        %1120 = vrot.lane.b32.xlu0 %v653, 126
        %v1121 = vpop.permute.xlu0 %1120
        %v1130 = vcombine.low %v1107, %v1115
        %v1131 = vcombine.high %v1107, %v1115
        %v1133 = vunpack.c.l.s4 1983009808
        %v1134 = vunpack.c.0.s8 %v1133
        %v1135 = vlaneseq
        %v1136 = vshrl.u32 %v1135, 7
        %v1137 = vsub.s32 %v1134, %v1136
        %v1138 = vrot.slane %v1130, %v1137
        %v1140 = vunpack.c.l.s4 1983009808
        %v1141 = vunpack.c.0.s8 %v1140
        %v1142 = vlaneseq
        %v1143 = vshrl.u32 %v1142, 7
        %v1144 = vsub.s32 %v1141, %v1143
        %v1145 = vrot.slane %v1131, %v1144
        %v1146 = vcombine.low %v1111, %v1119
        %v1147 = vcombine.high %v1111, %v1119
        %v1149 = vunpack.c.l.s4 1983009808
        %v1150 = vunpack.c.0.s8 %v1149
        %v1151 = vlaneseq
        %v1152 = vshrl.u32 %v1151, 7
        %v1153 = vsub.s32 %v1150, %v1152
        %v1154 = vrot.slane %v1146, %v1153
        %v1156 = vunpack.c.l.s4 1983009808
        %v1157 = vunpack.c.0.s8 %v1156
        %v1158 = vlaneseq
        %v1159 = vshrl.u32 %v1158, 7
        %v1160 = vsub.s32 %v1157, %v1159
        %v1161 = vrot.slane %v1147, %v1160
        %v1162 = vcombine.low %v1138, %v1154
        %v1163 = vcombine.high %v1138, %v1154
        %v1165 = vunpack.c.l.s4 1934713408
        %v1166 = vunpack.c.0.s8 %v1165
        %v1167 = vlaneseq
        %v1168 = vshrl.u32 %v1167, 7
        %v1169 = vsub.s32 %v1166, %v1168
        %v1170 = vrot.slane %v1162, %v1169
        %v1172 = vunpack.c.l.s4 1934713408
        %v1173 = vunpack.c.0.s8 %v1172
        %v1174 = vlaneseq
        %v1175 = vshrl.u32 %v1174, 7
        %v1176 = vsub.s32 %v1173, %v1175
        %v1177 = vrot.slane %v1163, %v1176
        %v1178 = vcombine.low %v1145, %v1161
        %v1179 = vcombine.high %v1145, %v1161
        %v1181 = vunpack.c.l.s4 1934713408
        %v1182 = vunpack.c.0.s8 %v1181
        %v1183 = vlaneseq
        %v1184 = vshrl.u32 %v1183, 7
        %v1185 = vsub.s32 %v1182, %v1184
        %v1186 = vrot.slane %v1178, %v1185
        %v1188 = vunpack.c.l.s4 1934713408
        %v1189 = vunpack.c.0.s8 %v1188
        %v1190 = vlaneseq
        %v1191 = vshrl.u32 %v1190, 7
        %v1192 = vsub.s32 %v1189, %v1191
        %v1193 = vrot.slane %v1179, %v1192
        %v1194 = vcombine.high %v1170, 0.0
        %v1195 = vcombine.high %v1177, 0.0
        %v1196 = vcombine.high %v1186, 0.0
        %v1197 = vcombine.high %v1193, 0.0
        %v1198 = vcombine.low %v1109, %v1117
        %v1199 = vcombine.high %v1109, %v1117
        %v1201 = vunpack.c.l.s4 1983009808
        %v1202 = vunpack.c.0.s8 %v1201
        %v1203 = vlaneseq
        %v1204 = vshrl.u32 %v1203, 7
        %v1205 = vsub.s32 %v1202, %v1204
        %v1206 = vrot.slane %v1198, %v1205
        %v1208 = vunpack.c.l.s4 1983009808
        %v1209 = vunpack.c.0.s8 %v1208
        %v1210 = vlaneseq
        %v1211 = vshrl.u32 %v1210, 7
        %v1212 = vsub.s32 %v1209, %v1211
        %v1213 = vrot.slane %v1199, %v1212
        %v1214 = vcombine.low %v1113, %v1121
        %v1215 = vcombine.high %v1113, %v1121
        %v1217 = vunpack.c.l.s4 1983009808
        %v1218 = vunpack.c.0.s8 %v1217
        %v1219 = vlaneseq
        %v1220 = vshrl.u32 %v1219, 7
        %v1221 = vsub.s32 %v1218, %v1220
        %v1222 = vrot.slane %v1214, %v1221
        %v1224 = vunpack.c.l.s4 1983009808
        %v1225 = vunpack.c.0.s8 %v1224
        %v1226 = vlaneseq
        %v1227 = vshrl.u32 %v1226, 7
        %v1228 = vsub.s32 %v1225, %v1227
        %v1229 = vrot.slane %v1215, %v1228
        %v1230 = vcombine.low %v1206, %v1222
        %v1231 = vcombine.high %v1206, %v1222
        %v1233 = vunpack.c.l.s4 1934713408
        %v1234 = vunpack.c.0.s8 %v1233
        %v1235 = vlaneseq
        %v1236 = vshrl.u32 %v1235, 7
        %v1237 = vsub.s32 %v1234, %v1236
        %v1238 = vrot.slane %v1230, %v1237
        %v1240 = vunpack.c.l.s4 1934713408
        %v1241 = vunpack.c.0.s8 %v1240
        %v1242 = vlaneseq
        %v1243 = vshrl.u32 %v1242, 7
        %v1244 = vsub.s32 %v1241, %v1243
        %v1245 = vrot.slane %v1231, %v1244
        %v1246 = vcombine.low %v1213, %v1229
        %v1247 = vcombine.high %v1213, %v1229
        %v1249 = vunpack.c.l.s4 1934713408
        %v1250 = vunpack.c.0.s8 %v1249
        %v1251 = vlaneseq
        %v1252 = vshrl.u32 %v1251, 7
        %v1253 = vsub.s32 %v1250, %v1252
        %v1254 = vrot.slane %v1246, %v1253
        %v1256 = vunpack.c.l.s4 1934713408
        %v1257 = vunpack.c.0.s8 %v1256
        %v1258 = vlaneseq
        %v1259 = vshrl.u32 %v1258, 7
        %v1260 = vsub.s32 %v1257, %v1259
        %v1261 = vrot.slane %v1247, %v1260
        %v1262 = vcombine.high %v1238, 0.0
        %v1263 = vcombine.high %v1245, 0.0
        %v1264 = vcombine.high %v1254, 0.0
        %v1265 = vcombine.high %v1261, 0.0
        %1267 = vrot.lane.b32.xlu0 %v1194, 16
        %v1268 = vpop.permute.xlu0 %1267
        %1271 = vrot.lane.b32.xlu0 %v1177, 32
        %v1272 = vpop.permute.xlu0 %1271
        %1275 = vrot.lane.b32.xlu0 %v1195, 48
        %v1276 = vpop.permute.xlu0 %1275
        %1279 = vrot.lane.b32.xlu0 %v1186, 64
        %v1280 = vpop.permute.xlu0 %1279
        %1283 = vrot.lane.b32.xlu0 %v1196, 80
        %v1284 = vpop.permute.xlu0 %1283
        %1287 = vrot.lane.b32.xlu0 %v1193, 96
        %v1288 = vpop.permute.xlu0 %1287
        %1291 = vrot.lane.b32.xlu0 %v1197, 112
        %v1292 = vpop.permute.xlu0 %1291
        %1295 = vrot.lane.b32.xlu0 %v1262, 16
        %v1296 = vpop.permute.xlu0 %1295
        %1299 = vrot.lane.b32.xlu0 %v1245, 32
        %v1300 = vpop.permute.xlu0 %1299
        %1303 = vrot.lane.b32.xlu0 %v1263, 48
        %v1304 = vpop.permute.xlu0 %1303
        %1307 = vrot.lane.b32.xlu0 %v1254, 64
        %v1308 = vpop.permute.xlu0 %1307
        %1311 = vrot.lane.b32.xlu0 %v1264, 80
        %v1312 = vpop.permute.xlu0 %1311
        %1315 = vrot.lane.b32.xlu0 %v1261, 96
        %v1316 = vpop.permute.xlu0 %1315
        %1319 = vrot.lane.b32.xlu0 %v1265, 112
        %v1320 = vpop.permute.xlu0 %1319
        %v1322 = vsel %vm847, %v1170, %v1268
        %v1323 = vsel %vm849, %v1322, %v1272
        %v1324 = vsel %vm851, %v1323, %v1276
        %v1325 = vsel %vm853, %v1324, %v1280
        %v1326 = vsel %vm855, %v1325, %v1284
        %v1327 = vsel %vm857, %v1326, %v1288
        %v1328 = vsel %vm859, %v1327, %v1292
        %v1329 = vsel %vm847, %v1238, %v1296
        %v1330 = vsel %vm849, %v1329, %v1300
        %v1331 = vsel %vm851, %v1330, %v1304
        %v1332 = vsel %vm853, %v1331, %v1308
        %v1333 = vsel %vm855, %v1332, %v1312
        %v1334 = vsel %vm857, %v1333, %v1316
        %v1335 = vsel %vm859, %v1334, %v1320
        %vm1340 = vcmask 1046528
        %v1341 = vrot.slane %v643, 1
        %v1342 = vrot.slane %v644, 1
        %v1343 = vsel %vm1340, %v1341, %v1342
        %v1344 = vrot.slane %v645, 1
        %v1345 = vsel %vm1340, %v1342, %v1344
        %v1346 = vrot.slane %v646, 1
        %v1347 = vrot.slane %v647, 1
        %v1348 = vsel %vm1340, %v1346, %v1347
        %v1349 = vrot.slane %v648, 1
        %v1350 = vsel %vm1340, %v1347, %v1349
        %v1351 = vrot.slane %v649, 1
        %v1352 = vrot.slane %v650, 1
        %v1353 = vsel %vm1340, %v1351, %v1352
        %v1354 = vrot.slane %v651, 1
        %v1355 = vsel %vm1340, %v1352, %v1354
        %v1356 = vrot.slane %v652, 1
        %v1357 = vrot.slane %v653, 1
        %v1358 = vsel %vm1340, %v1356, %v1357
        %v1359 = vrot.slane %v654, 1
        %v1360 = vsel %vm1340, %v1357, %v1359
        %v1369 = vcombine.low %v1343, %v1353
        %v1370 = vcombine.high %v1343, %v1353
        %v1372 = vunpack.c.l.s4 1983009808
        %v1373 = vunpack.c.0.s8 %v1372
        %v1374 = vlaneseq
        %v1375 = vshrl.u32 %v1374, 7
        %v1376 = vsub.s32 %v1373, %v1375
        %v1377 = vrot.slane %v1369, %v1376
        %v1379 = vunpack.c.l.s4 1983009808
        %v1380 = vunpack.c.0.s8 %v1379
        %v1381 = vlaneseq
        %v1382 = vshrl.u32 %v1381, 7
        %v1383 = vsub.s32 %v1380, %v1382
        %v1384 = vrot.slane %v1370, %v1383
        %v1385 = vcombine.low %v1348, %v1358
        %v1386 = vcombine.high %v1348, %v1358
        %v1388 = vunpack.c.l.s4 1983009808
        %v1389 = vunpack.c.0.s8 %v1388
        %v1390 = vlaneseq
        %v1391 = vshrl.u32 %v1390, 7
        %v1392 = vsub.s32 %v1389, %v1391
        %v1393 = vrot.slane %v1385, %v1392
        %v1395 = vunpack.c.l.s4 1983009808
        %v1396 = vunpack.c.0.s8 %v1395
        %v1397 = vlaneseq
        %v1398 = vshrl.u32 %v1397, 7
        %v1399 = vsub.s32 %v1396, %v1398
        %v1400 = vrot.slane %v1386, %v1399
        %v1401 = vcombine.low %v1377, %v1393
        %v1402 = vcombine.high %v1377, %v1393
        %v1404 = vunpack.c.l.s4 1934713408
        %v1405 = vunpack.c.0.s8 %v1404
        %v1406 = vlaneseq
        %v1407 = vshrl.u32 %v1406, 7
        %v1408 = vsub.s32 %v1405, %v1407
        %v1409 = vrot.slane %v1401, %v1408
        %v1411 = vunpack.c.l.s4 1934713408
        %v1412 = vunpack.c.0.s8 %v1411
        %v1413 = vlaneseq
        %v1414 = vshrl.u32 %v1413, 7
        %v1415 = vsub.s32 %v1412, %v1414
        %v1416 = vrot.slane %v1402, %v1415
        %v1417 = vcombine.low %v1384, %v1400
        %v1418 = vcombine.high %v1384, %v1400
        %v1420 = vunpack.c.l.s4 1934713408
        %v1421 = vunpack.c.0.s8 %v1420
        %v1422 = vlaneseq
        %v1423 = vshrl.u32 %v1422, 7
        %v1424 = vsub.s32 %v1421, %v1423
        %v1425 = vrot.slane %v1417, %v1424
        %v1427 = vunpack.c.l.s4 1934713408
        %v1428 = vunpack.c.0.s8 %v1427
        %v1429 = vlaneseq
        %v1430 = vshrl.u32 %v1429, 7
        %v1431 = vsub.s32 %v1428, %v1430
        %v1432 = vrot.slane %v1418, %v1431
        %v1433 = vcombine.high %v1409, 0.0
        %v1434 = vcombine.high %v1416, 0.0
        %v1435 = vcombine.high %v1425, 0.0
        %v1436 = vcombine.high %v1432, 0.0
        %v1437 = vcombine.low %v1345, %v1355
        %v1438 = vcombine.high %v1345, %v1355
        %v1440 = vunpack.c.l.s4 1983009808
        %v1441 = vunpack.c.0.s8 %v1440
        %v1442 = vlaneseq
        %v1443 = vshrl.u32 %v1442, 7
        %v1444 = vsub.s32 %v1441, %v1443
        %v1445 = vrot.slane %v1437, %v1444
        %v1447 = vunpack.c.l.s4 1983009808
        %v1448 = vunpack.c.0.s8 %v1447
        %v1449 = vlaneseq
        %v1450 = vshrl.u32 %v1449, 7
        %v1451 = vsub.s32 %v1448, %v1450
        %v1452 = vrot.slane %v1438, %v1451
        %v1453 = vcombine.low %v1350, %v1360
        %v1454 = vcombine.high %v1350, %v1360
        %v1456 = vunpack.c.l.s4 1983009808
        %v1457 = vunpack.c.0.s8 %v1456
        %v1458 = vlaneseq
        %v1459 = vshrl.u32 %v1458, 7
        %v1460 = vsub.s32 %v1457, %v1459
        %v1461 = vrot.slane %v1453, %v1460
        %v1463 = vunpack.c.l.s4 1983009808
        %v1464 = vunpack.c.0.s8 %v1463
        %v1465 = vlaneseq
        %v1466 = vshrl.u32 %v1465, 7
        %v1467 = vsub.s32 %v1464, %v1466
        %v1468 = vrot.slane %v1454, %v1467
        %v1469 = vcombine.low %v1445, %v1461
        %v1470 = vcombine.high %v1445, %v1461
        %v1472 = vunpack.c.l.s4 1934713408
        %v1473 = vunpack.c.0.s8 %v1472
        %v1474 = vlaneseq
        %v1475 = vshrl.u32 %v1474, 7
        %v1476 = vsub.s32 %v1473, %v1475
        %v1477 = vrot.slane %v1469, %v1476
        %v1479 = vunpack.c.l.s4 1934713408
        %v1480 = vunpack.c.0.s8 %v1479
        %v1481 = vlaneseq
        %v1482 = vshrl.u32 %v1481, 7
        %v1483 = vsub.s32 %v1480, %v1482
        %v1484 = vrot.slane %v1470, %v1483
        %v1485 = vcombine.low %v1452, %v1468
        %v1486 = vcombine.high %v1452, %v1468
        %v1488 = vunpack.c.l.s4 1934713408
        %v1489 = vunpack.c.0.s8 %v1488
        %v1490 = vlaneseq
        %v1491 = vshrl.u32 %v1490, 7
        %v1492 = vsub.s32 %v1489, %v1491
        %v1493 = vrot.slane %v1485, %v1492
        %v1495 = vunpack.c.l.s4 1934713408
        %v1496 = vunpack.c.0.s8 %v1495
        %v1497 = vlaneseq
        %v1498 = vshrl.u32 %v1497, 7
        %v1499 = vsub.s32 %v1496, %v1498
        %v1500 = vrot.slane %v1486, %v1499
        %v1501 = vcombine.high %v1477, 0.0
        %v1502 = vcombine.high %v1484, 0.0
        %v1503 = vcombine.high %v1493, 0.0
        %v1504 = vcombine.high %v1500, 0.0
        %1506 = vrot.lane.b32.xlu0 %v1433, 16
        %v1507 = vpop.permute.xlu0 %1506
        %1510 = vrot.lane.b32.xlu0 %v1416, 32
        %v1511 = vpop.permute.xlu0 %1510
        %1514 = vrot.lane.b32.xlu0 %v1434, 48
        %v1515 = vpop.permute.xlu0 %1514
        %1518 = vrot.lane.b32.xlu0 %v1425, 64
        %v1519 = vpop.permute.xlu0 %1518
        %1522 = vrot.lane.b32.xlu0 %v1435, 80
        %v1523 = vpop.permute.xlu0 %1522
        %1526 = vrot.lane.b32.xlu0 %v1432, 96
        %v1527 = vpop.permute.xlu0 %1526
        %1530 = vrot.lane.b32.xlu0 %v1436, 112
        %v1531 = vpop.permute.xlu0 %1530
        %1534 = vrot.lane.b32.xlu0 %v1501, 16
        %v1535 = vpop.permute.xlu0 %1534
        %1538 = vrot.lane.b32.xlu0 %v1484, 32
        %v1539 = vpop.permute.xlu0 %1538
        %1542 = vrot.lane.b32.xlu0 %v1502, 48
        %v1543 = vpop.permute.xlu0 %1542
        %1546 = vrot.lane.b32.xlu0 %v1493, 64
        %v1547 = vpop.permute.xlu0 %1546
        %1550 = vrot.lane.b32.xlu0 %v1503, 80
        %v1551 = vpop.permute.xlu0 %1550
        %1554 = vrot.lane.b32.xlu0 %v1500, 96
        %v1555 = vpop.permute.xlu0 %1554
        %1558 = vrot.lane.b32.xlu0 %v1504, 112
        %v1559 = vpop.permute.xlu0 %1558
        %v1561 = vsel %vm847, %v1409, %v1507
        %v1562 = vsel %vm849, %v1561, %v1511
        %v1563 = vsel %vm851, %v1562, %v1515
        %v1564 = vsel %vm853, %v1563, %v1519
        %v1565 = vsel %vm855, %v1564, %v1523
        %v1566 = vsel %vm857, %v1565, %v1527
        %v1567 = vsel %vm859, %v1566, %v1531
        %v1568 = vsel %vm847, %v1477, %v1535
        %v1569 = vsel %vm849, %v1568, %v1539
        %v1570 = vsel %vm851, %v1569, %v1543
        %v1571 = vsel %vm853, %v1570, %v1547
        %v1572 = vsel %vm855, %v1571, %v1551
        %v1573 = vsel %vm857, %v1572, %v1555
        %v1574 = vsel %vm859, %v1573, %v1559
        %1575 = vrot.lane.b32.xlu0 %v1343, 127
        %v1576 = vpop.permute.xlu0 %1575
        %1577 = vrot.lane.b32.xlu0 %v1345, 127
        %v1578 = vpop.permute.xlu0 %1577
        %1579 = vrot.lane.b32.xlu0 %v1348, 127
        %v1580 = vpop.permute.xlu0 %1579
        %1581 = vrot.lane.b32.xlu0 %v1350, 127
        %v1582 = vpop.permute.xlu0 %1581
        %1583 = vrot.lane.b32.xlu0 %v1353, 127
        %v1584 = vpop.permute.xlu0 %1583
        %1585 = vrot.lane.b32.xlu0 %v1355, 127
        %v1586 = vpop.permute.xlu0 %1585
        %1587 = vrot.lane.b32.xlu0 %v1358, 127
        %v1588 = vpop.permute.xlu0 %1587
        %1589 = vrot.lane.b32.xlu0 %v1360, 127
        %v1590 = vpop.permute.xlu0 %1589
        %v1599 = vcombine.low %v1576, %v1584
        %v1600 = vcombine.high %v1576, %v1584
        %v1602 = vunpack.c.l.s4 1983009808
        %v1603 = vunpack.c.0.s8 %v1602
        %v1604 = vlaneseq
        %v1605 = vshrl.u32 %v1604, 7
        %v1606 = vsub.s32 %v1603, %v1605
        %v1607 = vrot.slane %v1599, %v1606
        %v1609 = vunpack.c.l.s4 1983009808
        %v1610 = vunpack.c.0.s8 %v1609
        %v1611 = vlaneseq
        %v1612 = vshrl.u32 %v1611, 7
        %v1613 = vsub.s32 %v1610, %v1612
        %v1614 = vrot.slane %v1600, %v1613
        %v1615 = vcombine.low %v1580, %v1588
        %v1616 = vcombine.high %v1580, %v1588
        %v1618 = vunpack.c.l.s4 1983009808
        %v1619 = vunpack.c.0.s8 %v1618
        %v1620 = vlaneseq
        %v1621 = vshrl.u32 %v1620, 7
        %v1622 = vsub.s32 %v1619, %v1621
        %v1623 = vrot.slane %v1615, %v1622
        %v1625 = vunpack.c.l.s4 1983009808
        %v1626 = vunpack.c.0.s8 %v1625
        %v1627 = vlaneseq
        %v1628 = vshrl.u32 %v1627, 7
        %v1629 = vsub.s32 %v1626, %v1628
        %v1630 = vrot.slane %v1616, %v1629
        %v1631 = vcombine.low %v1607, %v1623
        %v1632 = vcombine.high %v1607, %v1623
        %v1634 = vunpack.c.l.s4 1934713408
        %v1635 = vunpack.c.0.s8 %v1634
        %v1636 = vlaneseq
        %v1637 = vshrl.u32 %v1636, 7
        %v1638 = vsub.s32 %v1635, %v1637
        %v1639 = vrot.slane %v1631, %v1638
        %v1641 = vunpack.c.l.s4 1934713408
        %v1642 = vunpack.c.0.s8 %v1641
        %v1643 = vlaneseq
        %v1644 = vshrl.u32 %v1643, 7
        %v1645 = vsub.s32 %v1642, %v1644
        %v1646 = vrot.slane %v1632, %v1645
        %v1647 = vcombine.low %v1614, %v1630
        %v1648 = vcombine.high %v1614, %v1630
        %v1650 = vunpack.c.l.s4 1934713408
        %v1651 = vunpack.c.0.s8 %v1650
        %v1652 = vlaneseq
        %v1653 = vshrl.u32 %v1652, 7
        %v1654 = vsub.s32 %v1651, %v1653
        %v1655 = vrot.slane %v1647, %v1654
        %v1657 = vunpack.c.l.s4 1934713408
        %v1658 = vunpack.c.0.s8 %v1657
        %v1659 = vlaneseq
        %v1660 = vshrl.u32 %v1659, 7
        %v1661 = vsub.s32 %v1658, %v1660
        %v1662 = vrot.slane %v1648, %v1661
        %v1663 = vcombine.high %v1639, 0.0
        %v1664 = vcombine.high %v1646, 0.0
        %v1665 = vcombine.high %v1655, 0.0
        %v1666 = vcombine.high %v1662, 0.0
        %v1667 = vcombine.low %v1578, %v1586
        %v1668 = vcombine.high %v1578, %v1586
        %v1670 = vunpack.c.l.s4 1983009808
        %v1671 = vunpack.c.0.s8 %v1670
        %v1672 = vlaneseq
        %v1673 = vshrl.u32 %v1672, 7
        %v1674 = vsub.s32 %v1671, %v1673
        %v1675 = vrot.slane %v1667, %v1674
        %v1677 = vunpack.c.l.s4 1983009808
        %v1678 = vunpack.c.0.s8 %v1677
        %v1679 = vlaneseq
        %v1680 = vshrl.u32 %v1679, 7
        %v1681 = vsub.s32 %v1678, %v1680
        %v1682 = vrot.slane %v1668, %v1681
        %v1683 = vcombine.low %v1582, %v1590
        %v1684 = vcombine.high %v1582, %v1590
        %v1686 = vunpack.c.l.s4 1983009808
        %v1687 = vunpack.c.0.s8 %v1686
        %v1688 = vlaneseq
        %v1689 = vshrl.u32 %v1688, 7
        %v1690 = vsub.s32 %v1687, %v1689
        %v1691 = vrot.slane %v1683, %v1690
        %v1693 = vunpack.c.l.s4 1983009808
        %v1694 = vunpack.c.0.s8 %v1693
        %v1695 = vlaneseq
        %v1696 = vshrl.u32 %v1695, 7
        %v1697 = vsub.s32 %v1694, %v1696
        %v1698 = vrot.slane %v1684, %v1697
        %v1699 = vcombine.low %v1675, %v1691
        %v1700 = vcombine.high %v1675, %v1691
        %v1702 = vunpack.c.l.s4 1934713408
        %v1703 = vunpack.c.0.s8 %v1702
        %v1704 = vlaneseq
        %v1705 = vshrl.u32 %v1704, 7
        %v1706 = vsub.s32 %v1703, %v1705
        %v1707 = vrot.slane %v1699, %v1706
        %v1709 = vunpack.c.l.s4 1934713408
        %v1710 = vunpack.c.0.s8 %v1709
        %v1711 = vlaneseq
        %v1712 = vshrl.u32 %v1711, 7
        %v1713 = vsub.s32 %v1710, %v1712
        %v1714 = vrot.slane %v1700, %v1713
        %v1715 = vcombine.low %v1682, %v1698
        %v1716 = vcombine.high %v1682, %v1698
        %v1718 = vunpack.c.l.s4 1934713408
        %v1719 = vunpack.c.0.s8 %v1718
        %v1720 = vlaneseq
        %v1721 = vshrl.u32 %v1720, 7
        %v1722 = vsub.s32 %v1719, %v1721
        %v1723 = vrot.slane %v1715, %v1722
        %v1725 = vunpack.c.l.s4 1934713408
        %v1726 = vunpack.c.0.s8 %v1725
        %v1727 = vlaneseq
        %v1728 = vshrl.u32 %v1727, 7
        %v1729 = vsub.s32 %v1726, %v1728
        %v1730 = vrot.slane %v1716, %v1729
        %v1731 = vcombine.high %v1707, 0.0
        %v1732 = vcombine.high %v1714, 0.0
        %v1733 = vcombine.high %v1723, 0.0
        %v1734 = vcombine.high %v1730, 0.0
        %1736 = vrot.lane.b32.xlu0 %v1663, 16
        %v1737 = vpop.permute.xlu0 %1736
        %1740 = vrot.lane.b32.xlu0 %v1646, 32
        %v1741 = vpop.permute.xlu0 %1740
        %1744 = vrot.lane.b32.xlu0 %v1664, 48
        %v1745 = vpop.permute.xlu0 %1744
        %1748 = vrot.lane.b32.xlu0 %v1655, 64
        %v1749 = vpop.permute.xlu0 %1748
        %1752 = vrot.lane.b32.xlu0 %v1665, 80
        %v1753 = vpop.permute.xlu0 %1752
        %1756 = vrot.lane.b32.xlu0 %v1662, 96
        %v1757 = vpop.permute.xlu0 %1756
        %1760 = vrot.lane.b32.xlu0 %v1666, 112
        %v1761 = vpop.permute.xlu0 %1760
        %1764 = vrot.lane.b32.xlu0 %v1731, 16
        %v1765 = vpop.permute.xlu0 %1764
        %1768 = vrot.lane.b32.xlu0 %v1714, 32
        %v1769 = vpop.permute.xlu0 %1768
        %1772 = vrot.lane.b32.xlu0 %v1732, 48
        %v1773 = vpop.permute.xlu0 %1772
        %1776 = vrot.lane.b32.xlu0 %v1723, 64
        %v1777 = vpop.permute.xlu0 %1776
        %1780 = vrot.lane.b32.xlu0 %v1733, 80
        %v1781 = vpop.permute.xlu0 %1780
        %1784 = vrot.lane.b32.xlu0 %v1730, 96
        %v1785 = vpop.permute.xlu0 %1784
        %1788 = vrot.lane.b32.xlu0 %v1734, 112
        %v1789 = vpop.permute.xlu0 %1788
        %v1791 = vsel %vm847, %v1639, %v1737
        %v1792 = vsel %vm849, %v1791, %v1741
        %v1793 = vsel %vm851, %v1792, %v1745
        %v1794 = vsel %vm853, %v1793, %v1749
        %v1795 = vsel %vm855, %v1794, %v1753
        %v1796 = vsel %vm857, %v1795, %v1757
        %v1797 = vsel %vm859, %v1796, %v1761
        %v1798 = vsel %vm847, %v1707, %v1765
        %v1799 = vsel %vm849, %v1798, %v1769
        %v1800 = vsel %vm851, %v1799, %v1773
        %v1801 = vsel %vm853, %v1800, %v1777
        %v1802 = vsel %vm855, %v1801, %v1781
        %v1803 = vsel %vm857, %v1802, %v1785
        %v1804 = vsel %vm859, %v1803, %v1789
        %1805 = vrot.lane.b32.xlu0 %v1343, 126
        %v1806 = vpop.permute.xlu0 %1805
        %1807 = vrot.lane.b32.xlu0 %v1345, 126
        %v1808 = vpop.permute.xlu0 %1807
        %1809 = vrot.lane.b32.xlu0 %v1348, 126
        %v1810 = vpop.permute.xlu0 %1809
        %1811 = vrot.lane.b32.xlu0 %v1350, 126
        %v1812 = vpop.permute.xlu0 %1811
        %1813 = vrot.lane.b32.xlu0 %v1353, 126
        %v1814 = vpop.permute.xlu0 %1813
        %1815 = vrot.lane.b32.xlu0 %v1355, 126
        %v1816 = vpop.permute.xlu0 %1815
        %1817 = vrot.lane.b32.xlu0 %v1358, 126
        %v1818 = vpop.permute.xlu0 %1817
        %1819 = vrot.lane.b32.xlu0 %v1360, 126
        %v1820 = vpop.permute.xlu0 %1819
        %v1829 = vcombine.low %v1806, %v1814
        %v1830 = vcombine.high %v1806, %v1814
        %v1832 = vunpack.c.l.s4 1983009808
        %v1833 = vunpack.c.0.s8 %v1832
        %v1834 = vlaneseq
        %v1835 = vshrl.u32 %v1834, 7
        %v1836 = vsub.s32 %v1833, %v1835
        %v1837 = vrot.slane %v1829, %v1836
        %v1839 = vunpack.c.l.s4 1983009808
        %v1840 = vunpack.c.0.s8 %v1839
        %v1841 = vlaneseq
        %v1842 = vshrl.u32 %v1841, 7
        %v1843 = vsub.s32 %v1840, %v1842
        %v1844 = vrot.slane %v1830, %v1843
        %v1845 = vcombine.low %v1810, %v1818
        %v1846 = vcombine.high %v1810, %v1818
        %v1848 = vunpack.c.l.s4 1983009808
        %v1849 = vunpack.c.0.s8 %v1848
        %v1850 = vlaneseq
        %v1851 = vshrl.u32 %v1850, 7
        %v1852 = vsub.s32 %v1849, %v1851
        %v1853 = vrot.slane %v1845, %v1852
        %v1855 = vunpack.c.l.s4 1983009808
        %v1856 = vunpack.c.0.s8 %v1855
        %v1857 = vlaneseq
        %v1858 = vshrl.u32 %v1857, 7
        %v1859 = vsub.s32 %v1856, %v1858
        %v1860 = vrot.slane %v1846, %v1859
        %v1861 = vcombine.low %v1837, %v1853
        %v1862 = vcombine.high %v1837, %v1853
        %v1864 = vunpack.c.l.s4 1934713408
        %v1865 = vunpack.c.0.s8 %v1864
        %v1866 = vlaneseq
        %v1867 = vshrl.u32 %v1866, 7
        %v1868 = vsub.s32 %v1865, %v1867
        %v1869 = vrot.slane %v1861, %v1868
        %v1871 = vunpack.c.l.s4 1934713408
        %v1872 = vunpack.c.0.s8 %v1871
        %v1873 = vlaneseq
        %v1874 = vshrl.u32 %v1873, 7
        %v1875 = vsub.s32 %v1872, %v1874
        %v1876 = vrot.slane %v1862, %v1875
        %v1877 = vcombine.low %v1844, %v1860
        %v1878 = vcombine.high %v1844, %v1860
        %v1880 = vunpack.c.l.s4 1934713408
        %v1881 = vunpack.c.0.s8 %v1880
        %v1882 = vlaneseq
        %v1883 = vshrl.u32 %v1882, 7
        %v1884 = vsub.s32 %v1881, %v1883
        %v1885 = vrot.slane %v1877, %v1884
        %v1887 = vunpack.c.l.s4 1934713408
        %v1888 = vunpack.c.0.s8 %v1887
        %v1889 = vlaneseq
        %v1890 = vshrl.u32 %v1889, 7
        %v1891 = vsub.s32 %v1888, %v1890
        %v1892 = vrot.slane %v1878, %v1891
        %v1893 = vcombine.high %v1869, 0.0
        %v1894 = vcombine.high %v1876, 0.0
        %v1895 = vcombine.high %v1885, 0.0
        %v1896 = vcombine.high %v1892, 0.0
        %v1897 = vcombine.low %v1808, %v1816
        %v1898 = vcombine.high %v1808, %v1816
        %v1900 = vunpack.c.l.s4 1983009808
        %v1901 = vunpack.c.0.s8 %v1900
        %v1902 = vlaneseq
        %v1903 = vshrl.u32 %v1902, 7
        %v1904 = vsub.s32 %v1901, %v1903
        %v1905 = vrot.slane %v1897, %v1904
        %v1907 = vunpack.c.l.s4 1983009808
        %v1908 = vunpack.c.0.s8 %v1907
        %v1909 = vlaneseq
        %v1910 = vshrl.u32 %v1909, 7
        %v1911 = vsub.s32 %v1908, %v1910
        %v1912 = vrot.slane %v1898, %v1911
        %v1913 = vcombine.low %v1812, %v1820
        %v1914 = vcombine.high %v1812, %v1820
        %v1916 = vunpack.c.l.s4 1983009808
        %v1917 = vunpack.c.0.s8 %v1916
        %v1918 = vlaneseq
        %v1919 = vshrl.u32 %v1918, 7
        %v1920 = vsub.s32 %v1917, %v1919
        %v1921 = vrot.slane %v1913, %v1920
        %v1923 = vunpack.c.l.s4 1983009808
        %v1924 = vunpack.c.0.s8 %v1923
        %v1925 = vlaneseq
        %v1926 = vshrl.u32 %v1925, 7
        %v1927 = vsub.s32 %v1924, %v1926
        %v1928 = vrot.slane %v1914, %v1927
        %v1929 = vcombine.low %v1905, %v1921
        %v1930 = vcombine.high %v1905, %v1921
        %v1932 = vunpack.c.l.s4 1934713408
        %v1933 = vunpack.c.0.s8 %v1932
        %v1934 = vlaneseq
        %v1935 = vshrl.u32 %v1934, 7
        %v1936 = vsub.s32 %v1933, %v1935
        %v1937 = vrot.slane %v1929, %v1936
        %v1939 = vunpack.c.l.s4 1934713408
        %v1940 = vunpack.c.0.s8 %v1939
        %v1941 = vlaneseq
        %v1942 = vshrl.u32 %v1941, 7
        %v1943 = vsub.s32 %v1940, %v1942
        %v1944 = vrot.slane %v1930, %v1943
        %v1945 = vcombine.low %v1912, %v1928
        %v1946 = vcombine.high %v1912, %v1928
        %v1948 = vunpack.c.l.s4 1934713408
        %v1949 = vunpack.c.0.s8 %v1948
        %v1950 = vlaneseq
        %v1951 = vshrl.u32 %v1950, 7
        %v1952 = vsub.s32 %v1949, %v1951
        %v1953 = vrot.slane %v1945, %v1952
        %v1955 = vunpack.c.l.s4 1934713408
        %v1956 = vunpack.c.0.s8 %v1955
        %v1957 = vlaneseq
        %v1958 = vshrl.u32 %v1957, 7
        %v1959 = vsub.s32 %v1956, %v1958
        %v1960 = vrot.slane %v1946, %v1959
        %v1961 = vcombine.high %v1937, 0.0
        %v1962 = vcombine.high %v1944, 0.0
        %v1963 = vcombine.high %v1953, 0.0
        %v1964 = vcombine.high %v1960, 0.0
        %1966 = vrot.lane.b32.xlu0 %v1893, 16
        %v1967 = vpop.permute.xlu0 %1966
        %1970 = vrot.lane.b32.xlu0 %v1876, 32
        %v1971 = vpop.permute.xlu0 %1970
        %1974 = vrot.lane.b32.xlu0 %v1894, 48
        %v1975 = vpop.permute.xlu0 %1974
        %1978 = vrot.lane.b32.xlu0 %v1885, 64
        %v1979 = vpop.permute.xlu0 %1978
        %1982 = vrot.lane.b32.xlu0 %v1895, 80
        %v1983 = vpop.permute.xlu0 %1982
        %1986 = vrot.lane.b32.xlu0 %v1892, 96
        %v1987 = vpop.permute.xlu0 %1986
        %1990 = vrot.lane.b32.xlu0 %v1896, 112
        %v1991 = vpop.permute.xlu0 %1990
        %1994 = vrot.lane.b32.xlu0 %v1961, 16
        %v1995 = vpop.permute.xlu0 %1994
        %1998 = vrot.lane.b32.xlu0 %v1944, 32
        %v1999 = vpop.permute.xlu0 %1998
        %2002 = vrot.lane.b32.xlu0 %v1962, 48
        %v2003 = vpop.permute.xlu0 %2002
        %2006 = vrot.lane.b32.xlu0 %v1953, 64
        %v2007 = vpop.permute.xlu0 %2006
        %2010 = vrot.lane.b32.xlu0 %v1963, 80
        %v2011 = vpop.permute.xlu0 %2010
        %2014 = vrot.lane.b32.xlu0 %v1960, 96
        %v2015 = vpop.permute.xlu0 %2014
        %2018 = vrot.lane.b32.xlu0 %v1964, 112
        %v2019 = vpop.permute.xlu0 %2018
        %v2021 = vsel %vm847, %v1869, %v1967
        %v2022 = vsel %vm849, %v2021, %v1971
        %v2023 = vsel %vm851, %v2022, %v1975
        %v2024 = vsel %vm853, %v2023, %v1979
        %v2025 = vsel %vm855, %v2024, %v1983
        %v2026 = vsel %vm857, %v2025, %v1987
        %v2027 = vsel %vm859, %v2026, %v1991
        %v2028 = vsel %vm847, %v1937, %v1995
        %v2029 = vsel %vm849, %v2028, %v1999
        %v2030 = vsel %vm851, %v2029, %v2003
        %v2031 = vsel %vm853, %v2030, %v2007
        %v2032 = vsel %vm855, %v2031, %v2011
        %v2033 = vsel %vm857, %v2032, %v2015
        %v2034 = vsel %vm859, %v2033, %v2019
        %vm2035 = vcmask 1045504
        %v2036 = vrot.slane %v643, 2
        %v2037 = vrot.slane %v644, 2
        %v2038 = vsel %vm2035, %v2036, %v2037
        %v2039 = vrot.slane %v645, 2
        %v2040 = vsel %vm2035, %v2037, %v2039
        %v2041 = vrot.slane %v646, 2
        %v2042 = vrot.slane %v647, 2
        %v2043 = vsel %vm2035, %v2041, %v2042
        %v2044 = vrot.slane %v648, 2
        %v2045 = vsel %vm2035, %v2042, %v2044
        %v2046 = vrot.slane %v649, 2
        %v2047 = vrot.slane %v650, 2
        %v2048 = vsel %vm2035, %v2046, %v2047
        %v2049 = vrot.slane %v651, 2
        %v2050 = vsel %vm2035, %v2047, %v2049
        %v2051 = vrot.slane %v652, 2
        %v2052 = vrot.slane %v653, 2
        %v2053 = vsel %vm2035, %v2051, %v2052
        %v2054 = vrot.slane %v654, 2
        %v2055 = vsel %vm2035, %v2052, %v2054
        %v2064 = vcombine.low %v2038, %v2048
        %v2065 = vcombine.high %v2038, %v2048
        %v2067 = vunpack.c.l.s4 1983009808
        %v2068 = vunpack.c.0.s8 %v2067
        %v2069 = vlaneseq
        %v2070 = vshrl.u32 %v2069, 7
        %v2071 = vsub.s32 %v2068, %v2070
        %v2072 = vrot.slane %v2064, %v2071
        %v2074 = vunpack.c.l.s4 1983009808
        %v2075 = vunpack.c.0.s8 %v2074
        %v2076 = vlaneseq
        %v2077 = vshrl.u32 %v2076, 7
        %v2078 = vsub.s32 %v2075, %v2077
        %v2079 = vrot.slane %v2065, %v2078
        %v2080 = vcombine.low %v2043, %v2053
        %v2081 = vcombine.high %v2043, %v2053
        %v2083 = vunpack.c.l.s4 1983009808
        %v2084 = vunpack.c.0.s8 %v2083
        %v2085 = vlaneseq
        %v2086 = vshrl.u32 %v2085, 7
        %v2087 = vsub.s32 %v2084, %v2086
        %v2088 = vrot.slane %v2080, %v2087
        %v2090 = vunpack.c.l.s4 1983009808
        %v2091 = vunpack.c.0.s8 %v2090
        %v2092 = vlaneseq
        %v2093 = vshrl.u32 %v2092, 7
        %v2094 = vsub.s32 %v2091, %v2093
        %v2095 = vrot.slane %v2081, %v2094
        %v2096 = vcombine.low %v2072, %v2088
        %v2097 = vcombine.high %v2072, %v2088
        %v2099 = vunpack.c.l.s4 1934713408
        %v2100 = vunpack.c.0.s8 %v2099
        %v2101 = vlaneseq
        %v2102 = vshrl.u32 %v2101, 7
        %v2103 = vsub.s32 %v2100, %v2102
        %v2104 = vrot.slane %v2096, %v2103
        %v2106 = vunpack.c.l.s4 1934713408
        %v2107 = vunpack.c.0.s8 %v2106
        %v2108 = vlaneseq
        %v2109 = vshrl.u32 %v2108, 7
        %v2110 = vsub.s32 %v2107, %v2109
        %v2111 = vrot.slane %v2097, %v2110
        %v2112 = vcombine.low %v2079, %v2095
        %v2113 = vcombine.high %v2079, %v2095
        %v2115 = vunpack.c.l.s4 1934713408
        %v2116 = vunpack.c.0.s8 %v2115
        %v2117 = vlaneseq
        %v2118 = vshrl.u32 %v2117, 7
        %v2119 = vsub.s32 %v2116, %v2118
        %v2120 = vrot.slane %v2112, %v2119
        %v2122 = vunpack.c.l.s4 1934713408
        %v2123 = vunpack.c.0.s8 %v2122
        %v2124 = vlaneseq
        %v2125 = vshrl.u32 %v2124, 7
        %v2126 = vsub.s32 %v2123, %v2125
        %v2127 = vrot.slane %v2113, %v2126
        %v2128 = vcombine.high %v2104, 0.0
        %v2129 = vcombine.high %v2111, 0.0
        %v2130 = vcombine.high %v2120, 0.0
        %v2131 = vcombine.high %v2127, 0.0
        %v2132 = vcombine.low %v2040, %v2050
        %v2133 = vcombine.high %v2040, %v2050
        %v2135 = vunpack.c.l.s4 1983009808
        %v2136 = vunpack.c.0.s8 %v2135
        %v2137 = vlaneseq
        %v2138 = vshrl.u32 %v2137, 7
        %v2139 = vsub.s32 %v2136, %v2138
        %v2140 = vrot.slane %v2132, %v2139
        %v2142 = vunpack.c.l.s4 1983009808
        %v2143 = vunpack.c.0.s8 %v2142
        %v2144 = vlaneseq
        %v2145 = vshrl.u32 %v2144, 7
        %v2146 = vsub.s32 %v2143, %v2145
        %v2147 = vrot.slane %v2133, %v2146
        %v2148 = vcombine.low %v2045, %v2055
        %v2149 = vcombine.high %v2045, %v2055
        %v2151 = vunpack.c.l.s4 1983009808
        %v2152 = vunpack.c.0.s8 %v2151
        %v2153 = vlaneseq
        %v2154 = vshrl.u32 %v2153, 7
        %v2155 = vsub.s32 %v2152, %v2154
        %v2156 = vrot.slane %v2148, %v2155
        %v2158 = vunpack.c.l.s4 1983009808
        %v2159 = vunpack.c.0.s8 %v2158
        %v2160 = vlaneseq
        %v2161 = vshrl.u32 %v2160, 7
        %v2162 = vsub.s32 %v2159, %v2161
        %v2163 = vrot.slane %v2149, %v2162
        %v2164 = vcombine.low %v2140, %v2156
        %v2165 = vcombine.high %v2140, %v2156
        %v2167 = vunpack.c.l.s4 1934713408
        %v2168 = vunpack.c.0.s8 %v2167
        %v2169 = vlaneseq
        %v2170 = vshrl.u32 %v2169, 7
        %v2171 = vsub.s32 %v2168, %v2170
        %v2172 = vrot.slane %v2164, %v2171
        %v2174 = vunpack.c.l.s4 1934713408
        %v2175 = vunpack.c.0.s8 %v2174
        %v2176 = vlaneseq
        %v2177 = vshrl.u32 %v2176, 7
        %v2178 = vsub.s32 %v2175, %v2177
        %v2179 = vrot.slane %v2165, %v2178
        %v2180 = vcombine.low %v2147, %v2163
        %v2181 = vcombine.high %v2147, %v2163
        %v2183 = vunpack.c.l.s4 1934713408
        %v2184 = vunpack.c.0.s8 %v2183
        %v2185 = vlaneseq
        %v2186 = vshrl.u32 %v2185, 7
        %v2187 = vsub.s32 %v2184, %v2186
        %v2188 = vrot.slane %v2180, %v2187
        %v2190 = vunpack.c.l.s4 1934713408
        %v2191 = vunpack.c.0.s8 %v2190
        %v2192 = vlaneseq
        %v2193 = vshrl.u32 %v2192, 7
        %v2194 = vsub.s32 %v2191, %v2193
        %v2195 = vrot.slane %v2181, %v2194
        %v2196 = vcombine.high %v2172, 0.0
        %v2197 = vcombine.high %v2179, 0.0
        %v2198 = vcombine.high %v2188, 0.0
        %v2199 = vcombine.high %v2195, 0.0
        %2201 = vrot.lane.b32.xlu0 %v2128, 16
        %v2202 = vpop.permute.xlu0 %2201
        %2205 = vrot.lane.b32.xlu0 %v2111, 32
        %v2206 = vpop.permute.xlu0 %2205
        %2209 = vrot.lane.b32.xlu0 %v2129, 48
        %v2210 = vpop.permute.xlu0 %2209
        %2213 = vrot.lane.b32.xlu0 %v2120, 64
        %v2214 = vpop.permute.xlu0 %2213
        %2217 = vrot.lane.b32.xlu0 %v2130, 80
        %v2218 = vpop.permute.xlu0 %2217
        %2221 = vrot.lane.b32.xlu0 %v2127, 96
        %v2222 = vpop.permute.xlu0 %2221
        %2225 = vrot.lane.b32.xlu0 %v2131, 112
        %v2226 = vpop.permute.xlu0 %2225
        %2229 = vrot.lane.b32.xlu0 %v2196, 16
        %v2230 = vpop.permute.xlu0 %2229
        %2233 = vrot.lane.b32.xlu0 %v2179, 32
        %v2234 = vpop.permute.xlu0 %2233
        %2237 = vrot.lane.b32.xlu0 %v2197, 48
        %v2238 = vpop.permute.xlu0 %2237
        %2241 = vrot.lane.b32.xlu0 %v2188, 64
        %v2242 = vpop.permute.xlu0 %2241
        %2245 = vrot.lane.b32.xlu0 %v2198, 80
        %v2246 = vpop.permute.xlu0 %2245
        %2249 = vrot.lane.b32.xlu0 %v2195, 96
        %v2250 = vpop.permute.xlu0 %2249
        %2253 = vrot.lane.b32.xlu0 %v2199, 112
        %v2254 = vpop.permute.xlu0 %2253
        %v2256 = vsel %vm847, %v2104, %v2202
        %v2257 = vsel %vm849, %v2256, %v2206
        %v2258 = vsel %vm851, %v2257, %v2210
        %v2259 = vsel %vm853, %v2258, %v2214
        %v2260 = vsel %vm855, %v2259, %v2218
        %v2261 = vsel %vm857, %v2260, %v2222
        %v2262 = vsel %vm859, %v2261, %v2226
        %v2263 = vsel %vm847, %v2172, %v2230
        %v2264 = vsel %vm849, %v2263, %v2234
        %v2265 = vsel %vm851, %v2264, %v2238
        %v2266 = vsel %vm853, %v2265, %v2242
        %v2267 = vsel %vm855, %v2266, %v2246
        %v2268 = vsel %vm857, %v2267, %v2250
        %v2269 = vsel %vm859, %v2268, %v2254
        %2270 = vrot.lane.b32.xlu0 %v2038, 127
        %v2271 = vpop.permute.xlu0 %2270
        %2272 = vrot.lane.b32.xlu0 %v2040, 127
        %v2273 = vpop.permute.xlu0 %2272
        %2274 = vrot.lane.b32.xlu0 %v2043, 127
        %v2275 = vpop.permute.xlu0 %2274
        %2276 = vrot.lane.b32.xlu0 %v2045, 127
        %v2277 = vpop.permute.xlu0 %2276
        %2278 = vrot.lane.b32.xlu0 %v2048, 127
        %v2279 = vpop.permute.xlu0 %2278
        %2280 = vrot.lane.b32.xlu0 %v2050, 127
        %v2281 = vpop.permute.xlu0 %2280
        %2282 = vrot.lane.b32.xlu0 %v2053, 127
        %v2283 = vpop.permute.xlu0 %2282
        %2284 = vrot.lane.b32.xlu0 %v2055, 127
        %v2285 = vpop.permute.xlu0 %2284
        %v2294 = vcombine.low %v2271, %v2279
        %v2295 = vcombine.high %v2271, %v2279
        %v2297 = vunpack.c.l.s4 1983009808
        %v2298 = vunpack.c.0.s8 %v2297
        %v2299 = vlaneseq
        %v2300 = vshrl.u32 %v2299, 7
        %v2301 = vsub.s32 %v2298, %v2300
        %v2302 = vrot.slane %v2294, %v2301
        %v2304 = vunpack.c.l.s4 1983009808
        %v2305 = vunpack.c.0.s8 %v2304
        %v2306 = vlaneseq
        %v2307 = vshrl.u32 %v2306, 7
        %v2308 = vsub.s32 %v2305, %v2307
        %v2309 = vrot.slane %v2295, %v2308
        %v2310 = vcombine.low %v2275, %v2283
        %v2311 = vcombine.high %v2275, %v2283
        %v2313 = vunpack.c.l.s4 1983009808
        %v2314 = vunpack.c.0.s8 %v2313
        %v2315 = vlaneseq
        %v2316 = vshrl.u32 %v2315, 7
        %v2317 = vsub.s32 %v2314, %v2316
        %v2318 = vrot.slane %v2310, %v2317
        %v2320 = vunpack.c.l.s4 1983009808
        %v2321 = vunpack.c.0.s8 %v2320
        %v2322 = vlaneseq
        %v2323 = vshrl.u32 %v2322, 7
        %v2324 = vsub.s32 %v2321, %v2323
        %v2325 = vrot.slane %v2311, %v2324
        %v2326 = vcombine.low %v2302, %v2318
        %v2327 = vcombine.high %v2302, %v2318
        %v2329 = vunpack.c.l.s4 1934713408
        %v2330 = vunpack.c.0.s8 %v2329
        %v2331 = vlaneseq
        %v2332 = vshrl.u32 %v2331, 7
        %v2333 = vsub.s32 %v2330, %v2332
        %v2334 = vrot.slane %v2326, %v2333
        %v2336 = vunpack.c.l.s4 1934713408
        %v2337 = vunpack.c.0.s8 %v2336
        %v2338 = vlaneseq
        %v2339 = vshrl.u32 %v2338, 7
        %v2340 = vsub.s32 %v2337, %v2339
        %v2341 = vrot.slane %v2327, %v2340
        %v2342 = vcombine.low %v2309, %v2325
        %v2343 = vcombine.high %v2309, %v2325
        %v2345 = vunpack.c.l.s4 1934713408
        %v2346 = vunpack.c.0.s8 %v2345
        %v2347 = vlaneseq
        %v2348 = vshrl.u32 %v2347, 7
        %v2349 = vsub.s32 %v2346, %v2348
        %v2350 = vrot.slane %v2342, %v2349
        %v2352 = vunpack.c.l.s4 1934713408
        %v2353 = vunpack.c.0.s8 %v2352
        %v2354 = vlaneseq
        %v2355 = vshrl.u32 %v2354, 7
        %v2356 = vsub.s32 %v2353, %v2355
        %v2357 = vrot.slane %v2343, %v2356
        %v2358 = vcombine.high %v2334, 0.0
        %v2359 = vcombine.high %v2341, 0.0
        %v2360 = vcombine.high %v2350, 0.0
        %v2361 = vcombine.high %v2357, 0.0
        %v2362 = vcombine.low %v2273, %v2281
        %v2363 = vcombine.high %v2273, %v2281
        %v2365 = vunpack.c.l.s4 1983009808
        %v2366 = vunpack.c.0.s8 %v2365
        %v2367 = vlaneseq
        %v2368 = vshrl.u32 %v2367, 7
        %v2369 = vsub.s32 %v2366, %v2368
        %v2370 = vrot.slane %v2362, %v2369
        %v2372 = vunpack.c.l.s4 1983009808
        %v2373 = vunpack.c.0.s8 %v2372
        %v2374 = vlaneseq
        %v2375 = vshrl.u32 %v2374, 7
        %v2376 = vsub.s32 %v2373, %v2375
        %v2377 = vrot.slane %v2363, %v2376
        %v2378 = vcombine.low %v2277, %v2285
        %v2379 = vcombine.high %v2277, %v2285
        %v2381 = vunpack.c.l.s4 1983009808
        %v2382 = vunpack.c.0.s8 %v2381
        %v2383 = vlaneseq
        %v2384 = vshrl.u32 %v2383, 7
        %v2385 = vsub.s32 %v2382, %v2384
        %v2386 = vrot.slane %v2378, %v2385
        %v2388 = vunpack.c.l.s4 1983009808
        %v2389 = vunpack.c.0.s8 %v2388
        %v2390 = vlaneseq
        %v2391 = vshrl.u32 %v2390, 7
        %v2392 = vsub.s32 %v2389, %v2391
        %v2393 = vrot.slane %v2379, %v2392
        %v2394 = vcombine.low %v2370, %v2386
        %v2395 = vcombine.high %v2370, %v2386
        %v2397 = vunpack.c.l.s4 1934713408
        %v2398 = vunpack.c.0.s8 %v2397
        %v2399 = vlaneseq
        %v2400 = vshrl.u32 %v2399, 7
        %v2401 = vsub.s32 %v2398, %v2400
        %v2402 = vrot.slane %v2394, %v2401
        %v2404 = vunpack.c.l.s4 1934713408
        %v2405 = vunpack.c.0.s8 %v2404
        %v2406 = vlaneseq
        %v2407 = vshrl.u32 %v2406, 7
        %v2408 = vsub.s32 %v2405, %v2407
        %v2409 = vrot.slane %v2395, %v2408
        %v2410 = vcombine.low %v2377, %v2393
        %v2411 = vcombine.high %v2377, %v2393
        %v2413 = vunpack.c.l.s4 1934713408
        %v2414 = vunpack.c.0.s8 %v2413
        %v2415 = vlaneseq
        %v2416 = vshrl.u32 %v2415, 7
        %v2417 = vsub.s32 %v2414, %v2416
        %v2418 = vrot.slane %v2410, %v2417
        %v2420 = vunpack.c.l.s4 1934713408
        %v2421 = vunpack.c.0.s8 %v2420
        %v2422 = vlaneseq
        %v2423 = vshrl.u32 %v2422, 7
        %v2424 = vsub.s32 %v2421, %v2423
        %v2425 = vrot.slane %v2411, %v2424
        %v2426 = vcombine.high %v2402, 0.0
        %v2427 = vcombine.high %v2409, 0.0
        %v2428 = vcombine.high %v2418, 0.0
        %v2429 = vcombine.high %v2425, 0.0
        %2431 = vrot.lane.b32.xlu0 %v2358, 16
        %v2432 = vpop.permute.xlu0 %2431
        %2435 = vrot.lane.b32.xlu0 %v2341, 32
        %v2436 = vpop.permute.xlu0 %2435
        %2439 = vrot.lane.b32.xlu0 %v2359, 48
        %v2440 = vpop.permute.xlu0 %2439
        %2443 = vrot.lane.b32.xlu0 %v2350, 64
        %v2444 = vpop.permute.xlu0 %2443
        %2447 = vrot.lane.b32.xlu0 %v2360, 80
        %v2448 = vpop.permute.xlu0 %2447
        %2451 = vrot.lane.b32.xlu0 %v2357, 96
        %v2452 = vpop.permute.xlu0 %2451
        %2455 = vrot.lane.b32.xlu0 %v2361, 112
        %v2456 = vpop.permute.xlu0 %2455
        %2459 = vrot.lane.b32.xlu0 %v2426, 16
        %v2460 = vpop.permute.xlu0 %2459
        %2463 = vrot.lane.b32.xlu0 %v2409, 32
        %v2464 = vpop.permute.xlu0 %2463
        %2467 = vrot.lane.b32.xlu0 %v2427, 48
        %v2468 = vpop.permute.xlu0 %2467
        %2471 = vrot.lane.b32.xlu0 %v2418, 64
        %v2472 = vpop.permute.xlu0 %2471
        %2475 = vrot.lane.b32.xlu0 %v2428, 80
        %v2476 = vpop.permute.xlu0 %2475
        %2479 = vrot.lane.b32.xlu0 %v2425, 96
        %v2480 = vpop.permute.xlu0 %2479
        %2483 = vrot.lane.b32.xlu0 %v2429, 112
        %v2484 = vpop.permute.xlu0 %2483
        %v2486 = vsel %vm847, %v2334, %v2432
        %v2487 = vsel %vm849, %v2486, %v2436
        %v2488 = vsel %vm851, %v2487, %v2440
        %v2489 = vsel %vm853, %v2488, %v2444
        %v2490 = vsel %vm855, %v2489, %v2448
        %v2491 = vsel %vm857, %v2490, %v2452
        %v2492 = vsel %vm859, %v2491, %v2456
        %v2493 = vsel %vm847, %v2402, %v2460
        %v2494 = vsel %vm849, %v2493, %v2464
        %v2495 = vsel %vm851, %v2494, %v2468
        %v2496 = vsel %vm853, %v2495, %v2472
        %v2497 = vsel %vm855, %v2496, %v2476
        %v2498 = vsel %vm857, %v2497, %v2480
        %v2499 = vsel %vm859, %v2498, %v2484
        %2500 = vrot.lane.b32.xlu0 %v2038, 126
        %v2501 = vpop.permute.xlu0 %2500
        %2502 = vrot.lane.b32.xlu0 %v2040, 126
        %v2503 = vpop.permute.xlu0 %2502
        %2504 = vrot.lane.b32.xlu0 %v2043, 126
        %v2505 = vpop.permute.xlu0 %2504
        %2506 = vrot.lane.b32.xlu0 %v2045, 126
        %v2507 = vpop.permute.xlu0 %2506
        %2508 = vrot.lane.b32.xlu0 %v2048, 126
        %v2509 = vpop.permute.xlu0 %2508
        %2510 = vrot.lane.b32.xlu0 %v2050, 126
        %v2511 = vpop.permute.xlu0 %2510
        %2512 = vrot.lane.b32.xlu0 %v2053, 126
        %v2513 = vpop.permute.xlu0 %2512
        %2514 = vrot.lane.b32.xlu0 %v2055, 126
        %v2515 = vpop.permute.xlu0 %2514
        %v2524 = vcombine.low %v2501, %v2509
        %v2525 = vcombine.high %v2501, %v2509
        %v2527 = vunpack.c.l.s4 1983009808
        %v2528 = vunpack.c.0.s8 %v2527
        %v2529 = vlaneseq
        %v2530 = vshrl.u32 %v2529, 7
        %v2531 = vsub.s32 %v2528, %v2530
        %v2532 = vrot.slane %v2524, %v2531
        %v2534 = vunpack.c.l.s4 1983009808
        %v2535 = vunpack.c.0.s8 %v2534
        %v2536 = vlaneseq
        %v2537 = vshrl.u32 %v2536, 7
        %v2538 = vsub.s32 %v2535, %v2537
        %v2539 = vrot.slane %v2525, %v2538
        %v2540 = vcombine.low %v2505, %v2513
        %v2541 = vcombine.high %v2505, %v2513
        %v2543 = vunpack.c.l.s4 1983009808
        %v2544 = vunpack.c.0.s8 %v2543
        %v2545 = vlaneseq
        %v2546 = vshrl.u32 %v2545, 7
        %v2547 = vsub.s32 %v2544, %v2546
        %v2548 = vrot.slane %v2540, %v2547
        %v2550 = vunpack.c.l.s4 1983009808
        %v2551 = vunpack.c.0.s8 %v2550
        %v2552 = vlaneseq
        %v2553 = vshrl.u32 %v2552, 7
        %v2554 = vsub.s32 %v2551, %v2553
        %v2555 = vrot.slane %v2541, %v2554
        %v2556 = vcombine.low %v2532, %v2548
        %v2557 = vcombine.high %v2532, %v2548
        %v2559 = vunpack.c.l.s4 1934713408
        %v2560 = vunpack.c.0.s8 %v2559
        %v2561 = vlaneseq
        %v2562 = vshrl.u32 %v2561, 7
        %v2563 = vsub.s32 %v2560, %v2562
        %v2564 = vrot.slane %v2556, %v2563
        %v2566 = vunpack.c.l.s4 1934713408
        %v2567 = vunpack.c.0.s8 %v2566
        %v2568 = vlaneseq
        %v2569 = vshrl.u32 %v2568, 7
        %v2570 = vsub.s32 %v2567, %v2569
        %v2571 = vrot.slane %v2557, %v2570
        %v2572 = vcombine.low %v2539, %v2555
        %v2573 = vcombine.high %v2539, %v2555
        %v2575 = vunpack.c.l.s4 1934713408
        %v2576 = vunpack.c.0.s8 %v2575
        %v2577 = vlaneseq
        %v2578 = vshrl.u32 %v2577, 7
        %v2579 = vsub.s32 %v2576, %v2578
        %v2580 = vrot.slane %v2572, %v2579
        %v2582 = vunpack.c.l.s4 1934713408
        %v2583 = vunpack.c.0.s8 %v2582
        %v2584 = vlaneseq
        %v2585 = vshrl.u32 %v2584, 7
        %v2586 = vsub.s32 %v2583, %v2585
        %v2587 = vrot.slane %v2573, %v2586
        %v2588 = vcombine.high %v2564, 0.0
        %v2589 = vcombine.high %v2571, 0.0
        %v2590 = vcombine.high %v2580, 0.0
        %v2591 = vcombine.high %v2587, 0.0
        %v2592 = vcombine.low %v2503, %v2511
        %v2593 = vcombine.high %v2503, %v2511
        %v2595 = vunpack.c.l.s4 1983009808
        %v2596 = vunpack.c.0.s8 %v2595
        %v2597 = vlaneseq
        %v2598 = vshrl.u32 %v2597, 7
        %v2599 = vsub.s32 %v2596, %v2598
        %v2600 = vrot.slane %v2592, %v2599
        %v2602 = vunpack.c.l.s4 1983009808
        %v2603 = vunpack.c.0.s8 %v2602
        %v2604 = vlaneseq
        %v2605 = vshrl.u32 %v2604, 7
        %v2606 = vsub.s32 %v2603, %v2605
        %v2607 = vrot.slane %v2593, %v2606
        %v2608 = vcombine.low %v2507, %v2515
        %v2609 = vcombine.high %v2507, %v2515
        %v2611 = vunpack.c.l.s4 1983009808
        %v2612 = vunpack.c.0.s8 %v2611
        %v2613 = vlaneseq
        %v2614 = vshrl.u32 %v2613, 7
        %v2615 = vsub.s32 %v2612, %v2614
        %v2616 = vrot.slane %v2608, %v2615
        %v2618 = vunpack.c.l.s4 1983009808
        %v2619 = vunpack.c.0.s8 %v2618
        %v2620 = vlaneseq
        %v2621 = vshrl.u32 %v2620, 7
        %v2622 = vsub.s32 %v2619, %v2621
        %v2623 = vrot.slane %v2609, %v2622
        %v2624 = vcombine.low %v2600, %v2616
        %v2625 = vcombine.high %v2600, %v2616
        %v2627 = vunpack.c.l.s4 1934713408
        %v2628 = vunpack.c.0.s8 %v2627
        %v2629 = vlaneseq
        %v2630 = vshrl.u32 %v2629, 7
        %v2631 = vsub.s32 %v2628, %v2630
        %v2632 = vrot.slane %v2624, %v2631
        %v2634 = vunpack.c.l.s4 1934713408
        %v2635 = vunpack.c.0.s8 %v2634
        %v2636 = vlaneseq
        %v2637 = vshrl.u32 %v2636, 7
        %v2638 = vsub.s32 %v2635, %v2637
        %v2639 = vrot.slane %v2625, %v2638
        %v2640 = vcombine.low %v2607, %v2623
        %v2641 = vcombine.high %v2607, %v2623
        %v2643 = vunpack.c.l.s4 1934713408
        %v2644 = vunpack.c.0.s8 %v2643
        %v2645 = vlaneseq
        %v2646 = vshrl.u32 %v2645, 7
        %v2647 = vsub.s32 %v2644, %v2646
        %v2648 = vrot.slane %v2640, %v2647
        %v2650 = vunpack.c.l.s4 1934713408
        %v2651 = vunpack.c.0.s8 %v2650
        %v2652 = vlaneseq
        %v2653 = vshrl.u32 %v2652, 7
        %v2654 = vsub.s32 %v2651, %v2653
        %v2655 = vrot.slane %v2641, %v2654
        %v2656 = vcombine.high %v2632, 0.0
        %v2657 = vcombine.high %v2639, 0.0
        %v2658 = vcombine.high %v2648, 0.0
        %v2659 = vcombine.high %v2655, 0.0
        %2661 = vrot.lane.b32.xlu0 %v2588, 16
        %v2662 = vpop.permute.xlu0 %2661
        %2665 = vrot.lane.b32.xlu0 %v2571, 32
        %v2666 = vpop.permute.xlu0 %2665
        %2669 = vrot.lane.b32.xlu0 %v2589, 48
        %v2670 = vpop.permute.xlu0 %2669
        %2673 = vrot.lane.b32.xlu0 %v2580, 64
        %v2674 = vpop.permute.xlu0 %2673
        %2677 = vrot.lane.b32.xlu0 %v2590, 80
        %v2678 = vpop.permute.xlu0 %2677
        %2681 = vrot.lane.b32.xlu0 %v2587, 96
        %v2682 = vpop.permute.xlu0 %2681
        %2685 = vrot.lane.b32.xlu0 %v2591, 112
        %v2686 = vpop.permute.xlu0 %2685
        %2689 = vrot.lane.b32.xlu0 %v2656, 16
        %v2690 = vpop.permute.xlu0 %2689
        %2693 = vrot.lane.b32.xlu0 %v2639, 32
        %v2694 = vpop.permute.xlu0 %2693
        %2697 = vrot.lane.b32.xlu0 %v2657, 48
        %v2698 = vpop.permute.xlu0 %2697
        %2701 = vrot.lane.b32.xlu0 %v2648, 64
        %v2702 = vpop.permute.xlu0 %2701
        %2705 = vrot.lane.b32.xlu0 %v2658, 80
        %v2706 = vpop.permute.xlu0 %2705
        %2709 = vrot.lane.b32.xlu0 %v2655, 96
        %v2710 = vpop.permute.xlu0 %2709
        %2713 = vrot.lane.b32.xlu0 %v2659, 112
        %v2714 = vpop.permute.xlu0 %2713
        %v2716 = vsel %vm847, %v2564, %v2662
        %v2717 = vsel %vm849, %v2716, %v2666
        %v2718 = vsel %vm851, %v2717, %v2670
        %v2719 = vsel %vm853, %v2718, %v2674
        %v2720 = vsel %vm855, %v2719, %v2678
        %v2721 = vsel %vm857, %v2720, %v2682
        %v2722 = vsel %vm859, %v2721, %v2686
        %v2723 = vsel %vm847, %v2632, %v2690
        %v2724 = vsel %vm849, %v2723, %v2694
        %v2725 = vsel %vm851, %v2724, %v2698
        %v2726 = vsel %vm853, %v2725, %v2702
        %v2727 = vsel %vm855, %v2726, %v2706
        %v2728 = vsel %vm857, %v2727, %v2710
        %v2729 = vsel %vm859, %v2728, %v2714
        %v2732 = vrot.slane %v1098, 4
        %v2733 = vrot.slane %v1105, 4
        %v2738 = vrot.slane %v1567, 4
        %v2739 = vrot.slane %v1574, 4
        %v2744 = vrot.slane %v2027, 4
        %v2745 = vrot.slane %v2034, 4
        %v2750 = vrot.slane %v2492, 4
        %v2751 = vrot.slane %v2499, 4
        %vm2754 = vcmask 1043456
        %v2755 = vsel %vm2754, %v860, %v2732
        %v2756 = vsel %vm2754, %v867, %v2733
        %v2757 = vsel %vm2754, %v1328, %v2738
        %v2758 = vsel %vm2754, %v1335, %v2739
        %v2759 = vsel %vm2754, %v1797, %v2744
        %v2760 = vsel %vm2754, %v1804, %v2745
        %v2761 = vsel %vm2754, %v2262, %v2750
        %v2762 = vsel %vm2754, %v2269, %v2751
        %2764 = vset.pattern.permute.xlu0 0
        %2765 = vperm.xlu0 %2764, %v243
        %v2766 = vpop.permute.xlu0 %2765
        %vm2768 = vcmask 293888
        %v2770 = vsel %vm2768, %v242, 0
        %v2773 = vsel %vm2754, %v2722, 0
        %v2776 = vsel %vm2754, %v2729, 0
        %2778 = vmatprep.subr.mxu0 %v2756
        %2779 = vmatpush1.msra.mxu0 %v2755
        %2780 = vmatprep.subr.mxu0 %v2758
        %2781 = vmatpush1.msra.mxu0 %v2757
        %2782 = vmatprep.subr.mxu0 %v2760
        %2783 = vmatpush1.msra.mxu0 %v2759
        %2784 = vmatprep.subr.mxu0 %v2762
        %2785 = vmatpush1.msra.mxu0 %v2761
        %2786 = vmatprep.subr.mxu0 %v2776
        %2787 = vmatpush1.msra.mxu0 %v2773
        %2788 = vmatprep.subr.mxu0 0.0
        %2789 = vmatpush1.msra.mxu0 0.0
        %2790 = vmatprep.subr.mxu0 0.0
        %2791 = vmatpush1.msra.mxu0 0.0
        %2792 = vmatprep.subr.mxu0 0.0
        %2793 = vmatpush1.msra.mxu0 0.0
        %2794 = vmatprep.subr.mxu0 0.0
        %2795 = vmatpush1.msra.mxu0 0.0
        %2796 = vmatprep.subr.mxu0 0.0
        %2797 = vmatpush1.msra.mxu0 0.0
        %2798 = vmatprep.subr.mxu0 0.0
        %2799 = vmatpush1.msra.mxu0 0.0
        %2800 = vmatprep.subr.mxu0 0.0
        %2801 = vmatpush1.msra.mxu0 0.0
        %2802 = vmatprep.subr.mxu0 0.0
        %2803 = vmatpush1.msra.mxu0 0.0
        %2804 = vmatprep.subr.mxu0 0.0
        %2805 = vmatpush1.msra.mxu0 0.0
        %2806 = vmatprep.subr.mxu0 0.0
        %2807 = vmatpush1.msra.mxu0 0.0
        %2808 = vmatprep.subr.mxu0 0.0
        %2809 = vmatpush1.msra.mxu0 0.0
        %2810 = vmatprep.subr.mxu0 0.0
        %2811 = vmatpush1.msra.mxu0 0.0
        %2812 = vmatprep.subr.mxu0 0.0
        %2813 = vmatpush1.msra.mxu0 0.0
        %2814 = vmatprep.subr.mxu0 0.0
        %2815 = vmatpush1.msra.mxu0 0.0
        %2816 = vmatprep.subr.mxu0 0.0
        %2817 = vmatpush1.msra.mxu0 0.0
        %2818 = vmatprep.subr.mxu0 0.0
        %2819 = vmatpush1.msra.mxu0 0.0
        %2820 = vmatprep.subr.mxu0 0.0
        %2821 = vmatpush1.msra.mxu0 0.0
        %2822 = vmatprep.subr.mxu0 0.0
        %2823 = vmatpush1.msra.mxu0 0.0
        %2824 = vmatprep.subr.mxu0 0.0
        %2825 = vmatpush1.msra.mxu0 0.0
        %2826 = vmatprep.subr.mxu0 0.0
        %2827 = vmatpush1.msra.mxu0 0.0
        %2828 = vmatprep.subr.mxu0 0.0
        %2829 = vmatpush1.msra.mxu0 0.0
        %2830 = vmatprep.subr.mxu0 0.0
        %2831 = vmatpush1.msra.mxu0 0.0
        %2832 = vmatprep.subr.mxu0 0.0
        %2833 = vmatpush1.msra.mxu0 0.0
        %2834 = vmatprep.subr.mxu0 0.0
        %2835 = vmatpush1.msra.mxu0 0.0
        %2836 = vmatprep.subr.mxu0 0.0
        %2837 = vmatpush1.msra.mxu0 0.0
        %2838 = vmatprep.subr.mxu0 0.0
        %2839 = vmatpush1.msra.mxu0 0.0
        %2840 = vmatprep.subr.mxu0 0.0
        %2841 = vmatpush1.msra.mxu0 0.0
        %2842 = vmatprep.mubr.f32.mxu0 0.0
        %2843 = vmatmul.mubr.f32.gmra.mrb[0].mxu0 %v2770
        %v2844 = vpop.f32.mrb[0].mxu0
        %v2845 = vadd.f32 %v2766, %v2844
        %v2846 = vpop.f32.mrb[0].mxu0
        %v2847 = vadd.f32 %v2766, %v2846
        %2848 = vdwg.mxu0
        %v2849 = vsel %vm2754, %v2845, 0.0
        %v2850 = vsel %vm2754, %v2847, 0.0
        %v2851 = vadd.f32 %v2849, %v2850
        %2852 = vadd.xlane.f32.xlu0 %v2851
        %v2853 = vpop.xlane.xlu0 %2852
        %v2854 = vmul.f32 %v2845, %v2845
        %v2855 = vmul.f32 %v2847, %v2847
        %v2856 = vsel %vm2754, %v2854, 0.0
        %v2857 = vsel %vm2754, %v2855, 0.0
        %v2858 = vadd.f32 %v2856, %v2857
        %2859 = vadd.xlane.f32.xlu0 %v2858
        %v2860 = vpop.xlane.xlu0 %2859
        %v2861 = vmul.f32 %v2853, 0.00390625
        %v2862 = vmul.f32 %v2860, 0.00390625
        %v2863 = vmul.f32 %v2861, %v2861
        %v2864 = vsub.f32 %v2862, %v2863
        %v2865 = vsub.f32 %v2845, %v2861
        %v2866 = vsub.f32 %v2847, %v2861
        %v2867 = vadd.f32 %v2864, 1e-05
        %v2868 = vrsqrt.pop %v2867
        %v2869 = vmul.f32 %v2865, %v2868
        %v2870 = vmul.f32 %v2866, %v2868
        %v2871 = vmax.f32 %v2869, 0.0
        %v2872 = vmax.f32 %v2870, 0.0
        %2874 = vrot.lane.b32.xlu0 %v2871, 112
        %v2875 = vpop.permute.xlu0 %2874
        %2877 = vrot.lane.b32.xlu0 %v2871, 96
        %v2878 = vpop.permute.xlu0 %2877
        %2880 = vrot.lane.b32.xlu0 %v2871, 80
        %v2881 = vpop.permute.xlu0 %2880
        %2883 = vrot.lane.b32.xlu0 %v2871, 64
        %v2884 = vpop.permute.xlu0 %2883
        %2886 = vrot.lane.b32.xlu0 %v2871, 48
        %v2887 = vpop.permute.xlu0 %2886
        %2889 = vrot.lane.b32.xlu0 %v2871, 32
        %v2890 = vpop.permute.xlu0 %2889
        %2892 = vrot.lane.b32.xlu0 %v2871, 16
        %v2893 = vpop.permute.xlu0 %2892
        %2896 = vrot.lane.b32.xlu0 %v2872, 112
        %v2897 = vpop.permute.xlu0 %2896
        %2899 = vrot.lane.b32.xlu0 %v2872, 96
        %v2900 = vpop.permute.xlu0 %2899
        %2902 = vrot.lane.b32.xlu0 %v2872, 80
        %v2903 = vpop.permute.xlu0 %2902
        %2905 = vrot.lane.b32.xlu0 %v2872, 64
        %v2906 = vpop.permute.xlu0 %2905
        %2908 = vrot.lane.b32.xlu0 %v2872, 48
        %v2909 = vpop.permute.xlu0 %2908
        %2911 = vrot.lane.b32.xlu0 %v2872, 32
        %v2912 = vpop.permute.xlu0 %2911
        %2914 = vrot.lane.b32.xlu0 %v2872, 16
        %v2915 = vpop.permute.xlu0 %2914
        %v2917 = vcombine.low %v2871, %v2878
        %v2919 = vunpack.c.l.s4 1983009808
        %v2920 = vunpack.c.0.s8 %v2919
        %v2921 = vlaneseq
        %v2922 = vshrl.u32 %v2921, 7
        %v2923 = vsub.s32 %v2920, %v2922
        %v2924 = vrot.slane %v2917, %v2923
        %v2925 = vcombine.low %v2875, %v2881
        %v2927 = vunpack.c.l.s4 1983009808
        %v2928 = vunpack.c.0.s8 %v2927
        %v2929 = vlaneseq
        %v2930 = vshrl.u32 %v2929, 7
        %v2931 = vsub.s32 %v2928, %v2930
        %v2932 = vrot.slane %v2925, %v2931
        %v2933 = vcombine.low %v2884, %v2890
        %v2935 = vunpack.c.l.s4 1983009808
        %v2936 = vunpack.c.0.s8 %v2935
        %v2937 = vlaneseq
        %v2938 = vshrl.u32 %v2937, 7
        %v2939 = vsub.s32 %v2936, %v2938
        %v2940 = vrot.slane %v2933, %v2939
        %v2941 = vcombine.low %v2887, %v2893
        %v2943 = vunpack.c.l.s4 1983009808
        %v2944 = vunpack.c.0.s8 %v2943
        %v2945 = vlaneseq
        %v2946 = vshrl.u32 %v2945, 7
        %v2947 = vsub.s32 %v2944, %v2946
        %v2948 = vrot.slane %v2941, %v2947
        %v2949 = vcombine.low %v2924, %v2932
        %v2950 = vcombine.high %v2924, %v2932
        %v2952 = vunpack.c.l.s4 1934713408
        %v2953 = vunpack.c.0.s8 %v2952
        %v2954 = vlaneseq
        %v2955 = vshrl.u32 %v2954, 7
        %v2956 = vsub.s32 %v2953, %v2955
        %v2957 = vrot.slane %v2949, %v2956
        %v2959 = vunpack.c.l.s4 1934713408
        %v2960 = vunpack.c.0.s8 %v2959
        %v2961 = vlaneseq
        %v2962 = vshrl.u32 %v2961, 7
        %v2963 = vsub.s32 %v2960, %v2962
        %v2964 = vrot.slane %v2950, %v2963
        %v2965 = vcombine.low %v2940, %v2948
        %v2966 = vcombine.high %v2940, %v2948
        %v2968 = vunpack.c.l.s4 1934713408
        %v2969 = vunpack.c.0.s8 %v2968
        %v2970 = vlaneseq
        %v2971 = vshrl.u32 %v2970, 7
        %v2972 = vsub.s32 %v2969, %v2971
        %v2973 = vrot.slane %v2965, %v2972
        %v2975 = vunpack.c.l.s4 1934713408
        %v2976 = vunpack.c.0.s8 %v2975
        %v2977 = vlaneseq
        %v2978 = vshrl.u32 %v2977, 7
        %v2979 = vsub.s32 %v2976, %v2978
        %v2980 = vrot.slane %v2966, %v2979
        %v2981 = vcombine.low %v2957, %v2973
        %v2982 = vcombine.high %v2957, %v2973
        %v2983 = vcombine.low %v2964, %v2980
        %v2984 = vcombine.high %v2964, %v2980
        %v2985 = vcombine.low %v2872, %v2900
        %v2987 = vunpack.c.l.s4 1983009808
        %v2988 = vunpack.c.0.s8 %v2987
        %v2989 = vlaneseq
        %v2990 = vshrl.u32 %v2989, 7
        %v2991 = vsub.s32 %v2988, %v2990
        %v2992 = vrot.slane %v2985, %v2991
        %v2993 = vcombine.low %v2897, %v2903
        %v2995 = vunpack.c.l.s4 1983009808
        %v2996 = vunpack.c.0.s8 %v2995
        %v2997 = vlaneseq
        %v2998 = vshrl.u32 %v2997, 7
        %v2999 = vsub.s32 %v2996, %v2998
        %v3000 = vrot.slane %v2993, %v2999
        %v3001 = vcombine.low %v2906, %v2912
        %v3003 = vunpack.c.l.s4 1983009808
        %v3004 = vunpack.c.0.s8 %v3003
        %v3005 = vlaneseq
        %v3006 = vshrl.u32 %v3005, 7
        %v3007 = vsub.s32 %v3004, %v3006
        %v3008 = vrot.slane %v3001, %v3007
        %v3009 = vcombine.low %v2909, %v2915
        %v3011 = vunpack.c.l.s4 1983009808
        %v3012 = vunpack.c.0.s8 %v3011
        %v3013 = vlaneseq
        %v3014 = vshrl.u32 %v3013, 7
        %v3015 = vsub.s32 %v3012, %v3014
        %v3016 = vrot.slane %v3009, %v3015
        %v3017 = vcombine.low %v2992, %v3000
        %v3018 = vcombine.high %v2992, %v3000
        %v3020 = vunpack.c.l.s4 1934713408
        %v3021 = vunpack.c.0.s8 %v3020
        %v3022 = vlaneseq
        %v3023 = vshrl.u32 %v3022, 7
        %v3024 = vsub.s32 %v3021, %v3023
        %v3025 = vrot.slane %v3017, %v3024
        %v3027 = vunpack.c.l.s4 1934713408
        %v3028 = vunpack.c.0.s8 %v3027
        %v3029 = vlaneseq
        %v3030 = vshrl.u32 %v3029, 7
        %v3031 = vsub.s32 %v3028, %v3030
        %v3032 = vrot.slane %v3018, %v3031
        %v3033 = vcombine.low %v3008, %v3016
        %v3034 = vcombine.high %v3008, %v3016
        %v3036 = vunpack.c.l.s4 1934713408
        %v3037 = vunpack.c.0.s8 %v3036
        %v3038 = vlaneseq
        %v3039 = vshrl.u32 %v3038, 7
        %v3040 = vsub.s32 %v3037, %v3039
        %v3041 = vrot.slane %v3033, %v3040
        %v3043 = vunpack.c.l.s4 1934713408
        %v3044 = vunpack.c.0.s8 %v3043
        %v3045 = vlaneseq
        %v3046 = vshrl.u32 %v3045, 7
        %v3047 = vsub.s32 %v3044, %v3046
        %v3048 = vrot.slane %v3034, %v3047
        %v3049 = vcombine.low %v3025, %v3041
        %v3050 = vcombine.high %v3025, %v3041
        %v3051 = vcombine.low %v3032, %v3048
        %v3052 = vcombine.high %v3032, %v3048
        %v3057 = vrot.slane %v2981, 1
        %v3058 = vrot.slane %v2982, 1
        %v3059 = vrot.slane %v2983, 1
        %v3060 = vrot.slane %v2984, 1
        %v3069 = vrot.slane %v2981, 7
        %v3070 = vrot.slane %v3049, 7
        %v3071 = vsel %vm464, %v3069, %v3070
        %v3072 = vrot.slane %v2982, 7
        %v3073 = vrot.slane %v3050, 7
        %v3074 = vsel %vm464, %v3072, %v3073
        %v3075 = vrot.slane %v2983, 7
        %v3076 = vrot.slane %v3051, 7
        %v3077 = vsel %vm464, %v3075, %v3076
        %v3078 = vrot.slane %v2984, 7
        %v3079 = vrot.slane %v3052, 7
        %v3080 = vsel %vm464, %v3078, %v3079
        %v3089 = vrot.slane %v3049, 5
        %v3090 = vrot.slane %v3050, 5
        %v3091 = vrot.slane %v3051, 5
        %v3092 = vrot.slane %v3052, 5
        %v3097 = vsel %vm464, %v3057, %v3069
        %v3098 = vsel %vm464, %v3058, %v3072
        %v3099 = vsel %vm464, %v3059, %v3075
        %v3100 = vsel %vm464, %v3060, %v3078
        %v3101 = vsel %vm464, %v3070, %v3089
        %v3102 = vsel %vm464, %v3073, %v3090
        %v3103 = vsel %vm464, %v3076, %v3091
        %v3104 = vsel %vm464, %v3079, %v3092
        %3113 = vrot.lane.b32.xlu0 %v3097, 127
        %v3114 = vpop.permute.xlu0 %3113
        %3115 = vrot.lane.b32.xlu0 %v3071, 127
        %v3116 = vpop.permute.xlu0 %3115
        %3117 = vrot.lane.b32.xlu0 %v3101, 127
        %v3118 = vpop.permute.xlu0 %3117
        %3119 = vrot.lane.b32.xlu0 %v3098, 127
        %v3120 = vpop.permute.xlu0 %3119
        %3121 = vrot.lane.b32.xlu0 %v3074, 127
        %v3122 = vpop.permute.xlu0 %3121
        %3123 = vrot.lane.b32.xlu0 %v3102, 127
        %v3124 = vpop.permute.xlu0 %3123
        %3125 = vrot.lane.b32.xlu0 %v3099, 127
        %v3126 = vpop.permute.xlu0 %3125
        %3127 = vrot.lane.b32.xlu0 %v3077, 127
        %v3128 = vpop.permute.xlu0 %3127
        %3129 = vrot.lane.b32.xlu0 %v3103, 127
        %v3130 = vpop.permute.xlu0 %3129
        %3131 = vrot.lane.b32.xlu0 %v3100, 127
        %v3132 = vpop.permute.xlu0 %3131
        %3133 = vrot.lane.b32.xlu0 %v3080, 127
        %v3134 = vpop.permute.xlu0 %3133
        %3135 = vrot.lane.b32.xlu0 %v3104, 127
        %v3136 = vpop.permute.xlu0 %3135
        %3149 = vrot.lane.b32.xlu0 %v3097, 1
        %v3150 = vpop.permute.xlu0 %3149
        %3151 = vrot.lane.b32.xlu0 %v3071, 1
        %v3152 = vpop.permute.xlu0 %3151
        %3153 = vrot.lane.b32.xlu0 %v3101, 1
        %v3154 = vpop.permute.xlu0 %3153
        %3155 = vrot.lane.b32.xlu0 %v3098, 1
        %v3156 = vpop.permute.xlu0 %3155
        %3157 = vrot.lane.b32.xlu0 %v3074, 1
        %v3158 = vpop.permute.xlu0 %3157
        %3159 = vrot.lane.b32.xlu0 %v3102, 1
        %v3160 = vpop.permute.xlu0 %3159
        %3161 = vrot.lane.b32.xlu0 %v3099, 1
        %v3162 = vpop.permute.xlu0 %3161
        %3163 = vrot.lane.b32.xlu0 %v3077, 1
        %v3164 = vpop.permute.xlu0 %3163
        %3165 = vrot.lane.b32.xlu0 %v3103, 1
        %v3166 = vpop.permute.xlu0 %3165
        %3167 = vrot.lane.b32.xlu0 %v3100, 1
        %v3168 = vpop.permute.xlu0 %3167
        %3169 = vrot.lane.b32.xlu0 %v3080, 1
        %v3170 = vpop.permute.xlu0 %3169
        %3171 = vrot.lane.b32.xlu0 %v3104, 1
        %v3172 = vpop.permute.xlu0 %3171
        %3185 = vrot.lane.b32.xlu0 %v3097, 3
        %v3186 = vpop.permute.xlu0 %3185
        %3187 = vrot.lane.b32.xlu0 %v3071, 3
        %v3188 = vpop.permute.xlu0 %3187
        %3189 = vrot.lane.b32.xlu0 %v3101, 3
        %v3190 = vpop.permute.xlu0 %3189
        %3191 = vrot.lane.b32.xlu0 %v3098, 3
        %v3192 = vpop.permute.xlu0 %3191
        %3193 = vrot.lane.b32.xlu0 %v3074, 3
        %v3194 = vpop.permute.xlu0 %3193
        %3195 = vrot.lane.b32.xlu0 %v3102, 3
        %v3196 = vpop.permute.xlu0 %3195
        %3197 = vrot.lane.b32.xlu0 %v3099, 3
        %v3198 = vpop.permute.xlu0 %3197
        %3199 = vrot.lane.b32.xlu0 %v3077, 3
        %v3200 = vpop.permute.xlu0 %3199
        %3201 = vrot.lane.b32.xlu0 %v3103, 3
        %v3202 = vpop.permute.xlu0 %3201
        %3203 = vrot.lane.b32.xlu0 %v3100, 3
        %v3204 = vpop.permute.xlu0 %3203
        %3205 = vrot.lane.b32.xlu0 %v3080, 3
        %v3206 = vpop.permute.xlu0 %3205
        %3207 = vrot.lane.b32.xlu0 %v3104, 3
        %v3208 = vpop.permute.xlu0 %3207
        %v3221 = vsel %vm629, %v3114, %v3150
        %v3222 = vsel %vm629, %v3116, %v3152
        %v3223 = vsel %vm629, %v3118, %v3154
        %v3224 = vsel %vm629, %v3120, %v3156
        %v3225 = vsel %vm629, %v3122, %v3158
        %v3226 = vsel %vm629, %v3124, %v3160
        %v3227 = vsel %vm629, %v3126, %v3162
        %v3228 = vsel %vm629, %v3128, %v3164
        %v3229 = vsel %vm629, %v3130, %v3166
        %v3230 = vsel %vm629, %v3132, %v3168
        %v3231 = vsel %vm629, %v3134, %v3170
        %v3232 = vsel %vm629, %v3136, %v3172
        %v3233 = vsel %vm642, %v3221, %v3186
        %v3234 = vsel %vm642, %v3222, %v3188
        %v3235 = vsel %vm642, %v3223, %v3190
        %v3236 = vsel %vm642, %v3224, %v3192
        %v3237 = vsel %vm642, %v3225, %v3194
        %v3238 = vsel %vm642, %v3226, %v3196
        %v3239 = vsel %vm642, %v3227, %v3198
        %v3240 = vsel %vm642, %v3228, %v3200
        %v3241 = vsel %vm642, %v3229, %v3202
        %v3242 = vsel %vm642, %v3230, %v3204
        %v3243 = vsel %vm642, %v3231, %v3206
        %v3244 = vsel %vm642, %v3232, %v3208
        %v3245 = vcombine.low %v3233, %v3239
        %v3246 = vcombine.high %v3233, %v3239
        %v3248 = vunpack.c.l.s4 1983009808
        %v3249 = vunpack.c.0.s8 %v3248
        %v3250 = vlaneseq
        %v3251 = vshrl.u32 %v3250, 7
        %v3252 = vsub.s32 %v3249, %v3251
        %v3253 = vrot.slane %v3245, %v3252
        %v3255 = vunpack.c.l.s4 1983009808
        %v3256 = vunpack.c.0.s8 %v3255
        %v3257 = vlaneseq
        %v3258 = vshrl.u32 %v3257, 7
        %v3259 = vsub.s32 %v3256, %v3258
        %v3260 = vrot.slane %v3246, %v3259
        %v3261 = vcombine.low %v3236, %v3242
        %v3262 = vcombine.high %v3236, %v3242
        %v3264 = vunpack.c.l.s4 1983009808
        %v3265 = vunpack.c.0.s8 %v3264
        %v3266 = vlaneseq
        %v3267 = vshrl.u32 %v3266, 7
        %v3268 = vsub.s32 %v3265, %v3267
        %v3269 = vrot.slane %v3261, %v3268
        %v3271 = vunpack.c.l.s4 1983009808
        %v3272 = vunpack.c.0.s8 %v3271
        %v3273 = vlaneseq
        %v3274 = vshrl.u32 %v3273, 7
        %v3275 = vsub.s32 %v3272, %v3274
        %v3276 = vrot.slane %v3262, %v3275
        %v3277 = vcombine.low %v3253, %v3269
        %v3278 = vcombine.high %v3253, %v3269
        %v3280 = vunpack.c.l.s4 1934713408
        %v3281 = vunpack.c.0.s8 %v3280
        %v3282 = vlaneseq
        %v3283 = vshrl.u32 %v3282, 7
        %v3284 = vsub.s32 %v3281, %v3283
        %v3285 = vrot.slane %v3277, %v3284
        %v3287 = vunpack.c.l.s4 1934713408
        %v3288 = vunpack.c.0.s8 %v3287
        %v3289 = vlaneseq
        %v3290 = vshrl.u32 %v3289, 7
        %v3291 = vsub.s32 %v3288, %v3290
        %v3292 = vrot.slane %v3278, %v3291
        %v3293 = vcombine.low %v3260, %v3276
        %v3294 = vcombine.high %v3260, %v3276
        %v3296 = vunpack.c.l.s4 1934713408
        %v3297 = vunpack.c.0.s8 %v3296
        %v3298 = vlaneseq
        %v3299 = vshrl.u32 %v3298, 7
        %v3300 = vsub.s32 %v3297, %v3299
        %v3301 = vrot.slane %v3293, %v3300
        %v3303 = vunpack.c.l.s4 1934713408
        %v3304 = vunpack.c.0.s8 %v3303
        %v3305 = vlaneseq
        %v3306 = vshrl.u32 %v3305, 7
        %v3307 = vsub.s32 %v3304, %v3306
        %v3308 = vrot.slane %v3294, %v3307
        %v3309 = vcombine.high %v3285, 0.0
        %v3310 = vcombine.high %v3292, 0.0
        %v3311 = vcombine.high %v3301, 0.0
        %v3312 = vcombine.high %v3308, 0.0
        %v3313 = vcombine.low %v3234, %v3240
        %v3314 = vcombine.high %v3234, %v3240
        %v3316 = vunpack.c.l.s4 1983009808
        %v3317 = vunpack.c.0.s8 %v3316
        %v3318 = vlaneseq
        %v3319 = vshrl.u32 %v3318, 7
        %v3320 = vsub.s32 %v3317, %v3319
        %v3321 = vrot.slane %v3313, %v3320
        %v3323 = vunpack.c.l.s4 1983009808
        %v3324 = vunpack.c.0.s8 %v3323
        %v3325 = vlaneseq
        %v3326 = vshrl.u32 %v3325, 7
        %v3327 = vsub.s32 %v3324, %v3326
        %v3328 = vrot.slane %v3314, %v3327
        %v3329 = vcombine.low %v3237, %v3243
        %v3330 = vcombine.high %v3237, %v3243
        %v3332 = vunpack.c.l.s4 1983009808
        %v3333 = vunpack.c.0.s8 %v3332
        %v3334 = vlaneseq
        %v3335 = vshrl.u32 %v3334, 7
        %v3336 = vsub.s32 %v3333, %v3335
        %v3337 = vrot.slane %v3329, %v3336
        %v3339 = vunpack.c.l.s4 1983009808
        %v3340 = vunpack.c.0.s8 %v3339
        %v3341 = vlaneseq
        %v3342 = vshrl.u32 %v3341, 7
        %v3343 = vsub.s32 %v3340, %v3342
        %v3344 = vrot.slane %v3330, %v3343
        %v3345 = vcombine.low %v3321, %v3337
        %v3346 = vcombine.high %v3321, %v3337
        %v3348 = vunpack.c.l.s4 1934713408
        %v3349 = vunpack.c.0.s8 %v3348
        %v3350 = vlaneseq
        %v3351 = vshrl.u32 %v3350, 7
        %v3352 = vsub.s32 %v3349, %v3351
        %v3353 = vrot.slane %v3345, %v3352
        %v3355 = vunpack.c.l.s4 1934713408
        %v3356 = vunpack.c.0.s8 %v3355
        %v3357 = vlaneseq
        %v3358 = vshrl.u32 %v3357, 7
        %v3359 = vsub.s32 %v3356, %v3358
        %v3360 = vrot.slane %v3346, %v3359
        %v3361 = vcombine.low %v3328, %v3344
        %v3362 = vcombine.high %v3328, %v3344
        %v3364 = vunpack.c.l.s4 1934713408
        %v3365 = vunpack.c.0.s8 %v3364
        %v3366 = vlaneseq
        %v3367 = vshrl.u32 %v3366, 7
        %v3368 = vsub.s32 %v3365, %v3367
        %v3369 = vrot.slane %v3361, %v3368
        %v3371 = vunpack.c.l.s4 1934713408
        %v3372 = vunpack.c.0.s8 %v3371
        %v3373 = vlaneseq
        %v3374 = vshrl.u32 %v3373, 7
        %v3375 = vsub.s32 %v3372, %v3374
        %v3376 = vrot.slane %v3362, %v3375
        %v3377 = vcombine.high %v3353, 0.0
        %v3378 = vcombine.high %v3360, 0.0
        %v3379 = vcombine.high %v3369, 0.0
        %v3380 = vcombine.high %v3376, 0.0
        %3382 = vrot.lane.b32.xlu0 %v3309, 16
        %v3383 = vpop.permute.xlu0 %3382
        %3386 = vrot.lane.b32.xlu0 %v3292, 32
        %v3387 = vpop.permute.xlu0 %3386
        %3390 = vrot.lane.b32.xlu0 %v3310, 48
        %v3391 = vpop.permute.xlu0 %3390
        %3394 = vrot.lane.b32.xlu0 %v3301, 64
        %v3395 = vpop.permute.xlu0 %3394
        %3398 = vrot.lane.b32.xlu0 %v3311, 80
        %v3399 = vpop.permute.xlu0 %3398
        %3402 = vrot.lane.b32.xlu0 %v3308, 96
        %v3403 = vpop.permute.xlu0 %3402
        %3406 = vrot.lane.b32.xlu0 %v3312, 112
        %v3407 = vpop.permute.xlu0 %3406
        %3410 = vrot.lane.b32.xlu0 %v3377, 16
        %v3411 = vpop.permute.xlu0 %3410
        %3414 = vrot.lane.b32.xlu0 %v3360, 32
        %v3415 = vpop.permute.xlu0 %3414
        %3418 = vrot.lane.b32.xlu0 %v3378, 48
        %v3419 = vpop.permute.xlu0 %3418
        %3422 = vrot.lane.b32.xlu0 %v3369, 64
        %v3423 = vpop.permute.xlu0 %3422
        %3426 = vrot.lane.b32.xlu0 %v3379, 80
        %v3427 = vpop.permute.xlu0 %3426
        %3430 = vrot.lane.b32.xlu0 %v3376, 96
        %v3431 = vpop.permute.xlu0 %3430
        %3434 = vrot.lane.b32.xlu0 %v3380, 112
        %v3435 = vpop.permute.xlu0 %3434
        %v3437 = vsel %vm847, %v3285, %v3383
        %v3438 = vsel %vm849, %v3437, %v3387
        %v3439 = vsel %vm851, %v3438, %v3391
        %v3440 = vsel %vm853, %v3439, %v3395
        %v3441 = vsel %vm855, %v3440, %v3399
        %v3442 = vsel %vm857, %v3441, %v3403
        %v3443 = vsel %vm859, %v3442, %v3407
        %v3444 = vsel %vm847, %v3353, %v3411
        %v3445 = vsel %vm849, %v3444, %v3415
        %v3446 = vsel %vm851, %v3445, %v3419
        %v3447 = vsel %vm853, %v3446, %v3423
        %v3448 = vsel %vm855, %v3447, %v3427
        %v3449 = vsel %vm857, %v3448, %v3431
        %v3450 = vsel %vm859, %v3449, %v3435
        %3459 = vrot.lane.b32.xlu0 %v3233, 127
        %v3460 = vpop.permute.xlu0 %3459
        %3461 = vrot.lane.b32.xlu0 %v3234, 127
        %v3462 = vpop.permute.xlu0 %3461
        %3463 = vrot.lane.b32.xlu0 %v3236, 127
        %v3464 = vpop.permute.xlu0 %3463
        %3465 = vrot.lane.b32.xlu0 %v3237, 127
        %v3466 = vpop.permute.xlu0 %3465
        %3467 = vrot.lane.b32.xlu0 %v3239, 127
        %v3468 = vpop.permute.xlu0 %3467
        %3469 = vrot.lane.b32.xlu0 %v3240, 127
        %v3470 = vpop.permute.xlu0 %3469
        %3471 = vrot.lane.b32.xlu0 %v3242, 127
        %v3472 = vpop.permute.xlu0 %3471
        %3473 = vrot.lane.b32.xlu0 %v3243, 127
        %v3474 = vpop.permute.xlu0 %3473
        %v3483 = vcombine.low %v3460, %v3468
        %v3484 = vcombine.high %v3460, %v3468
        %v3486 = vunpack.c.l.s4 1983009808
        %v3487 = vunpack.c.0.s8 %v3486
        %v3488 = vlaneseq
        %v3489 = vshrl.u32 %v3488, 7
        %v3490 = vsub.s32 %v3487, %v3489
        %v3491 = vrot.slane %v3483, %v3490
        %v3493 = vunpack.c.l.s4 1983009808
        %v3494 = vunpack.c.0.s8 %v3493
        %v3495 = vlaneseq
        %v3496 = vshrl.u32 %v3495, 7
        %v3497 = vsub.s32 %v3494, %v3496
        %v3498 = vrot.slane %v3484, %v3497
        %v3499 = vcombine.low %v3464, %v3472
        %v3500 = vcombine.high %v3464, %v3472
        %v3502 = vunpack.c.l.s4 1983009808
        %v3503 = vunpack.c.0.s8 %v3502
        %v3504 = vlaneseq
        %v3505 = vshrl.u32 %v3504, 7
        %v3506 = vsub.s32 %v3503, %v3505
        %v3507 = vrot.slane %v3499, %v3506
        %v3509 = vunpack.c.l.s4 1983009808
        %v3510 = vunpack.c.0.s8 %v3509
        %v3511 = vlaneseq
        %v3512 = vshrl.u32 %v3511, 7
        %v3513 = vsub.s32 %v3510, %v3512
        %v3514 = vrot.slane %v3500, %v3513
        %v3515 = vcombine.low %v3491, %v3507
        %v3516 = vcombine.high %v3491, %v3507
        %v3518 = vunpack.c.l.s4 1934713408
        %v3519 = vunpack.c.0.s8 %v3518
        %v3520 = vlaneseq
        %v3521 = vshrl.u32 %v3520, 7
        %v3522 = vsub.s32 %v3519, %v3521
        %v3523 = vrot.slane %v3515, %v3522
        %v3525 = vunpack.c.l.s4 1934713408
        %v3526 = vunpack.c.0.s8 %v3525
        %v3527 = vlaneseq
        %v3528 = vshrl.u32 %v3527, 7
        %v3529 = vsub.s32 %v3526, %v3528
        %v3530 = vrot.slane %v3516, %v3529
        %v3531 = vcombine.low %v3498, %v3514
        %v3532 = vcombine.high %v3498, %v3514
        %v3534 = vunpack.c.l.s4 1934713408
        %v3535 = vunpack.c.0.s8 %v3534
        %v3536 = vlaneseq
        %v3537 = vshrl.u32 %v3536, 7
        %v3538 = vsub.s32 %v3535, %v3537
        %v3539 = vrot.slane %v3531, %v3538
        %v3541 = vunpack.c.l.s4 1934713408
        %v3542 = vunpack.c.0.s8 %v3541
        %v3543 = vlaneseq
        %v3544 = vshrl.u32 %v3543, 7
        %v3545 = vsub.s32 %v3542, %v3544
        %v3546 = vrot.slane %v3532, %v3545
        %v3547 = vcombine.high %v3523, 0.0
        %v3548 = vcombine.high %v3530, 0.0
        %v3549 = vcombine.high %v3539, 0.0
        %v3550 = vcombine.high %v3546, 0.0
        %v3551 = vcombine.low %v3462, %v3470
        %v3552 = vcombine.high %v3462, %v3470
        %v3554 = vunpack.c.l.s4 1983009808
        %v3555 = vunpack.c.0.s8 %v3554
        %v3556 = vlaneseq
        %v3557 = vshrl.u32 %v3556, 7
        %v3558 = vsub.s32 %v3555, %v3557
        %v3559 = vrot.slane %v3551, %v3558
        %v3561 = vunpack.c.l.s4 1983009808
        %v3562 = vunpack.c.0.s8 %v3561
        %v3563 = vlaneseq
        %v3564 = vshrl.u32 %v3563, 7
        %v3565 = vsub.s32 %v3562, %v3564
        %v3566 = vrot.slane %v3552, %v3565
        %v3567 = vcombine.low %v3466, %v3474
        %v3568 = vcombine.high %v3466, %v3474
        %v3570 = vunpack.c.l.s4 1983009808
        %v3571 = vunpack.c.0.s8 %v3570
        %v3572 = vlaneseq
        %v3573 = vshrl.u32 %v3572, 7
        %v3574 = vsub.s32 %v3571, %v3573
        %v3575 = vrot.slane %v3567, %v3574
        %v3577 = vunpack.c.l.s4 1983009808
        %v3578 = vunpack.c.0.s8 %v3577
        %v3579 = vlaneseq
        %v3580 = vshrl.u32 %v3579, 7
        %v3581 = vsub.s32 %v3578, %v3580
        %v3582 = vrot.slane %v3568, %v3581
        %v3583 = vcombine.low %v3559, %v3575
        %v3584 = vcombine.high %v3559, %v3575
        %v3586 = vunpack.c.l.s4 1934713408
        %v3587 = vunpack.c.0.s8 %v3586
        %v3588 = vlaneseq
        %v3589 = vshrl.u32 %v3588, 7
        %v3590 = vsub.s32 %v3587, %v3589
        %v3591 = vrot.slane %v3583, %v3590
        %v3593 = vunpack.c.l.s4 1934713408
        %v3594 = vunpack.c.0.s8 %v3593
        %v3595 = vlaneseq
        %v3596 = vshrl.u32 %v3595, 7
        %v3597 = vsub.s32 %v3594, %v3596
        %v3598 = vrot.slane %v3584, %v3597
        %v3599 = vcombine.low %v3566, %v3582
        %v3600 = vcombine.high %v3566, %v3582
        %v3602 = vunpack.c.l.s4 1934713408
        %v3603 = vunpack.c.0.s8 %v3602
        %v3604 = vlaneseq
        %v3605 = vshrl.u32 %v3604, 7
        %v3606 = vsub.s32 %v3603, %v3605
        %v3607 = vrot.slane %v3599, %v3606
        %v3609 = vunpack.c.l.s4 1934713408
        %v3610 = vunpack.c.0.s8 %v3609
        %v3611 = vlaneseq
        %v3612 = vshrl.u32 %v3611, 7
        %v3613 = vsub.s32 %v3610, %v3612
        %v3614 = vrot.slane %v3600, %v3613
        %v3615 = vcombine.high %v3591, 0.0
        %v3616 = vcombine.high %v3598, 0.0
        %v3617 = vcombine.high %v3607, 0.0
        %v3618 = vcombine.high %v3614, 0.0
        %3620 = vrot.lane.b32.xlu0 %v3547, 16
        %v3621 = vpop.permute.xlu0 %3620
        %3624 = vrot.lane.b32.xlu0 %v3530, 32
        %v3625 = vpop.permute.xlu0 %3624
        %3628 = vrot.lane.b32.xlu0 %v3548, 48
        %v3629 = vpop.permute.xlu0 %3628
        %3632 = vrot.lane.b32.xlu0 %v3539, 64
        %v3633 = vpop.permute.xlu0 %3632
        %3636 = vrot.lane.b32.xlu0 %v3549, 80
        %v3637 = vpop.permute.xlu0 %3636
        %3640 = vrot.lane.b32.xlu0 %v3546, 96
        %v3641 = vpop.permute.xlu0 %3640
        %3644 = vrot.lane.b32.xlu0 %v3550, 112
        %v3645 = vpop.permute.xlu0 %3644
        %3648 = vrot.lane.b32.xlu0 %v3615, 16
        %v3649 = vpop.permute.xlu0 %3648
        %3652 = vrot.lane.b32.xlu0 %v3598, 32
        %v3653 = vpop.permute.xlu0 %3652
        %3656 = vrot.lane.b32.xlu0 %v3616, 48
        %v3657 = vpop.permute.xlu0 %3656
        %3660 = vrot.lane.b32.xlu0 %v3607, 64
        %v3661 = vpop.permute.xlu0 %3660
        %3664 = vrot.lane.b32.xlu0 %v3617, 80
        %v3665 = vpop.permute.xlu0 %3664
        %3668 = vrot.lane.b32.xlu0 %v3614, 96
        %v3669 = vpop.permute.xlu0 %3668
        %3672 = vrot.lane.b32.xlu0 %v3618, 112
        %v3673 = vpop.permute.xlu0 %3672
        %v3675 = vsel %vm847, %v3523, %v3621
        %v3676 = vsel %vm849, %v3675, %v3625
        %v3677 = vsel %vm851, %v3676, %v3629
        %v3678 = vsel %vm853, %v3677, %v3633
        %v3679 = vsel %vm855, %v3678, %v3637
        %v3680 = vsel %vm857, %v3679, %v3641
        %v3681 = vsel %vm859, %v3680, %v3645
        %v3682 = vsel %vm847, %v3591, %v3649
        %v3683 = vsel %vm849, %v3682, %v3653
        %v3684 = vsel %vm851, %v3683, %v3657
        %v3685 = vsel %vm853, %v3684, %v3661
        %v3686 = vsel %vm855, %v3685, %v3665
        %v3687 = vsel %vm857, %v3686, %v3669
        %v3688 = vsel %vm859, %v3687, %v3673
        %3689 = vrot.lane.b32.xlu0 %v3233, 126
        %v3690 = vpop.permute.xlu0 %3689
        %3691 = vrot.lane.b32.xlu0 %v3234, 126
        %v3692 = vpop.permute.xlu0 %3691
        %3693 = vrot.lane.b32.xlu0 %v3236, 126
        %v3694 = vpop.permute.xlu0 %3693
        %3695 = vrot.lane.b32.xlu0 %v3237, 126
        %v3696 = vpop.permute.xlu0 %3695
        %3697 = vrot.lane.b32.xlu0 %v3239, 126
        %v3698 = vpop.permute.xlu0 %3697
        %3699 = vrot.lane.b32.xlu0 %v3240, 126
        %v3700 = vpop.permute.xlu0 %3699
        %3701 = vrot.lane.b32.xlu0 %v3242, 126
        %v3702 = vpop.permute.xlu0 %3701
        %3703 = vrot.lane.b32.xlu0 %v3243, 126
        %v3704 = vpop.permute.xlu0 %3703
        %v3713 = vcombine.low %v3690, %v3698
        %v3714 = vcombine.high %v3690, %v3698
        %v3716 = vunpack.c.l.s4 1983009808
        %v3717 = vunpack.c.0.s8 %v3716
        %v3718 = vlaneseq
        %v3719 = vshrl.u32 %v3718, 7
        %v3720 = vsub.s32 %v3717, %v3719
        %v3721 = vrot.slane %v3713, %v3720
        %v3723 = vunpack.c.l.s4 1983009808
        %v3724 = vunpack.c.0.s8 %v3723
        %v3725 = vlaneseq
        %v3726 = vshrl.u32 %v3725, 7
        %v3727 = vsub.s32 %v3724, %v3726
        %v3728 = vrot.slane %v3714, %v3727
        %v3729 = vcombine.low %v3694, %v3702
        %v3730 = vcombine.high %v3694, %v3702
        %v3732 = vunpack.c.l.s4 1983009808
        %v3733 = vunpack.c.0.s8 %v3732
        %v3734 = vlaneseq
        %v3735 = vshrl.u32 %v3734, 7
        %v3736 = vsub.s32 %v3733, %v3735
        %v3737 = vrot.slane %v3729, %v3736
        %v3739 = vunpack.c.l.s4 1983009808
        %v3740 = vunpack.c.0.s8 %v3739
        %v3741 = vlaneseq
        %v3742 = vshrl.u32 %v3741, 7
        %v3743 = vsub.s32 %v3740, %v3742
        %v3744 = vrot.slane %v3730, %v3743
        %v3745 = vcombine.low %v3721, %v3737
        %v3746 = vcombine.high %v3721, %v3737
        %v3748 = vunpack.c.l.s4 1934713408
        %v3749 = vunpack.c.0.s8 %v3748
        %v3750 = vlaneseq
        %v3751 = vshrl.u32 %v3750, 7
        %v3752 = vsub.s32 %v3749, %v3751
        %v3753 = vrot.slane %v3745, %v3752
        %v3755 = vunpack.c.l.s4 1934713408
        %v3756 = vunpack.c.0.s8 %v3755
        %v3757 = vlaneseq
        %v3758 = vshrl.u32 %v3757, 7
        %v3759 = vsub.s32 %v3756, %v3758
        %v3760 = vrot.slane %v3746, %v3759
        %v3761 = vcombine.low %v3728, %v3744
        %v3762 = vcombine.high %v3728, %v3744
        %v3764 = vunpack.c.l.s4 1934713408
        %v3765 = vunpack.c.0.s8 %v3764
        %v3766 = vlaneseq
        %v3767 = vshrl.u32 %v3766, 7
        %v3768 = vsub.s32 %v3765, %v3767
        %v3769 = vrot.slane %v3761, %v3768
        %v3771 = vunpack.c.l.s4 1934713408
        %v3772 = vunpack.c.0.s8 %v3771
        %v3773 = vlaneseq
        %v3774 = vshrl.u32 %v3773, 7
        %v3775 = vsub.s32 %v3772, %v3774
        %v3776 = vrot.slane %v3762, %v3775
        %v3777 = vcombine.high %v3753, 0.0
        %v3778 = vcombine.high %v3760, 0.0
        %v3779 = vcombine.high %v3769, 0.0
        %v3780 = vcombine.high %v3776, 0.0
        %v3781 = vcombine.low %v3692, %v3700
        %v3782 = vcombine.high %v3692, %v3700
        %v3784 = vunpack.c.l.s4 1983009808
        %v3785 = vunpack.c.0.s8 %v3784
        %v3786 = vlaneseq
        %v3787 = vshrl.u32 %v3786, 7
        %v3788 = vsub.s32 %v3785, %v3787
        %v3789 = vrot.slane %v3781, %v3788
        %v3791 = vunpack.c.l.s4 1983009808
        %v3792 = vunpack.c.0.s8 %v3791
        %v3793 = vlaneseq
        %v3794 = vshrl.u32 %v3793, 7
        %v3795 = vsub.s32 %v3792, %v3794
        %v3796 = vrot.slane %v3782, %v3795
        %v3797 = vcombine.low %v3696, %v3704
        %v3798 = vcombine.high %v3696, %v3704
        %v3800 = vunpack.c.l.s4 1983009808
        %v3801 = vunpack.c.0.s8 %v3800
        %v3802 = vlaneseq
        %v3803 = vshrl.u32 %v3802, 7
        %v3804 = vsub.s32 %v3801, %v3803
        %v3805 = vrot.slane %v3797, %v3804
        %v3807 = vunpack.c.l.s4 1983009808
        %v3808 = vunpack.c.0.s8 %v3807
        %v3809 = vlaneseq
        %v3810 = vshrl.u32 %v3809, 7
        %v3811 = vsub.s32 %v3808, %v3810
        %v3812 = vrot.slane %v3798, %v3811
        %v3813 = vcombine.low %v3789, %v3805
        %v3814 = vcombine.high %v3789, %v3805
        %v3816 = vunpack.c.l.s4 1934713408
        %v3817 = vunpack.c.0.s8 %v3816
        %v3818 = vlaneseq
        %v3819 = vshrl.u32 %v3818, 7
        %v3820 = vsub.s32 %v3817, %v3819
        %v3821 = vrot.slane %v3813, %v3820
        %v3823 = vunpack.c.l.s4 1934713408
        %v3824 = vunpack.c.0.s8 %v3823
        %v3825 = vlaneseq
        %v3826 = vshrl.u32 %v3825, 7
        %v3827 = vsub.s32 %v3824, %v3826
        %v3828 = vrot.slane %v3814, %v3827
        %v3829 = vcombine.low %v3796, %v3812
        %v3830 = vcombine.high %v3796, %v3812
        %v3832 = vunpack.c.l.s4 1934713408
        %v3833 = vunpack.c.0.s8 %v3832
        %v3834 = vlaneseq
        %v3835 = vshrl.u32 %v3834, 7
        %v3836 = vsub.s32 %v3833, %v3835
        %v3837 = vrot.slane %v3829, %v3836
        %v3839 = vunpack.c.l.s4 1934713408
        %v3840 = vunpack.c.0.s8 %v3839
        %v3841 = vlaneseq
        %v3842 = vshrl.u32 %v3841, 7
        %v3843 = vsub.s32 %v3840, %v3842
        %v3844 = vrot.slane %v3830, %v3843
        %v3845 = vcombine.high %v3821, 0.0
        %v3846 = vcombine.high %v3828, 0.0
        %v3847 = vcombine.high %v3837, 0.0
        %v3848 = vcombine.high %v3844, 0.0
        %3850 = vrot.lane.b32.xlu0 %v3777, 16
        %v3851 = vpop.permute.xlu0 %3850
        %3854 = vrot.lane.b32.xlu0 %v3760, 32
        %v3855 = vpop.permute.xlu0 %3854
        %3858 = vrot.lane.b32.xlu0 %v3778, 48
        %v3859 = vpop.permute.xlu0 %3858
        %3862 = vrot.lane.b32.xlu0 %v3769, 64
        %v3863 = vpop.permute.xlu0 %3862
        %3866 = vrot.lane.b32.xlu0 %v3779, 80
        %v3867 = vpop.permute.xlu0 %3866
        %3870 = vrot.lane.b32.xlu0 %v3776, 96
        %v3871 = vpop.permute.xlu0 %3870
        %3874 = vrot.lane.b32.xlu0 %v3780, 112
        %v3875 = vpop.permute.xlu0 %3874
        %3878 = vrot.lane.b32.xlu0 %v3845, 16
        %v3879 = vpop.permute.xlu0 %3878
        %3882 = vrot.lane.b32.xlu0 %v3828, 32
        %v3883 = vpop.permute.xlu0 %3882
        %3886 = vrot.lane.b32.xlu0 %v3846, 48
        %v3887 = vpop.permute.xlu0 %3886
        %3890 = vrot.lane.b32.xlu0 %v3837, 64
        %v3891 = vpop.permute.xlu0 %3890
        %3894 = vrot.lane.b32.xlu0 %v3847, 80
        %v3895 = vpop.permute.xlu0 %3894
        %3898 = vrot.lane.b32.xlu0 %v3844, 96
        %v3899 = vpop.permute.xlu0 %3898
        %3902 = vrot.lane.b32.xlu0 %v3848, 112
        %v3903 = vpop.permute.xlu0 %3902
        %v3905 = vsel %vm847, %v3753, %v3851
        %v3906 = vsel %vm849, %v3905, %v3855
        %v3907 = vsel %vm851, %v3906, %v3859
        %v3908 = vsel %vm853, %v3907, %v3863
        %v3909 = vsel %vm855, %v3908, %v3867
        %v3910 = vsel %vm857, %v3909, %v3871
        %v3911 = vsel %vm859, %v3910, %v3875
        %v3912 = vsel %vm847, %v3821, %v3879
        %v3913 = vsel %vm849, %v3912, %v3883
        %v3914 = vsel %vm851, %v3913, %v3887
        %v3915 = vsel %vm853, %v3914, %v3891
        %v3916 = vsel %vm855, %v3915, %v3895
        %v3917 = vsel %vm857, %v3916, %v3899
        %v3918 = vsel %vm859, %v3917, %v3903
        %v3923 = vrot.slane %v3233, 1
        %v3924 = vrot.slane %v3234, 1
        %v3925 = vsel %vm1340, %v3923, %v3924
        %v3926 = vrot.slane %v3235, 1
        %v3927 = vsel %vm1340, %v3924, %v3926
        %v3928 = vrot.slane %v3236, 1
        %v3929 = vrot.slane %v3237, 1
        %v3930 = vsel %vm1340, %v3928, %v3929
        %v3931 = vrot.slane %v3238, 1
        %v3932 = vsel %vm1340, %v3929, %v3931
        %v3933 = vrot.slane %v3239, 1
        %v3934 = vrot.slane %v3240, 1
        %v3935 = vsel %vm1340, %v3933, %v3934
        %v3936 = vrot.slane %v3241, 1
        %v3937 = vsel %vm1340, %v3934, %v3936
        %v3938 = vrot.slane %v3242, 1
        %v3939 = vrot.slane %v3243, 1
        %v3940 = vsel %vm1340, %v3938, %v3939
        %v3941 = vrot.slane %v3244, 1
        %v3942 = vsel %vm1340, %v3939, %v3941
        %v3951 = vcombine.low %v3925, %v3935
        %v3952 = vcombine.high %v3925, %v3935
        %v3954 = vunpack.c.l.s4 1983009808
        %v3955 = vunpack.c.0.s8 %v3954
        %v3956 = vlaneseq
        %v3957 = vshrl.u32 %v3956, 7
        %v3958 = vsub.s32 %v3955, %v3957
        %v3959 = vrot.slane %v3951, %v3958
        %v3961 = vunpack.c.l.s4 1983009808
        %v3962 = vunpack.c.0.s8 %v3961
        %v3963 = vlaneseq
        %v3964 = vshrl.u32 %v3963, 7
        %v3965 = vsub.s32 %v3962, %v3964
        %v3966 = vrot.slane %v3952, %v3965
        %v3967 = vcombine.low %v3930, %v3940
        %v3968 = vcombine.high %v3930, %v3940
        %v3970 = vunpack.c.l.s4 1983009808
        %v3971 = vunpack.c.0.s8 %v3970
        %v3972 = vlaneseq
        %v3973 = vshrl.u32 %v3972, 7
        %v3974 = vsub.s32 %v3971, %v3973
        %v3975 = vrot.slane %v3967, %v3974
        %v3977 = vunpack.c.l.s4 1983009808
        %v3978 = vunpack.c.0.s8 %v3977
        %v3979 = vlaneseq
        %v3980 = vshrl.u32 %v3979, 7
        %v3981 = vsub.s32 %v3978, %v3980
        %v3982 = vrot.slane %v3968, %v3981
        %v3983 = vcombine.low %v3959, %v3975
        %v3984 = vcombine.high %v3959, %v3975
        %v3986 = vunpack.c.l.s4 1934713408
        %v3987 = vunpack.c.0.s8 %v3986
        %v3988 = vlaneseq
        %v3989 = vshrl.u32 %v3988, 7
        %v3990 = vsub.s32 %v3987, %v3989
        %v3991 = vrot.slane %v3983, %v3990
        %v3993 = vunpack.c.l.s4 1934713408
        %v3994 = vunpack.c.0.s8 %v3993
        %v3995 = vlaneseq
        %v3996 = vshrl.u32 %v3995, 7
        %v3997 = vsub.s32 %v3994, %v3996
        %v3998 = vrot.slane %v3984, %v3997
        %v3999 = vcombine.low %v3966, %v3982
        %v4000 = vcombine.high %v3966, %v3982
        %v4002 = vunpack.c.l.s4 1934713408
        %v4003 = vunpack.c.0.s8 %v4002
        %v4004 = vlaneseq
        %v4005 = vshrl.u32 %v4004, 7
        %v4006 = vsub.s32 %v4003, %v4005
        %v4007 = vrot.slane %v3999, %v4006
        %v4009 = vunpack.c.l.s4 1934713408
        %v4010 = vunpack.c.0.s8 %v4009
        %v4011 = vlaneseq
        %v4012 = vshrl.u32 %v4011, 7
        %v4013 = vsub.s32 %v4010, %v4012
        %v4014 = vrot.slane %v4000, %v4013
        %v4015 = vcombine.high %v3991, 0.0
        %v4016 = vcombine.high %v3998, 0.0
        %v4017 = vcombine.high %v4007, 0.0
        %v4018 = vcombine.high %v4014, 0.0
        %v4019 = vcombine.low %v3927, %v3937
        %v4020 = vcombine.high %v3927, %v3937
        %v4022 = vunpack.c.l.s4 1983009808
        %v4023 = vunpack.c.0.s8 %v4022
        %v4024 = vlaneseq
        %v4025 = vshrl.u32 %v4024, 7
        %v4026 = vsub.s32 %v4023, %v4025
        %v4027 = vrot.slane %v4019, %v4026
        %v4029 = vunpack.c.l.s4 1983009808
        %v4030 = vunpack.c.0.s8 %v4029
        %v4031 = vlaneseq
        %v4032 = vshrl.u32 %v4031, 7
        %v4033 = vsub.s32 %v4030, %v4032
        %v4034 = vrot.slane %v4020, %v4033
        %v4035 = vcombine.low %v3932, %v3942
        %v4036 = vcombine.high %v3932, %v3942
        %v4038 = vunpack.c.l.s4 1983009808
        %v4039 = vunpack.c.0.s8 %v4038
        %v4040 = vlaneseq
        %v4041 = vshrl.u32 %v4040, 7
        %v4042 = vsub.s32 %v4039, %v4041
        %v4043 = vrot.slane %v4035, %v4042
        %v4045 = vunpack.c.l.s4 1983009808
        %v4046 = vunpack.c.0.s8 %v4045
        %v4047 = vlaneseq
        %v4048 = vshrl.u32 %v4047, 7
        %v4049 = vsub.s32 %v4046, %v4048
        %v4050 = vrot.slane %v4036, %v4049
        %v4051 = vcombine.low %v4027, %v4043
        %v4052 = vcombine.high %v4027, %v4043
        %v4054 = vunpack.c.l.s4 1934713408
        %v4055 = vunpack.c.0.s8 %v4054
        %v4056 = vlaneseq
        %v4057 = vshrl.u32 %v4056, 7
        %v4058 = vsub.s32 %v4055, %v4057
        %v4059 = vrot.slane %v4051, %v4058
        %v4061 = vunpack.c.l.s4 1934713408
        %v4062 = vunpack.c.0.s8 %v4061
        %v4063 = vlaneseq
        %v4064 = vshrl.u32 %v4063, 7
        %v4065 = vsub.s32 %v4062, %v4064
        %v4066 = vrot.slane %v4052, %v4065
        %v4067 = vcombine.low %v4034, %v4050
        %v4068 = vcombine.high %v4034, %v4050
        %v4070 = vunpack.c.l.s4 1934713408
        %v4071 = vunpack.c.0.s8 %v4070
        %v4072 = vlaneseq
        %v4073 = vshrl.u32 %v4072, 7
        %v4074 = vsub.s32 %v4071, %v4073
        %v4075 = vrot.slane %v4067, %v4074
        %v4077 = vunpack.c.l.s4 1934713408
        %v4078 = vunpack.c.0.s8 %v4077
        %v4079 = vlaneseq
        %v4080 = vshrl.u32 %v4079, 7
        %v4081 = vsub.s32 %v4078, %v4080
        %v4082 = vrot.slane %v4068, %v4081
        %v4083 = vcombine.high %v4059, 0.0
        %v4084 = vcombine.high %v4066, 0.0
        %v4085 = vcombine.high %v4075, 0.0
        %v4086 = vcombine.high %v4082, 0.0
        %4088 = vrot.lane.b32.xlu0 %v4015, 16
        %v4089 = vpop.permute.xlu0 %4088
        %4092 = vrot.lane.b32.xlu0 %v3998, 32
        %v4093 = vpop.permute.xlu0 %4092
        %4096 = vrot.lane.b32.xlu0 %v4016, 48
        %v4097 = vpop.permute.xlu0 %4096
        %4100 = vrot.lane.b32.xlu0 %v4007, 64
        %v4101 = vpop.permute.xlu0 %4100
        %4104 = vrot.lane.b32.xlu0 %v4017, 80
        %v4105 = vpop.permute.xlu0 %4104
        %4108 = vrot.lane.b32.xlu0 %v4014, 96
        %v4109 = vpop.permute.xlu0 %4108
        %4112 = vrot.lane.b32.xlu0 %v4018, 112
        %v4113 = vpop.permute.xlu0 %4112
        %4116 = vrot.lane.b32.xlu0 %v4083, 16
        %v4117 = vpop.permute.xlu0 %4116
        %4120 = vrot.lane.b32.xlu0 %v4066, 32
        %v4121 = vpop.permute.xlu0 %4120
        %4124 = vrot.lane.b32.xlu0 %v4084, 48
        %v4125 = vpop.permute.xlu0 %4124
        %4128 = vrot.lane.b32.xlu0 %v4075, 64
        %v4129 = vpop.permute.xlu0 %4128
        %4132 = vrot.lane.b32.xlu0 %v4085, 80
        %v4133 = vpop.permute.xlu0 %4132
        %4136 = vrot.lane.b32.xlu0 %v4082, 96
        %v4137 = vpop.permute.xlu0 %4136
        %4140 = vrot.lane.b32.xlu0 %v4086, 112
        %v4141 = vpop.permute.xlu0 %4140
        %v4143 = vsel %vm847, %v3991, %v4089
        %v4144 = vsel %vm849, %v4143, %v4093
        %v4145 = vsel %vm851, %v4144, %v4097
        %v4146 = vsel %vm853, %v4145, %v4101
        %v4147 = vsel %vm855, %v4146, %v4105
        %v4148 = vsel %vm857, %v4147, %v4109
        %v4149 = vsel %vm859, %v4148, %v4113
        %v4150 = vsel %vm847, %v4059, %v4117
        %v4151 = vsel %vm849, %v4150, %v4121
        %v4152 = vsel %vm851, %v4151, %v4125
        %v4153 = vsel %vm853, %v4152, %v4129
        %v4154 = vsel %vm855, %v4153, %v4133
        %v4155 = vsel %vm857, %v4154, %v4137
        %v4156 = vsel %vm859, %v4155, %v4141
        %4157 = vrot.lane.b32.xlu0 %v3925, 127
        %v4158 = vpop.permute.xlu0 %4157
        %4159 = vrot.lane.b32.xlu0 %v3927, 127
        %v4160 = vpop.permute.xlu0 %4159
        %4161 = vrot.lane.b32.xlu0 %v3930, 127
        %v4162 = vpop.permute.xlu0 %4161
        %4163 = vrot.lane.b32.xlu0 %v3932, 127
        %v4164 = vpop.permute.xlu0 %4163
        %4165 = vrot.lane.b32.xlu0 %v3935, 127
        %v4166 = vpop.permute.xlu0 %4165
        %4167 = vrot.lane.b32.xlu0 %v3937, 127
        %v4168 = vpop.permute.xlu0 %4167
        %4169 = vrot.lane.b32.xlu0 %v3940, 127
        %v4170 = vpop.permute.xlu0 %4169
        %4171 = vrot.lane.b32.xlu0 %v3942, 127
        %v4172 = vpop.permute.xlu0 %4171
        %v4181 = vcombine.low %v4158, %v4166
        %v4182 = vcombine.high %v4158, %v4166
        %v4184 = vunpack.c.l.s4 1983009808
        %v4185 = vunpack.c.0.s8 %v4184
        %v4186 = vlaneseq
        %v4187 = vshrl.u32 %v4186, 7
        %v4188 = vsub.s32 %v4185, %v4187
        %v4189 = vrot.slane %v4181, %v4188
        %v4191 = vunpack.c.l.s4 1983009808
        %v4192 = vunpack.c.0.s8 %v4191
        %v4193 = vlaneseq
        %v4194 = vshrl.u32 %v4193, 7
        %v4195 = vsub.s32 %v4192, %v4194
        %v4196 = vrot.slane %v4182, %v4195
        %v4197 = vcombine.low %v4162, %v4170
        %v4198 = vcombine.high %v4162, %v4170
        %v4200 = vunpack.c.l.s4 1983009808
        %v4201 = vunpack.c.0.s8 %v4200
        %v4202 = vlaneseq
        %v4203 = vshrl.u32 %v4202, 7
        %v4204 = vsub.s32 %v4201, %v4203
        %v4205 = vrot.slane %v4197, %v4204
        %v4207 = vunpack.c.l.s4 1983009808
        %v4208 = vunpack.c.0.s8 %v4207
        %v4209 = vlaneseq
        %v4210 = vshrl.u32 %v4209, 7
        %v4211 = vsub.s32 %v4208, %v4210
        %v4212 = vrot.slane %v4198, %v4211
        %v4213 = vcombine.low %v4189, %v4205
        %v4214 = vcombine.high %v4189, %v4205
        %v4216 = vunpack.c.l.s4 1934713408
        %v4217 = vunpack.c.0.s8 %v4216
        %v4218 = vlaneseq
        %v4219 = vshrl.u32 %v4218, 7
        %v4220 = vsub.s32 %v4217, %v4219
        %v4221 = vrot.slane %v4213, %v4220
        %v4223 = vunpack.c.l.s4 1934713408
        %v4224 = vunpack.c.0.s8 %v4223
        %v4225 = vlaneseq
        %v4226 = vshrl.u32 %v4225, 7
        %v4227 = vsub.s32 %v4224, %v4226
        %v4228 = vrot.slane %v4214, %v4227
        %v4229 = vcombine.low %v4196, %v4212
        %v4230 = vcombine.high %v4196, %v4212
        %v4232 = vunpack.c.l.s4 1934713408
        %v4233 = vunpack.c.0.s8 %v4232
        %v4234 = vlaneseq
        %v4235 = vshrl.u32 %v4234, 7
        %v4236 = vsub.s32 %v4233, %v4235
        %v4237 = vrot.slane %v4229, %v4236
        %v4239 = vunpack.c.l.s4 1934713408
        %v4240 = vunpack.c.0.s8 %v4239
        %v4241 = vlaneseq
        %v4242 = vshrl.u32 %v4241, 7
        %v4243 = vsub.s32 %v4240, %v4242
        %v4244 = vrot.slane %v4230, %v4243
        %v4245 = vcombine.high %v4221, 0.0
        %v4246 = vcombine.high %v4228, 0.0
        %v4247 = vcombine.high %v4237, 0.0
        %v4248 = vcombine.high %v4244, 0.0
        %v4249 = vcombine.low %v4160, %v4168
        %v4250 = vcombine.high %v4160, %v4168
        %v4252 = vunpack.c.l.s4 1983009808
        %v4253 = vunpack.c.0.s8 %v4252
        %v4254 = vlaneseq
        %v4255 = vshrl.u32 %v4254, 7
        %v4256 = vsub.s32 %v4253, %v4255
        %v4257 = vrot.slane %v4249, %v4256
        %v4259 = vunpack.c.l.s4 1983009808
        %v4260 = vunpack.c.0.s8 %v4259
        %v4261 = vlaneseq
        %v4262 = vshrl.u32 %v4261, 7
        %v4263 = vsub.s32 %v4260, %v4262
        %v4264 = vrot.slane %v4250, %v4263
        %v4265 = vcombine.low %v4164, %v4172
        %v4266 = vcombine.high %v4164, %v4172
        %v4268 = vunpack.c.l.s4 1983009808
        %v4269 = vunpack.c.0.s8 %v4268
        %v4270 = vlaneseq
        %v4271 = vshrl.u32 %v4270, 7
        %v4272 = vsub.s32 %v4269, %v4271
        %v4273 = vrot.slane %v4265, %v4272
        %v4275 = vunpack.c.l.s4 1983009808
        %v4276 = vunpack.c.0.s8 %v4275
        %v4277 = vlaneseq
        %v4278 = vshrl.u32 %v4277, 7
        %v4279 = vsub.s32 %v4276, %v4278
        %v4280 = vrot.slane %v4266, %v4279
        %v4281 = vcombine.low %v4257, %v4273
        %v4282 = vcombine.high %v4257, %v4273
        %v4284 = vunpack.c.l.s4 1934713408
        %v4285 = vunpack.c.0.s8 %v4284
        %v4286 = vlaneseq
        %v4287 = vshrl.u32 %v4286, 7
        %v4288 = vsub.s32 %v4285, %v4287
        %v4289 = vrot.slane %v4281, %v4288
        %v4291 = vunpack.c.l.s4 1934713408
        %v4292 = vunpack.c.0.s8 %v4291
        %v4293 = vlaneseq
        %v4294 = vshrl.u32 %v4293, 7
        %v4295 = vsub.s32 %v4292, %v4294
        %v4296 = vrot.slane %v4282, %v4295
        %v4297 = vcombine.low %v4264, %v4280
        %v4298 = vcombine.high %v4264, %v4280
        %v4300 = vunpack.c.l.s4 1934713408
        %v4301 = vunpack.c.0.s8 %v4300
        %v4302 = vlaneseq
        %v4303 = vshrl.u32 %v4302, 7
        %v4304 = vsub.s32 %v4301, %v4303
        %v4305 = vrot.slane %v4297, %v4304
        %v4307 = vunpack.c.l.s4 1934713408
        %v4308 = vunpack.c.0.s8 %v4307
        %v4309 = vlaneseq
        %v4310 = vshrl.u32 %v4309, 7
        %v4311 = vsub.s32 %v4308, %v4310
        %v4312 = vrot.slane %v4298, %v4311
        %v4313 = vcombine.high %v4289, 0.0
        %v4314 = vcombine.high %v4296, 0.0
        %v4315 = vcombine.high %v4305, 0.0
        %v4316 = vcombine.high %v4312, 0.0
        %4318 = vrot.lane.b32.xlu0 %v4245, 16
        %v4319 = vpop.permute.xlu0 %4318
        %4322 = vrot.lane.b32.xlu0 %v4228, 32
        %v4323 = vpop.permute.xlu0 %4322
        %4326 = vrot.lane.b32.xlu0 %v4246, 48
        %v4327 = vpop.permute.xlu0 %4326
        %4330 = vrot.lane.b32.xlu0 %v4237, 64
        %v4331 = vpop.permute.xlu0 %4330
        %4334 = vrot.lane.b32.xlu0 %v4247, 80
        %v4335 = vpop.permute.xlu0 %4334
        %4338 = vrot.lane.b32.xlu0 %v4244, 96
        %v4339 = vpop.permute.xlu0 %4338
        %4342 = vrot.lane.b32.xlu0 %v4248, 112
        %v4343 = vpop.permute.xlu0 %4342
        %4346 = vrot.lane.b32.xlu0 %v4313, 16
        %v4347 = vpop.permute.xlu0 %4346
        %4350 = vrot.lane.b32.xlu0 %v4296, 32
        %v4351 = vpop.permute.xlu0 %4350
        %4354 = vrot.lane.b32.xlu0 %v4314, 48
        %v4355 = vpop.permute.xlu0 %4354
        %4358 = vrot.lane.b32.xlu0 %v4305, 64
        %v4359 = vpop.permute.xlu0 %4358
        %4362 = vrot.lane.b32.xlu0 %v4315, 80
        %v4363 = vpop.permute.xlu0 %4362
        %4366 = vrot.lane.b32.xlu0 %v4312, 96
        %v4367 = vpop.permute.xlu0 %4366
        %4370 = vrot.lane.b32.xlu0 %v4316, 112
        %v4371 = vpop.permute.xlu0 %4370
        %v4373 = vsel %vm847, %v4221, %v4319
        %v4374 = vsel %vm849, %v4373, %v4323
        %v4375 = vsel %vm851, %v4374, %v4327
        %v4376 = vsel %vm853, %v4375, %v4331
        %v4377 = vsel %vm855, %v4376, %v4335
        %v4378 = vsel %vm857, %v4377, %v4339
        %v4379 = vsel %vm859, %v4378, %v4343
        %v4380 = vsel %vm847, %v4289, %v4347
        %v4381 = vsel %vm849, %v4380, %v4351
        %v4382 = vsel %vm851, %v4381, %v4355
        %v4383 = vsel %vm853, %v4382, %v4359
        %v4384 = vsel %vm855, %v4383, %v4363
        %v4385 = vsel %vm857, %v4384, %v4367
        %v4386 = vsel %vm859, %v4385, %v4371
        %4387 = vrot.lane.b32.xlu0 %v3925, 126
        %v4388 = vpop.permute.xlu0 %4387
        %4389 = vrot.lane.b32.xlu0 %v3927, 126
        %v4390 = vpop.permute.xlu0 %4389
        %4391 = vrot.lane.b32.xlu0 %v3930, 126
        %v4392 = vpop.permute.xlu0 %4391
        %4393 = vrot.lane.b32.xlu0 %v3932, 126
        %v4394 = vpop.permute.xlu0 %4393
        %4395 = vrot.lane.b32.xlu0 %v3935, 126
        %v4396 = vpop.permute.xlu0 %4395
        %4397 = vrot.lane.b32.xlu0 %v3937, 126
        %v4398 = vpop.permute.xlu0 %4397
        %4399 = vrot.lane.b32.xlu0 %v3940, 126
        %v4400 = vpop.permute.xlu0 %4399
        %4401 = vrot.lane.b32.xlu0 %v3942, 126
        %v4402 = vpop.permute.xlu0 %4401
        %v4411 = vcombine.low %v4388, %v4396
        %v4412 = vcombine.high %v4388, %v4396
        %v4414 = vunpack.c.l.s4 1983009808
        %v4415 = vunpack.c.0.s8 %v4414
        %v4416 = vlaneseq
        %v4417 = vshrl.u32 %v4416, 7
        %v4418 = vsub.s32 %v4415, %v4417
        %v4419 = vrot.slane %v4411, %v4418
        %v4421 = vunpack.c.l.s4 1983009808
        %v4422 = vunpack.c.0.s8 %v4421
        %v4423 = vlaneseq
        %v4424 = vshrl.u32 %v4423, 7
        %v4425 = vsub.s32 %v4422, %v4424
        %v4426 = vrot.slane %v4412, %v4425
        %v4427 = vcombine.low %v4392, %v4400
        %v4428 = vcombine.high %v4392, %v4400
        %v4430 = vunpack.c.l.s4 1983009808
        %v4431 = vunpack.c.0.s8 %v4430
        %v4432 = vlaneseq
        %v4433 = vshrl.u32 %v4432, 7
        %v4434 = vsub.s32 %v4431, %v4433
        %v4435 = vrot.slane %v4427, %v4434
        %v4437 = vunpack.c.l.s4 1983009808
        %v4438 = vunpack.c.0.s8 %v4437
        %v4439 = vlaneseq
        %v4440 = vshrl.u32 %v4439, 7
        %v4441 = vsub.s32 %v4438, %v4440
        %v4442 = vrot.slane %v4428, %v4441
        %v4443 = vcombine.low %v4419, %v4435
        %v4444 = vcombine.high %v4419, %v4435
        %v4446 = vunpack.c.l.s4 1934713408
        %v4447 = vunpack.c.0.s8 %v4446
        %v4448 = vlaneseq
        %v4449 = vshrl.u32 %v4448, 7
        %v4450 = vsub.s32 %v4447, %v4449
        %v4451 = vrot.slane %v4443, %v4450
        %v4453 = vunpack.c.l.s4 1934713408
        %v4454 = vunpack.c.0.s8 %v4453
        %v4455 = vlaneseq
        %v4456 = vshrl.u32 %v4455, 7
        %v4457 = vsub.s32 %v4454, %v4456
        %v4458 = vrot.slane %v4444, %v4457
        %v4459 = vcombine.low %v4426, %v4442
        %v4460 = vcombine.high %v4426, %v4442
        %v4462 = vunpack.c.l.s4 1934713408
        %v4463 = vunpack.c.0.s8 %v4462
        %v4464 = vlaneseq
        %v4465 = vshrl.u32 %v4464, 7
        %v4466 = vsub.s32 %v4463, %v4465
        %v4467 = vrot.slane %v4459, %v4466
        %v4469 = vunpack.c.l.s4 1934713408
        %v4470 = vunpack.c.0.s8 %v4469
        %v4471 = vlaneseq
        %v4472 = vshrl.u32 %v4471, 7
        %v4473 = vsub.s32 %v4470, %v4472
        %v4474 = vrot.slane %v4460, %v4473
        %v4475 = vcombine.high %v4451, 0.0
        %v4476 = vcombine.high %v4458, 0.0
        %v4477 = vcombine.high %v4467, 0.0
        %v4478 = vcombine.high %v4474, 0.0
        %v4479 = vcombine.low %v4390, %v4398
        %v4480 = vcombine.high %v4390, %v4398
        %v4482 = vunpack.c.l.s4 1983009808
        %v4483 = vunpack.c.0.s8 %v4482
        %v4484 = vlaneseq
        %v4485 = vshrl.u32 %v4484, 7
        %v4486 = vsub.s32 %v4483, %v4485
        %v4487 = vrot.slane %v4479, %v4486
        %v4489 = vunpack.c.l.s4 1983009808
        %v4490 = vunpack.c.0.s8 %v4489
        %v4491 = vlaneseq
        %v4492 = vshrl.u32 %v4491, 7
        %v4493 = vsub.s32 %v4490, %v4492
        %v4494 = vrot.slane %v4480, %v4493
        %v4495 = vcombine.low %v4394, %v4402
        %v4496 = vcombine.high %v4394, %v4402
        %v4498 = vunpack.c.l.s4 1983009808
        %v4499 = vunpack.c.0.s8 %v4498
        %v4500 = vlaneseq
        %v4501 = vshrl.u32 %v4500, 7
        %v4502 = vsub.s32 %v4499, %v4501
        %v4503 = vrot.slane %v4495, %v4502
        %v4505 = vunpack.c.l.s4 1983009808
        %v4506 = vunpack.c.0.s8 %v4505
        %v4507 = vlaneseq
        %v4508 = vshrl.u32 %v4507, 7
        %v4509 = vsub.s32 %v4506, %v4508
        %v4510 = vrot.slane %v4496, %v4509
        %v4511 = vcombine.low %v4487, %v4503
        %v4512 = vcombine.high %v4487, %v4503
        %v4514 = vunpack.c.l.s4 1934713408
        %v4515 = vunpack.c.0.s8 %v4514
        %v4516 = vlaneseq
        %v4517 = vshrl.u32 %v4516, 7
        %v4518 = vsub.s32 %v4515, %v4517
        %v4519 = vrot.slane %v4511, %v4518
        %v4521 = vunpack.c.l.s4 1934713408
        %v4522 = vunpack.c.0.s8 %v4521
        %v4523 = vlaneseq
        %v4524 = vshrl.u32 %v4523, 7
        %v4525 = vsub.s32 %v4522, %v4524
        %v4526 = vrot.slane %v4512, %v4525
        %v4527 = vcombine.low %v4494, %v4510
        %v4528 = vcombine.high %v4494, %v4510
        %v4530 = vunpack.c.l.s4 1934713408
        %v4531 = vunpack.c.0.s8 %v4530
        %v4532 = vlaneseq
        %v4533 = vshrl.u32 %v4532, 7
        %v4534 = vsub.s32 %v4531, %v4533
        %v4535 = vrot.slane %v4527, %v4534
        %v4537 = vunpack.c.l.s4 1934713408
        %v4538 = vunpack.c.0.s8 %v4537
        %v4539 = vlaneseq
        %v4540 = vshrl.u32 %v4539, 7
        %v4541 = vsub.s32 %v4538, %v4540
        %v4542 = vrot.slane %v4528, %v4541
        %v4543 = vcombine.high %v4519, 0.0
        %v4544 = vcombine.high %v4526, 0.0
        %v4545 = vcombine.high %v4535, 0.0
        %v4546 = vcombine.high %v4542, 0.0
        %4548 = vrot.lane.b32.xlu0 %v4475, 16
        %v4549 = vpop.permute.xlu0 %4548
        %4552 = vrot.lane.b32.xlu0 %v4458, 32
        %v4553 = vpop.permute.xlu0 %4552
        %4556 = vrot.lane.b32.xlu0 %v4476, 48
        %v4557 = vpop.permute.xlu0 %4556
        %4560 = vrot.lane.b32.xlu0 %v4467, 64
        %v4561 = vpop.permute.xlu0 %4560
        %4564 = vrot.lane.b32.xlu0 %v4477, 80
        %v4565 = vpop.permute.xlu0 %4564
        %4568 = vrot.lane.b32.xlu0 %v4474, 96
        %v4569 = vpop.permute.xlu0 %4568
        %4572 = vrot.lane.b32.xlu0 %v4478, 112
        %v4573 = vpop.permute.xlu0 %4572
        %4576 = vrot.lane.b32.xlu0 %v4543, 16
        %v4577 = vpop.permute.xlu0 %4576
        %4580 = vrot.lane.b32.xlu0 %v4526, 32
        %v4581 = vpop.permute.xlu0 %4580
        %4584 = vrot.lane.b32.xlu0 %v4544, 48
        %v4585 = vpop.permute.xlu0 %4584
        %4588 = vrot.lane.b32.xlu0 %v4535, 64
        %v4589 = vpop.permute.xlu0 %4588
        %4592 = vrot.lane.b32.xlu0 %v4545, 80
        %v4593 = vpop.permute.xlu0 %4592
        %4596 = vrot.lane.b32.xlu0 %v4542, 96
        %v4597 = vpop.permute.xlu0 %4596
        %4600 = vrot.lane.b32.xlu0 %v4546, 112
        %v4601 = vpop.permute.xlu0 %4600
        %v4603 = vsel %vm847, %v4451, %v4549
        %v4604 = vsel %vm849, %v4603, %v4553
        %v4605 = vsel %vm851, %v4604, %v4557
        %v4606 = vsel %vm853, %v4605, %v4561
        %v4607 = vsel %vm855, %v4606, %v4565
        %v4608 = vsel %vm857, %v4607, %v4569
        %v4609 = vsel %vm859, %v4608, %v4573
        %v4610 = vsel %vm847, %v4519, %v4577
        %v4611 = vsel %vm849, %v4610, %v4581
        %v4612 = vsel %vm851, %v4611, %v4585
        %v4613 = vsel %vm853, %v4612, %v4589
        %v4614 = vsel %vm855, %v4613, %v4593
        %v4615 = vsel %vm857, %v4614, %v4597
        %v4616 = vsel %vm859, %v4615, %v4601
        %v4617 = vrot.slane %v3233, 2
        %v4618 = vrot.slane %v3234, 2
        %v4619 = vsel %vm2035, %v4617, %v4618
        %v4620 = vrot.slane %v3235, 2
        %v4621 = vsel %vm2035, %v4618, %v4620
        %v4622 = vrot.slane %v3236, 2
        %v4623 = vrot.slane %v3237, 2
        %v4624 = vsel %vm2035, %v4622, %v4623
        %v4625 = vrot.slane %v3238, 2
        %v4626 = vsel %vm2035, %v4623, %v4625
        %v4627 = vrot.slane %v3239, 2
        %v4628 = vrot.slane %v3240, 2
        %v4629 = vsel %vm2035, %v4627, %v4628
        %v4630 = vrot.slane %v3241, 2
        %v4631 = vsel %vm2035, %v4628, %v4630
        %v4632 = vrot.slane %v3242, 2
        %v4633 = vrot.slane %v3243, 2
        %v4634 = vsel %vm2035, %v4632, %v4633
        %v4635 = vrot.slane %v3244, 2
        %v4636 = vsel %vm2035, %v4633, %v4635
        %v4645 = vcombine.low %v4619, %v4629
        %v4646 = vcombine.high %v4619, %v4629
        %v4648 = vunpack.c.l.s4 1983009808
        %v4649 = vunpack.c.0.s8 %v4648
        %v4650 = vlaneseq
        %v4651 = vshrl.u32 %v4650, 7
        %v4652 = vsub.s32 %v4649, %v4651
        %v4653 = vrot.slane %v4645, %v4652
        %v4655 = vunpack.c.l.s4 1983009808
        %v4656 = vunpack.c.0.s8 %v4655
        %v4657 = vlaneseq
        %v4658 = vshrl.u32 %v4657, 7
        %v4659 = vsub.s32 %v4656, %v4658
        %v4660 = vrot.slane %v4646, %v4659
        %v4661 = vcombine.low %v4624, %v4634
        %v4662 = vcombine.high %v4624, %v4634
        %v4664 = vunpack.c.l.s4 1983009808
        %v4665 = vunpack.c.0.s8 %v4664
        %v4666 = vlaneseq
        %v4667 = vshrl.u32 %v4666, 7
        %v4668 = vsub.s32 %v4665, %v4667
        %v4669 = vrot.slane %v4661, %v4668
        %v4671 = vunpack.c.l.s4 1983009808
        %v4672 = vunpack.c.0.s8 %v4671
        %v4673 = vlaneseq
        %v4674 = vshrl.u32 %v4673, 7
        %v4675 = vsub.s32 %v4672, %v4674
        %v4676 = vrot.slane %v4662, %v4675
        %v4677 = vcombine.low %v4653, %v4669
        %v4678 = vcombine.high %v4653, %v4669
        %v4680 = vunpack.c.l.s4 1934713408
        %v4681 = vunpack.c.0.s8 %v4680
        %v4682 = vlaneseq
        %v4683 = vshrl.u32 %v4682, 7
        %v4684 = vsub.s32 %v4681, %v4683
        %v4685 = vrot.slane %v4677, %v4684
        %v4687 = vunpack.c.l.s4 1934713408
        %v4688 = vunpack.c.0.s8 %v4687
        %v4689 = vlaneseq
        %v4690 = vshrl.u32 %v4689, 7
        %v4691 = vsub.s32 %v4688, %v4690
        %v4692 = vrot.slane %v4678, %v4691
        %v4693 = vcombine.low %v4660, %v4676
        %v4694 = vcombine.high %v4660, %v4676
        %v4696 = vunpack.c.l.s4 1934713408
        %v4697 = vunpack.c.0.s8 %v4696
        %v4698 = vlaneseq
        %v4699 = vshrl.u32 %v4698, 7
        %v4700 = vsub.s32 %v4697, %v4699
        %v4701 = vrot.slane %v4693, %v4700
        %v4703 = vunpack.c.l.s4 1934713408
        %v4704 = vunpack.c.0.s8 %v4703
        %v4705 = vlaneseq
        %v4706 = vshrl.u32 %v4705, 7
        %v4707 = vsub.s32 %v4704, %v4706
        %v4708 = vrot.slane %v4694, %v4707
        %v4709 = vcombine.high %v4685, 0.0
        %v4710 = vcombine.high %v4692, 0.0
        %v4711 = vcombine.high %v4701, 0.0
        %v4712 = vcombine.high %v4708, 0.0
        %v4713 = vcombine.low %v4621, %v4631
        %v4714 = vcombine.high %v4621, %v4631
        %v4716 = vunpack.c.l.s4 1983009808
        %v4717 = vunpack.c.0.s8 %v4716
        %v4718 = vlaneseq
        %v4719 = vshrl.u32 %v4718, 7
        %v4720 = vsub.s32 %v4717, %v4719
        %v4721 = vrot.slane %v4713, %v4720
        %v4723 = vunpack.c.l.s4 1983009808
        %v4724 = vunpack.c.0.s8 %v4723
        %v4725 = vlaneseq
        %v4726 = vshrl.u32 %v4725, 7
        %v4727 = vsub.s32 %v4724, %v4726
        %v4728 = vrot.slane %v4714, %v4727
        %v4729 = vcombine.low %v4626, %v4636
        %v4730 = vcombine.high %v4626, %v4636
        %v4732 = vunpack.c.l.s4 1983009808
        %v4733 = vunpack.c.0.s8 %v4732
        %v4734 = vlaneseq
        %v4735 = vshrl.u32 %v4734, 7
        %v4736 = vsub.s32 %v4733, %v4735
        %v4737 = vrot.slane %v4729, %v4736
        %v4739 = vunpack.c.l.s4 1983009808
        %v4740 = vunpack.c.0.s8 %v4739
        %v4741 = vlaneseq
        %v4742 = vshrl.u32 %v4741, 7
        %v4743 = vsub.s32 %v4740, %v4742
        %v4744 = vrot.slane %v4730, %v4743
        %v4745 = vcombine.low %v4721, %v4737
        %v4746 = vcombine.high %v4721, %v4737
        %v4748 = vunpack.c.l.s4 1934713408
        %v4749 = vunpack.c.0.s8 %v4748
        %v4750 = vlaneseq
        %v4751 = vshrl.u32 %v4750, 7
        %v4752 = vsub.s32 %v4749, %v4751
        %v4753 = vrot.slane %v4745, %v4752
        %v4755 = vunpack.c.l.s4 1934713408
        %v4756 = vunpack.c.0.s8 %v4755
        %v4757 = vlaneseq
        %v4758 = vshrl.u32 %v4757, 7
        %v4759 = vsub.s32 %v4756, %v4758
        %v4760 = vrot.slane %v4746, %v4759
        %v4761 = vcombine.low %v4728, %v4744
        %v4762 = vcombine.high %v4728, %v4744
        %v4764 = vunpack.c.l.s4 1934713408
        %v4765 = vunpack.c.0.s8 %v4764
        %v4766 = vlaneseq
        %v4767 = vshrl.u32 %v4766, 7
        %v4768 = vsub.s32 %v4765, %v4767
        %v4769 = vrot.slane %v4761, %v4768
        %v4771 = vunpack.c.l.s4 1934713408
        %v4772 = vunpack.c.0.s8 %v4771
        %v4773 = vlaneseq
        %v4774 = vshrl.u32 %v4773, 7
        %v4775 = vsub.s32 %v4772, %v4774
        %v4776 = vrot.slane %v4762, %v4775
        %v4777 = vcombine.high %v4753, 0.0
        %v4778 = vcombine.high %v4760, 0.0
        %v4779 = vcombine.high %v4769, 0.0
        %v4780 = vcombine.high %v4776, 0.0
        %4782 = vrot.lane.b32.xlu0 %v4709, 16
        %v4783 = vpop.permute.xlu0 %4782
        %4786 = vrot.lane.b32.xlu0 %v4692, 32
        %v4787 = vpop.permute.xlu0 %4786
        %4790 = vrot.lane.b32.xlu0 %v4710, 48
        %v4791 = vpop.permute.xlu0 %4790
        %4794 = vrot.lane.b32.xlu0 %v4701, 64
        %v4795 = vpop.permute.xlu0 %4794
        %4798 = vrot.lane.b32.xlu0 %v4711, 80
        %v4799 = vpop.permute.xlu0 %4798
        %4802 = vrot.lane.b32.xlu0 %v4708, 96
        %v4803 = vpop.permute.xlu0 %4802
        %4806 = vrot.lane.b32.xlu0 %v4712, 112
        %v4807 = vpop.permute.xlu0 %4806
        %4810 = vrot.lane.b32.xlu0 %v4777, 16
        %v4811 = vpop.permute.xlu0 %4810
        %4814 = vrot.lane.b32.xlu0 %v4760, 32
        %v4815 = vpop.permute.xlu0 %4814
        %4818 = vrot.lane.b32.xlu0 %v4778, 48
        %v4819 = vpop.permute.xlu0 %4818
        %4822 = vrot.lane.b32.xlu0 %v4769, 64
        %v4823 = vpop.permute.xlu0 %4822
        %4826 = vrot.lane.b32.xlu0 %v4779, 80
        %v4827 = vpop.permute.xlu0 %4826
        %4830 = vrot.lane.b32.xlu0 %v4776, 96
        %v4831 = vpop.permute.xlu0 %4830
        %4834 = vrot.lane.b32.xlu0 %v4780, 112
        %v4835 = vpop.permute.xlu0 %4834
        %v4837 = vsel %vm847, %v4685, %v4783
        %v4838 = vsel %vm849, %v4837, %v4787
        %v4839 = vsel %vm851, %v4838, %v4791
        %v4840 = vsel %vm853, %v4839, %v4795
        %v4841 = vsel %vm855, %v4840, %v4799
        %v4842 = vsel %vm857, %v4841, %v4803
        %v4843 = vsel %vm859, %v4842, %v4807
        %v4844 = vsel %vm847, %v4753, %v4811
        %v4845 = vsel %vm849, %v4844, %v4815
        %v4846 = vsel %vm851, %v4845, %v4819
        %v4847 = vsel %vm853, %v4846, %v4823
        %v4848 = vsel %vm855, %v4847, %v4827
        %v4849 = vsel %vm857, %v4848, %v4831
        %v4850 = vsel %vm859, %v4849, %v4835
        %4851 = vrot.lane.b32.xlu0 %v4619, 127
        %v4852 = vpop.permute.xlu0 %4851
        %4853 = vrot.lane.b32.xlu0 %v4621, 127
        %v4854 = vpop.permute.xlu0 %4853
        %4855 = vrot.lane.b32.xlu0 %v4624, 127
        %v4856 = vpop.permute.xlu0 %4855
        %4857 = vrot.lane.b32.xlu0 %v4626, 127
        %v4858 = vpop.permute.xlu0 %4857
        %4859 = vrot.lane.b32.xlu0 %v4629, 127
        %v4860 = vpop.permute.xlu0 %4859
        %4861 = vrot.lane.b32.xlu0 %v4631, 127
        %v4862 = vpop.permute.xlu0 %4861
        %4863 = vrot.lane.b32.xlu0 %v4634, 127
        %v4864 = vpop.permute.xlu0 %4863
        %4865 = vrot.lane.b32.xlu0 %v4636, 127
        %v4866 = vpop.permute.xlu0 %4865
        %v4875 = vcombine.low %v4852, %v4860
        %v4876 = vcombine.high %v4852, %v4860
        %v4878 = vunpack.c.l.s4 1983009808
        %v4879 = vunpack.c.0.s8 %v4878
        %v4880 = vlaneseq
        %v4881 = vshrl.u32 %v4880, 7
        %v4882 = vsub.s32 %v4879, %v4881
        %v4883 = vrot.slane %v4875, %v4882
        %v4885 = vunpack.c.l.s4 1983009808
        %v4886 = vunpack.c.0.s8 %v4885
        %v4887 = vlaneseq
        %v4888 = vshrl.u32 %v4887, 7
        %v4889 = vsub.s32 %v4886, %v4888
        %v4890 = vrot.slane %v4876, %v4889
        %v4891 = vcombine.low %v4856, %v4864
        %v4892 = vcombine.high %v4856, %v4864
        %v4894 = vunpack.c.l.s4 1983009808
        %v4895 = vunpack.c.0.s8 %v4894
        %v4896 = vlaneseq
        %v4897 = vshrl.u32 %v4896, 7
        %v4898 = vsub.s32 %v4895, %v4897
        %v4899 = vrot.slane %v4891, %v4898
        %v4901 = vunpack.c.l.s4 1983009808
        %v4902 = vunpack.c.0.s8 %v4901
        %v4903 = vlaneseq
        %v4904 = vshrl.u32 %v4903, 7
        %v4905 = vsub.s32 %v4902, %v4904
        %v4906 = vrot.slane %v4892, %v4905
        %v4907 = vcombine.low %v4883, %v4899
        %v4908 = vcombine.high %v4883, %v4899
        %v4910 = vunpack.c.l.s4 1934713408
        %v4911 = vunpack.c.0.s8 %v4910
        %v4912 = vlaneseq
        %v4913 = vshrl.u32 %v4912, 7
        %v4914 = vsub.s32 %v4911, %v4913
        %v4915 = vrot.slane %v4907, %v4914
        %v4917 = vunpack.c.l.s4 1934713408
        %v4918 = vunpack.c.0.s8 %v4917
        %v4919 = vlaneseq
        %v4920 = vshrl.u32 %v4919, 7
        %v4921 = vsub.s32 %v4918, %v4920
        %v4922 = vrot.slane %v4908, %v4921
        %v4923 = vcombine.low %v4890, %v4906
        %v4924 = vcombine.high %v4890, %v4906
        %v4926 = vunpack.c.l.s4 1934713408
        %v4927 = vunpack.c.0.s8 %v4926
        %v4928 = vlaneseq
        %v4929 = vshrl.u32 %v4928, 7
        %v4930 = vsub.s32 %v4927, %v4929
        %v4931 = vrot.slane %v4923, %v4930
        %v4933 = vunpack.c.l.s4 1934713408
        %v4934 = vunpack.c.0.s8 %v4933
        %v4935 = vlaneseq
        %v4936 = vshrl.u32 %v4935, 7
        %v4937 = vsub.s32 %v4934, %v4936
        %v4938 = vrot.slane %v4924, %v4937
        %v4939 = vcombine.high %v4915, 0.0
        %v4940 = vcombine.high %v4922, 0.0
        %v4941 = vcombine.high %v4931, 0.0
        %v4942 = vcombine.high %v4938, 0.0
        %v4943 = vcombine.low %v4854, %v4862
        %v4944 = vcombine.high %v4854, %v4862
        %v4946 = vunpack.c.l.s4 1983009808
        %v4947 = vunpack.c.0.s8 %v4946
        %v4948 = vlaneseq
        %v4949 = vshrl.u32 %v4948, 7
        %v4950 = vsub.s32 %v4947, %v4949
        %v4951 = vrot.slane %v4943, %v4950
        %v4953 = vunpack.c.l.s4 1983009808
        %v4954 = vunpack.c.0.s8 %v4953
        %v4955 = vlaneseq
        %v4956 = vshrl.u32 %v4955, 7
        %v4957 = vsub.s32 %v4954, %v4956
        %v4958 = vrot.slane %v4944, %v4957
        %v4959 = vcombine.low %v4858, %v4866
        %v4960 = vcombine.high %v4858, %v4866
        %v4962 = vunpack.c.l.s4 1983009808
        %v4963 = vunpack.c.0.s8 %v4962
        %v4964 = vlaneseq
        %v4965 = vshrl.u32 %v4964, 7
        %v4966 = vsub.s32 %v4963, %v4965
        %v4967 = vrot.slane %v4959, %v4966
        %v4969 = vunpack.c.l.s4 1983009808
        %v4970 = vunpack.c.0.s8 %v4969
        %v4971 = vlaneseq
        %v4972 = vshrl.u32 %v4971, 7
        %v4973 = vsub.s32 %v4970, %v4972
        %v4974 = vrot.slane %v4960, %v4973
        %v4975 = vcombine.low %v4951, %v4967
        %v4976 = vcombine.high %v4951, %v4967
        %v4978 = vunpack.c.l.s4 1934713408
        %v4979 = vunpack.c.0.s8 %v4978
        %v4980 = vlaneseq
        %v4981 = vshrl.u32 %v4980, 7
        %v4982 = vsub.s32 %v4979, %v4981
        %v4983 = vrot.slane %v4975, %v4982
        %v4985 = vunpack.c.l.s4 1934713408
        %v4986 = vunpack.c.0.s8 %v4985
        %v4987 = vlaneseq
        %v4988 = vshrl.u32 %v4987, 7
        %v4989 = vsub.s32 %v4986, %v4988
        %v4990 = vrot.slane %v4976, %v4989
        %v4991 = vcombine.low %v4958, %v4974
        %v4992 = vcombine.high %v4958, %v4974
        %v4994 = vunpack.c.l.s4 1934713408
        %v4995 = vunpack.c.0.s8 %v4994
        %v4996 = vlaneseq
        %v4997 = vshrl.u32 %v4996, 7
        %v4998 = vsub.s32 %v4995, %v4997
        %v4999 = vrot.slane %v4991, %v4998
        %v5001 = vunpack.c.l.s4 1934713408
        %v5002 = vunpack.c.0.s8 %v5001
        %v5003 = vlaneseq
        %v5004 = vshrl.u32 %v5003, 7
        %v5005 = vsub.s32 %v5002, %v5004
        %v5006 = vrot.slane %v4992, %v5005
        %v5007 = vcombine.high %v4983, 0.0
        %v5008 = vcombine.high %v4990, 0.0
        %v5009 = vcombine.high %v4999, 0.0
        %v5010 = vcombine.high %v5006, 0.0
        %5012 = vrot.lane.b32.xlu0 %v4939, 16
        %v5013 = vpop.permute.xlu0 %5012
        %5016 = vrot.lane.b32.xlu0 %v4922, 32
        %v5017 = vpop.permute.xlu0 %5016
        %5020 = vrot.lane.b32.xlu0 %v4940, 48
        %v5021 = vpop.permute.xlu0 %5020
        %5024 = vrot.lane.b32.xlu0 %v4931, 64
        %v5025 = vpop.permute.xlu0 %5024
        %5028 = vrot.lane.b32.xlu0 %v4941, 80
        %v5029 = vpop.permute.xlu0 %5028
        %5032 = vrot.lane.b32.xlu0 %v4938, 96
        %v5033 = vpop.permute.xlu0 %5032
        %5036 = vrot.lane.b32.xlu0 %v4942, 112
        %v5037 = vpop.permute.xlu0 %5036
        %5040 = vrot.lane.b32.xlu0 %v5007, 16
        %v5041 = vpop.permute.xlu0 %5040
        %5044 = vrot.lane.b32.xlu0 %v4990, 32
        %v5045 = vpop.permute.xlu0 %5044
        %5048 = vrot.lane.b32.xlu0 %v5008, 48
        %v5049 = vpop.permute.xlu0 %5048
        %5052 = vrot.lane.b32.xlu0 %v4999, 64
        %v5053 = vpop.permute.xlu0 %5052
        %5056 = vrot.lane.b32.xlu0 %v5009, 80
        %v5057 = vpop.permute.xlu0 %5056
        %5060 = vrot.lane.b32.xlu0 %v5006, 96
        %v5061 = vpop.permute.xlu0 %5060
        %5064 = vrot.lane.b32.xlu0 %v5010, 112
        %v5065 = vpop.permute.xlu0 %5064
        %v5067 = vsel %vm847, %v4915, %v5013
        %v5068 = vsel %vm849, %v5067, %v5017
        %v5069 = vsel %vm851, %v5068, %v5021
        %v5070 = vsel %vm853, %v5069, %v5025
        %v5071 = vsel %vm855, %v5070, %v5029
        %v5072 = vsel %vm857, %v5071, %v5033
        %v5073 = vsel %vm859, %v5072, %v5037
        %v5074 = vsel %vm847, %v4983, %v5041
        %v5075 = vsel %vm849, %v5074, %v5045
        %v5076 = vsel %vm851, %v5075, %v5049
        %v5077 = vsel %vm853, %v5076, %v5053
        %v5078 = vsel %vm855, %v5077, %v5057
        %v5079 = vsel %vm857, %v5078, %v5061
        %v5080 = vsel %vm859, %v5079, %v5065
        %5081 = vrot.lane.b32.xlu0 %v4619, 126
        %v5082 = vpop.permute.xlu0 %5081
        %5083 = vrot.lane.b32.xlu0 %v4621, 126
        %v5084 = vpop.permute.xlu0 %5083
        %5085 = vrot.lane.b32.xlu0 %v4624, 126
        %v5086 = vpop.permute.xlu0 %5085
        %5087 = vrot.lane.b32.xlu0 %v4626, 126
        %v5088 = vpop.permute.xlu0 %5087
        %5089 = vrot.lane.b32.xlu0 %v4629, 126
        %v5090 = vpop.permute.xlu0 %5089
        %5091 = vrot.lane.b32.xlu0 %v4631, 126
        %v5092 = vpop.permute.xlu0 %5091
        %5093 = vrot.lane.b32.xlu0 %v4634, 126
        %v5094 = vpop.permute.xlu0 %5093
        %5095 = vrot.lane.b32.xlu0 %v4636, 126
        %v5096 = vpop.permute.xlu0 %5095
        %v5105 = vcombine.low %v5082, %v5090
        %v5106 = vcombine.high %v5082, %v5090
        %v5108 = vunpack.c.l.s4 1983009808
        %v5109 = vunpack.c.0.s8 %v5108
        %v5110 = vlaneseq
        %v5111 = vshrl.u32 %v5110, 7
        %v5112 = vsub.s32 %v5109, %v5111
        %v5113 = vrot.slane %v5105, %v5112
        %v5115 = vunpack.c.l.s4 1983009808
        %v5116 = vunpack.c.0.s8 %v5115
        %v5117 = vlaneseq
        %v5118 = vshrl.u32 %v5117, 7
        %v5119 = vsub.s32 %v5116, %v5118
        %v5120 = vrot.slane %v5106, %v5119
        %v5121 = vcombine.low %v5086, %v5094
        %v5122 = vcombine.high %v5086, %v5094
        %v5124 = vunpack.c.l.s4 1983009808
        %v5125 = vunpack.c.0.s8 %v5124
        %v5126 = vlaneseq
        %v5127 = vshrl.u32 %v5126, 7
        %v5128 = vsub.s32 %v5125, %v5127
        %v5129 = vrot.slane %v5121, %v5128
        %v5131 = vunpack.c.l.s4 1983009808
        %v5132 = vunpack.c.0.s8 %v5131
        %v5133 = vlaneseq
        %v5134 = vshrl.u32 %v5133, 7
        %v5135 = vsub.s32 %v5132, %v5134
        %v5136 = vrot.slane %v5122, %v5135
        %v5137 = vcombine.low %v5113, %v5129
        %v5138 = vcombine.high %v5113, %v5129
        %v5140 = vunpack.c.l.s4 1934713408
        %v5141 = vunpack.c.0.s8 %v5140
        %v5142 = vlaneseq
        %v5143 = vshrl.u32 %v5142, 7
        %v5144 = vsub.s32 %v5141, %v5143
        %v5145 = vrot.slane %v5137, %v5144
        %v5147 = vunpack.c.l.s4 1934713408
        %v5148 = vunpack.c.0.s8 %v5147
        %v5149 = vlaneseq
        %v5150 = vshrl.u32 %v5149, 7
        %v5151 = vsub.s32 %v5148, %v5150
        %v5152 = vrot.slane %v5138, %v5151
        %v5153 = vcombine.low %v5120, %v5136
        %v5154 = vcombine.high %v5120, %v5136
        %v5156 = vunpack.c.l.s4 1934713408
        %v5157 = vunpack.c.0.s8 %v5156
        %v5158 = vlaneseq
        %v5159 = vshrl.u32 %v5158, 7
        %v5160 = vsub.s32 %v5157, %v5159
        %v5161 = vrot.slane %v5153, %v5160
        %v5163 = vunpack.c.l.s4 1934713408
        %v5164 = vunpack.c.0.s8 %v5163
        %v5165 = vlaneseq
        %v5166 = vshrl.u32 %v5165, 7
        %v5167 = vsub.s32 %v5164, %v5166
        %v5168 = vrot.slane %v5154, %v5167
        %v5169 = vcombine.high %v5145, 0.0
        %v5170 = vcombine.high %v5152, 0.0
        %v5171 = vcombine.high %v5161, 0.0
        %v5172 = vcombine.high %v5168, 0.0
        %v5173 = vcombine.low %v5084, %v5092
        %v5174 = vcombine.high %v5084, %v5092
        %v5176 = vunpack.c.l.s4 1983009808
        %v5177 = vunpack.c.0.s8 %v5176
        %v5178 = vlaneseq
        %v5179 = vshrl.u32 %v5178, 7
        %v5180 = vsub.s32 %v5177, %v5179
        %v5181 = vrot.slane %v5173, %v5180
        %v5183 = vunpack.c.l.s4 1983009808
        %v5184 = vunpack.c.0.s8 %v5183
        %v5185 = vlaneseq
        %v5186 = vshrl.u32 %v5185, 7
        %v5187 = vsub.s32 %v5184, %v5186
        %v5188 = vrot.slane %v5174, %v5187
        %v5189 = vcombine.low %v5088, %v5096
        %v5190 = vcombine.high %v5088, %v5096
        %v5192 = vunpack.c.l.s4 1983009808
        %v5193 = vunpack.c.0.s8 %v5192
        %v5194 = vlaneseq
        %v5195 = vshrl.u32 %v5194, 7
        %v5196 = vsub.s32 %v5193, %v5195
        %v5197 = vrot.slane %v5189, %v5196
        %v5199 = vunpack.c.l.s4 1983009808
        %v5200 = vunpack.c.0.s8 %v5199
        %v5201 = vlaneseq
        %v5202 = vshrl.u32 %v5201, 7
        %v5203 = vsub.s32 %v5200, %v5202
        %v5204 = vrot.slane %v5190, %v5203
        %v5205 = vcombine.low %v5181, %v5197
        %v5206 = vcombine.high %v5181, %v5197
        %v5208 = vunpack.c.l.s4 1934713408
        %v5209 = vunpack.c.0.s8 %v5208
        %v5210 = vlaneseq
        %v5211 = vshrl.u32 %v5210, 7
        %v5212 = vsub.s32 %v5209, %v5211
        %v5213 = vrot.slane %v5205, %v5212
        %v5215 = vunpack.c.l.s4 1934713408
        %v5216 = vunpack.c.0.s8 %v5215
        %v5217 = vlaneseq
        %v5218 = vshrl.u32 %v5217, 7
        %v5219 = vsub.s32 %v5216, %v5218
        %v5220 = vrot.slane %v5206, %v5219
        %v5221 = vcombine.low %v5188, %v5204
        %v5222 = vcombine.high %v5188, %v5204
        %v5224 = vunpack.c.l.s4 1934713408
        %v5225 = vunpack.c.0.s8 %v5224
        %v5226 = vlaneseq
        %v5227 = vshrl.u32 %v5226, 7
        %v5228 = vsub.s32 %v5225, %v5227
        %v5229 = vrot.slane %v5221, %v5228
        %v5231 = vunpack.c.l.s4 1934713408
        %v5232 = vunpack.c.0.s8 %v5231
        %v5233 = vlaneseq
        %v5234 = vshrl.u32 %v5233, 7
        %v5235 = vsub.s32 %v5232, %v5234
        %v5236 = vrot.slane %v5222, %v5235
        %v5237 = vcombine.high %v5213, 0.0
        %v5238 = vcombine.high %v5220, 0.0
        %v5239 = vcombine.high %v5229, 0.0
        %v5240 = vcombine.high %v5236, 0.0
        %5242 = vrot.lane.b32.xlu0 %v5169, 16
        %v5243 = vpop.permute.xlu0 %5242
        %5246 = vrot.lane.b32.xlu0 %v5152, 32
        %v5247 = vpop.permute.xlu0 %5246
        %5250 = vrot.lane.b32.xlu0 %v5170, 48
        %v5251 = vpop.permute.xlu0 %5250
        %5254 = vrot.lane.b32.xlu0 %v5161, 64
        %v5255 = vpop.permute.xlu0 %5254
        %5258 = vrot.lane.b32.xlu0 %v5171, 80
        %v5259 = vpop.permute.xlu0 %5258
        %5262 = vrot.lane.b32.xlu0 %v5168, 96
        %v5263 = vpop.permute.xlu0 %5262
        %5266 = vrot.lane.b32.xlu0 %v5172, 112
        %v5267 = vpop.permute.xlu0 %5266
        %5270 = vrot.lane.b32.xlu0 %v5237, 16
        %v5271 = vpop.permute.xlu0 %5270
        %5274 = vrot.lane.b32.xlu0 %v5220, 32
        %v5275 = vpop.permute.xlu0 %5274
        %5278 = vrot.lane.b32.xlu0 %v5238, 48
        %v5279 = vpop.permute.xlu0 %5278
        %5282 = vrot.lane.b32.xlu0 %v5229, 64
        %v5283 = vpop.permute.xlu0 %5282
        %5286 = vrot.lane.b32.xlu0 %v5239, 80
        %v5287 = vpop.permute.xlu0 %5286
        %5290 = vrot.lane.b32.xlu0 %v5236, 96
        %v5291 = vpop.permute.xlu0 %5290
        %5294 = vrot.lane.b32.xlu0 %v5240, 112
        %v5295 = vpop.permute.xlu0 %5294
        %v5297 = vsel %vm847, %v5145, %v5243
        %v5298 = vsel %vm849, %v5297, %v5247
        %v5299 = vsel %vm851, %v5298, %v5251
        %v5300 = vsel %vm853, %v5299, %v5255
        %v5301 = vsel %vm855, %v5300, %v5259
        %v5302 = vsel %vm857, %v5301, %v5263
        %v5303 = vsel %vm859, %v5302, %v5267
        %v5304 = vsel %vm847, %v5213, %v5271
        %v5305 = vsel %vm849, %v5304, %v5275
        %v5306 = vsel %vm851, %v5305, %v5279
        %v5307 = vsel %vm853, %v5306, %v5283
        %v5308 = vsel %vm855, %v5307, %v5287
        %v5309 = vsel %vm857, %v5308, %v5291
        %v5310 = vsel %vm859, %v5309, %v5295
        %v5313 = vrot.slane %v3681, 4
        %v5314 = vrot.slane %v3688, 4
        %v5319 = vrot.slane %v4149, 4
        %v5320 = vrot.slane %v4156, 4
        %v5325 = vrot.slane %v4609, 4
        %v5326 = vrot.slane %v4616, 4
        %v5331 = vrot.slane %v5073, 4
        %v5332 = vrot.slane %v5080, 4
        %v5335 = vsel %vm2754, %v3443, %v5313
        %v5336 = vsel %vm2754, %v3450, %v5314
        %v5337 = vsel %vm2754, %v3911, %v5319
        %v5338 = vsel %vm2754, %v3918, %v5320
        %v5339 = vsel %vm2754, %v4379, %v5325
        %v5340 = vsel %vm2754, %v4386, %v5326
        %v5341 = vsel %vm2754, %v4843, %v5331
        %v5342 = vsel %vm2754, %v4850, %v5332
        %5344 = vset.pattern.permute.xlu0 0
        %5345 = vperm.xlu0 %5344, %v245
        %v5346 = vpop.permute.xlu0 %5345
        %v5349 = vsel %vm2768, %v244, 0
        %v5352 = vsel %vm2754, %v5303, 0
        %v5355 = vsel %vm2754, %v5310, 0
        %5357 = vmatprep.subr.mxu0 %v5336
        %5358 = vmatpush1.msra.mxu0 %v5335
        %5359 = vmatprep.subr.mxu0 %v5338
        %5360 = vmatpush1.msra.mxu0 %v5337
        %5361 = vmatprep.subr.mxu0 %v5340
        %5362 = vmatpush1.msra.mxu0 %v5339
        %5363 = vmatprep.subr.mxu0 %v5342
        %5364 = vmatpush1.msra.mxu0 %v5341
        %5365 = vmatprep.subr.mxu0 %v5355
        %5366 = vmatpush1.msra.mxu0 %v5352
        %5367 = vmatprep.subr.mxu0 0.0
        %5368 = vmatpush1.msra.mxu0 0.0
        %5369 = vmatprep.subr.mxu0 0.0
        %5370 = vmatpush1.msra.mxu0 0.0
        %5371 = vmatprep.subr.mxu0 0.0
        %5372 = vmatpush1.msra.mxu0 0.0
        %5373 = vmatprep.subr.mxu0 0.0
        %5374 = vmatpush1.msra.mxu0 0.0
        %5375 = vmatprep.subr.mxu0 0.0
        %5376 = vmatpush1.msra.mxu0 0.0
        %5377 = vmatprep.subr.mxu0 0.0
        %5378 = vmatpush1.msra.mxu0 0.0
        %5379 = vmatprep.subr.mxu0 0.0
        %5380 = vmatpush1.msra.mxu0 0.0
        %5381 = vmatprep.subr.mxu0 0.0
        %5382 = vmatpush1.msra.mxu0 0.0
        %5383 = vmatprep.subr.mxu0 0.0
        %5384 = vmatpush1.msra.mxu0 0.0
        %5385 = vmatprep.subr.mxu0 0.0
        %5386 = vmatpush1.msra.mxu0 0.0
        %5387 = vmatprep.subr.mxu0 0.0
        %5388 = vmatpush1.msra.mxu0 0.0
        %5389 = vmatprep.subr.mxu0 0.0
        %5390 = vmatpush1.msra.mxu0 0.0
        %5391 = vmatprep.subr.mxu0 0.0
        %5392 = vmatpush1.msra.mxu0 0.0
        %5393 = vmatprep.subr.mxu0 0.0
        %5394 = vmatpush1.msra.mxu0 0.0
        %5395 = vmatprep.subr.mxu0 0.0
        %5396 = vmatpush1.msra.mxu0 0.0
        %5397 = vmatprep.subr.mxu0 0.0
        %5398 = vmatpush1.msra.mxu0 0.0
        %5399 = vmatprep.subr.mxu0 0.0
        %5400 = vmatpush1.msra.mxu0 0.0
        %5401 = vmatprep.subr.mxu0 0.0
        %5402 = vmatpush1.msra.mxu0 0.0
        %5403 = vmatprep.subr.mxu0 0.0
        %5404 = vmatpush1.msra.mxu0 0.0
        %5405 = vmatprep.subr.mxu0 0.0
        %5406 = vmatpush1.msra.mxu0 0.0
        %5407 = vmatprep.subr.mxu0 0.0
        %5408 = vmatpush1.msra.mxu0 0.0
        %5409 = vmatprep.subr.mxu0 0.0
        %5410 = vmatpush1.msra.mxu0 0.0
        %5411 = vmatprep.subr.mxu0 0.0
        %5412 = vmatpush1.msra.mxu0 0.0
        %5413 = vmatprep.subr.mxu0 0.0
        %5414 = vmatpush1.msra.mxu0 0.0
        %5415 = vmatprep.subr.mxu0 0.0
        %5416 = vmatpush1.msra.mxu0 0.0
        %5417 = vmatprep.subr.mxu0 0.0
        %5418 = vmatpush1.msra.mxu0 0.0
        %5419 = vmatprep.subr.mxu0 0.0
        %5420 = vmatpush1.msra.mxu0 0.0
        %5421 = vmatprep.mubr.f32.mxu0 0.0
        %5422 = vmatmul.mubr.f32.gmra.mrb[0].mxu0 %v5349
        %v5423 = vpop.f32.mrb[0].mxu0
        %v5424 = vadd.f32 %v5346, %v5423
        %v5425 = vpop.f32.mrb[0].mxu0
        %v5426 = vadd.f32 %v5346, %v5425
        %5427 = vdwg.mxu0
        %v5428 = vsel %vm2754, %v5424, 0.0
        %v5429 = vsel %vm2754, %v5426, 0.0
        %v5430 = vadd.f32 %v5428, %v5429
        %5431 = vadd.xlane.f32.xlu0 %v5430
        %v5432 = vpop.xlane.xlu0 %5431
        %v5433 = vmul.f32 %v5424, %v5424
        %v5434 = vmul.f32 %v5426, %v5426
        %v5435 = vsel %vm2754, %v5433, 0.0
        %v5436 = vsel %vm2754, %v5434, 0.0
        %v5437 = vadd.f32 %v5435, %v5436
        %5438 = vadd.xlane.f32.xlu0 %v5437
        %v5439 = vpop.xlane.xlu0 %5438
        %v5440 = vmul.f32 %v5432, 0.00390625
        %v5441 = vmul.f32 %v5439, 0.00390625
        %v5442 = vmul.f32 %v5440, %v5440
        %v5443 = vsub.f32 %v5441, %v5442
        %v5444 = vsub.f32 %v5424, %v5440
        %v5445 = vsub.f32 %v5426, %v5440
        %v5446 = vadd.f32 %v5443, 1e-05
        %v5447 = vrsqrt.pop %v5446
        %v5448 = vmul.f32 %v5444, %v5447
        %v5449 = vmul.f32 %v5445, %v5447
        %v5452 = vcombine.low %v5448, %v5449
        %v5454 = vadd.f32 %v241, %v5452
        %5455 = vst [vmem:[%s240] sm:$0xff] %v5454
        %s5456 = sand.u32 %s140, 1
        %s5457 = scalar_lea.sflag [#allocation4], %s5456
        %s5458 = sand.u32 %s140, 1
        %s5459 = smul.addr %s5458, 8
        %s5460 = scalar_lea.vmem [#allocation5], %s5459
        // Predicated region
        $region45: #{tpu_custom_call.1} parent=39 // pred_check
          %p5461 = pneg %p150
        $region46: #{tpu_custom_call.1} parent=39 // pred_check_branch
          %5463 = sbr.rel (%p5461) target = $region48
        $region47: #{tpu_custom_call.1} parent=39 // pred_region
          %s5465 = ssub.s32 128, 128
          %5466 = vsyncadd %s5457, %s5465
          %s5467 = smul.addr %s22, 2
          %s5468 = smul.addr %s5467, 64
          %s5469 = scalar_lea.hbm %s5, %s5468
          %s5471 = sshll.u32 %s5460, 4
          %s5472 = int_to_ptr.vmem [resolvable:$true] %s5471
          %5474 = dma.vmem_to_hbm [thread:$0]  %s5472, 128, %s5469, %s5457
        $region48: #{tpu_custom_call.1} parent=39 // pred_fallthru
          _
      $region40: #{tpu_custom_call.1} parent=5 // pred_fallthru
        _
      %p5475 = scmp.le.s32.totalorder 2, %s17
      // Predicated region
      $region49: #{tpu_custom_call.1} parent=5 // pred_check
        %p5476 = pneg %p5475
      $region50: #{tpu_custom_call.1} parent=5 // pred_check_branch
        %5478 = sbr.rel (%p5476) target = $region52
      $region51: #{tpu_custom_call.1} parent=5 // pred_region
        %s5479 = ssub.s32 %s17, 2
        // Predicated region
        $region53: #{tpu_custom_call.1} parent=51 // pred_check
          %p5480 = pneg %p156
        $region54: #{tpu_custom_call.1} parent=51 // pred_check_branch
          %5482 = sbr.rel (%p5480) target = $region56
        $region55: #{tpu_custom_call.1} parent=51 // pred_region
          %s5483 = sand.u32 %s141, 1
          %s5484 = scalar_lea.sflag [#allocation4], %s5483
          %s5485 = sand.u32 %s141, 1
          %s5486 = smul.addr %s5485, 8
          %s5487 = scalar_lea.vmem [#allocation5], %s5486
          %5488 = dma.done %s5484, 128
        $region56: #{tpu_custom_call.1} parent=51 // pred_fallthru
          _
      $region52: #{tpu_custom_call.1} parent=5 // pred_fallthru
        _
    $region6: #{tpu_custom_call.1} parent=1 // loop_footer
      %s21 = sadd.s32 1, %s17
    $region7: #{tpu_custom_call.1} parent=1 // loop_footer_branch
      %16 = sbr.rel target = $region3
    $region8: #{tpu_custom_call.1} parent=1 // loop_exit
      _
    %5489 = vsyncpa [#allocation3], 1
    %s5490 = scalar_lea.sflag [#allocation3], 1
    %5491 = vsyncpa %s5490, 1
    %5492 = vsyncpa [#allocation4], 1
    %s5493 = scalar_lea.sflag [#allocation4], 1
    %5494 = vsyncpa %s5493, 1

</llo_original>
